<compile_context>
chip_gen: v5e
topology: v5e:2x2
jax: 0.10.0
libtpu: 0.0.40
codegen_flags: <defaults>
</compile_context>

<pallas_src>
import numpy as np
import jax
import jax.numpy as jnp
from jax.experimental import pallas as pl
from jax.experimental.pallas import tpu as pltpu


MATMUL_DTYPE = jnp.bfloat16   # MXU operands; accumulation stays f32
GROUPS = 4                    # scale_process groups == number of pooled branches

_VMEM_LIMIT_CACHE = None


def _vmem_limit_bytes():
    """80 MiB on 128-MiB-VMEM parts (v5e/v6e), 40 MiB on 64-MiB v7x."""
    global _VMEM_LIMIT_CACHE
    if _VMEM_LIMIT_CACHE is None:
        cap = 128 * 1024 * 1024
        try:
            info_fn = getattr(pltpu, "get_tpu_info", None)
            if info_fn is not None:
                cap = int(getattr(info_fn(), "vmem_capacity_bytes", cap))
        except Exception:
            pass
        _VMEM_LIMIT_CACHE = (80 if cap >= (96 << 20) else 40) << 20
    return _VMEM_LIMIT_CACHE


def _mosaic(grid_rank):
    # Every grid axis in this module is independent -> all "parallel"
    # (length always matches the grid rank).
    return pltpu.CompilerParams(
        dimension_semantics=("parallel",) * grid_rank,
        vmem_limit_bytes=_vmem_limit_bytes())


def _tile_m(m, target=1024):
    # Fixed M tile (pl.cdiv grid handles the tail); never "one giant block".
    if m >= target:
        return target
    return max(8, ((m + 7) // 8) * 8)


# ----------------------------- Pallas kernels -----------------------------

def _bn_relu_conv1x1_kernel(x_ref, s_ref, b_ref, w_ref, o_ref):
    # scale0: BN -> ReLU -> 1x1 conv on an [tm, cin] tile.
    h = jnp.maximum(x_ref[...] * s_ref[...] + b_ref[...], 0.0)
    o_ref[...] = jnp.dot(h.astype(MATMUL_DTYPE), w_ref[...],
                         preferred_element_type=jnp.float32)


def _branch_kernel(kp_ref, ku_ref, x_ref, s_ref, b_ref, w_ref,
                   base_ref, sps_ref, spb_ref, wsp_ref, o_ref, pad_ref):
    # One (image, branch) step of the fully-fused pooled branch:
    #   pooled = Kpool @ x                  (avg-pool as a matmul)
    #   h      = relu(pooled*s + b)         (branch BN + ReLU)
    #   y      = h @ W                      (1x1 conv)
    #   up     = Kup @ y                    (bilinear upsample as a matmul)
    #   act    = relu((up + x_)*sp_s+sp_b)  (residual + scale_process BN/ReLU)
    #   out    = conv3x3_group(act)         (this branch == its own group)
    Hp, Wp, cb = pad_ref.shape
    H, W = Hp - 2, Wp - 2

    pooled = jnp.dot(kp_ref[0], x_ref[0].astype(MATMUL_DTYPE),
                     preferred_element_type=jnp.float32)
    h = jnp.maximum(pooled * s_ref[0] + b_ref[0], 0.0)
    y = jnp.dot(h.astype(MATMUL_DTYPE), w_ref[0],
                preferred_element_type=jnp.float32)
    up = jnp.dot(ku_ref[0], y.astype(MATMUL_DTYPE),
                 preferred_element_type=jnp.float32)
    act = jnp.maximum((up + base_ref[0]) * sps_ref[0] + spb_ref[0], 0.0)

    # zero halo built in VMEM (no stack+pad HBM round trip)
    pad_ref[...] = jnp.zeros_like(pad_ref)
    pad_ref[1:H + 1, 1:W + 1, :] = act.reshape(H, W, cb)

    # tap-concatenated grouped 3x3 conv: one (HW, 9*cb) @ (9*cb, cb) matmul
    taps = []
    for t in range(9):
        kh, kw = divmod(t, 3)
        taps.append(pad_ref[kh:kh + H, kw:kw + W, :].reshape(H * W, cb))
    tapmat = jnp.concatenate(taps, axis=-1).astype(MATMUL_DTYPE)
    o_ref[0, 0] = jnp.dot(tapmat, wsp_ref[0],
                          preferred_element_type=jnp.float32)


def _compress_shortcut_kernel(xbar_ref, so_ref, x_ref, cs_ref, cb_ref,
                              wc_ref, ss_ref, sb_ref, wsh_ref, o_ref):
    # out = compression(cat([x_, scale_out])) + shortcut(x):
    # concat the 5 channel groups in VMEM, single K=5*cb matmul + shortcut.
    G = so_ref.shape[0]
    pieces = [xbar_ref[...]] + [so_ref[g] for g in range(G)]
    h = jnp.concatenate(pieces, axis=-1)                    # (tm, 5*cb)
    h = jnp.maximum(h * cs_ref[...] + cb_ref[...], 0.0)
    out = jnp.dot(h.astype(MATMUL_DTYPE), wc_ref[...],
                  preferred_element_type=jnp.float32)
    hs = jnp.maximum(x_ref[...] * ss_ref[...] + sb_ref[...], 0.0)
    out = out + jnp.dot(hs.astype(MATMUL_DTYPE), wsh_ref[...],
                        preferred_element_type=jnp.float32)
    o_ref[...] = out


# ------------------------------ kernel wrappers ----------------------------

def bn_relu_conv1x1(x2d, scale, bias, w_bf16):
    M, cin = x2d.shape
    cout = w_bf16.shape[1]
    tm = _tile_m(M)
    return pl.pallas_call(
        _bn_relu_conv1x1_kernel,
        out_shape=jax.ShapeDtypeStruct((M, cout), jnp.float32),
        grid=(pl.cdiv(M, tm),),
        in_specs=[
            pl.BlockSpec((tm, cin), lambda i: (i, 0)),
            pl.BlockSpec((1, cin), lambda i: (0, 0)),
            pl.BlockSpec((1, cin), lambda i: (0, 0)),
            pl.BlockSpec((cin, cout), lambda i: (0, 0)),
        ],
        out_specs=pl.BlockSpec((tm, cout), lambda i: (i, 0)),
        compiler_params=_mosaic(1),
    )(x2d, scale, bias, w_bf16)


def fused_branches(kp_all, ku_all, x3, br_s, br_b, br_w,
                   base3, sp_s4, sp_b4, sp_w4, H, W):
    # grid = (image, branch); branch is the inner axis so x/base blocks stay
    # resident (same block index) while the per-branch Kron/weight blocks
    # stream through double-buffering.
    B, Pq, HW = kp_all.shape
    N, _, cin = x3.shape
    cb = br_w.shape[2]
    return pl.pallas_call(
        _branch_kernel,
        out_shape=jax.ShapeDtypeStruct((B, N, HW, cb), jnp.float32),
        grid=(N, B),
        in_specs=[
            pl.BlockSpec((1, Pq, HW), lambda n, b: (b, 0, 0)),
            pl.BlockSpec((1, HW, Pq), lambda n, b: (b, 0, 0)),
            pl.BlockSpec((1, HW, cin), lambda n, b: (n, 0, 0)),
            pl.BlockSpec((1, 1, cin), lambda n, b: (b, 0, 0)),
            pl.BlockSpec((1, 1, cin), lambda n, b: (b, 0, 0)),
            pl.BlockSpec((1, cin, cb), lambda n, b: (b, 0, 0)),
            pl.BlockSpec((1, HW, cb), lambda n, b: (n, 0, 0)),
            pl.BlockSpec((1, 1, cb), lambda n, b: (b, 0, 0)),
            pl.BlockSpec((1, 1, cb), lambda n, b: (b, 0, 0)),
            pl.BlockSpec((1, 9 * cb, cb), lambda n, b: (b, 0, 0)),
        ],
        out_specs=pl.BlockSpec((1, 1, HW, cb), lambda n, b: (b, n, 0, 0)),
        scratch_shapes=[pltpu.VMEM((H + 2, W + 2, cb), jnp.float32)],
        compiler_params=_mosaic(2),
    )(kp_all, ku_all, x3, br_s, br_b, br_w, base3, sp_s4, sp_b4, sp_w4)


def compress_shortcut(xbar2d, so_g, x2d, cm_s, cm_b, wc_bf16,
                      sh_s, sh_b, wsh_bf16):
    M, cb = xbar2d.shape
    G = so_g.shape[0]
    cin = x2d.shape[1]
    c5, cout = wc_bf16.shape
    tm = _tile_m(M)
    return pl.pallas_call(
        _compress_shortcut_kernel,
        out_shape=jax.ShapeDtypeStruct((M, cout), jnp.float32),
        grid=(pl.cdiv(M, tm),),
        in_specs=[
            pl.BlockSpec((tm, cb), lambda i: (i, 0)),
            pl.BlockSpec((G, tm, cb), lambda i: (0, i, 0)),
            pl.BlockSpec((tm, cin), lambda i: (i, 0)),
            pl.BlockSpec((1, c5), lambda i: (0, 0)),
            pl.BlockSpec((1, c5), lambda i: (0, 0)),
            pl.BlockSpec((c5, cout), lambda i: (0, 0)),
            pl.BlockSpec((1, cin), lambda i: (0, 0)),
            pl.BlockSpec((1, cin), lambda i: (0, 0)),
            pl.BlockSpec((cin, cout), lambda i: (0, 0)),
        ],
        out_specs=pl.BlockSpec((tm, cout), lambda i: (i, 0)),
        compiler_params=_mosaic(1),
    )(xbar2d, so_g, x2d, cm_s, cm_b, wc_bf16, sh_s, sh_b, wsh_bf16)


# --------------------------- static matrix builders ------------------------

def pool_matrix(out_size, in_size, k, s, pad):
    # AvgPool2d (count_include_pad=True) along one axis.
    m = np.zeros((out_size, in_size + 2 * pad), np.float32)
    for i in range(out_size):
        m[i, i * s:i * s + k] = 1.0 / k
    return m[:, pad:pad + in_size]


def interp_matrix(out_size, in_size):
    # F.interpolate(mode='bilinear', align_corners=False) row weights.
    m = np.zeros((out_size, in_size), np.float32)
    scale = in_size / out_size
    for i in range(out_size):
        src = max(scale * (i + 0.5) - 0.5, 0.0)
        i0 = min(int(np.floor(src)), in_size - 1)
        i1 = min(i0 + 1, in_size - 1)
        frac = src - i0
        m[i, i0] += 1.0 - frac
        m[i, i1] += frac
    return m


def branch_matrices_np(H, W, k, s, pad):
    # Kpool: (pq, H*W) separable avg-pool as Kronecker;  Kup: (H*W, pq).
    if k is None:  # adaptive avg pool to (1, 1); bilinear up of 1x1 == broadcast
        ph = np.full((1, H), 1.0 / H, np.float32)
        pw = np.full((1, W), 1.0 / W, np.float32)
        ah = np.ones((H, 1), np.float32)
        aw = np.ones((W, 1), np.float32)
    else:
        ho = (H + 2 * pad - k) // s + 1
        wo = (W + 2 * pad - k) // s + 1
        ph = pool_matrix(ho, H, k, s, pad)
        pw = pool_matrix(wo, W, k, s, pad)
        ah = interp_matrix(H, ho)
        aw = interp_matrix(W, wo)
    return np.kron(ph, pw), np.kron(ah, aw)


def build_branch_krons(H, W, branch_defs):
    # Stack all branches' Kron matrices, zero-padding the pooled dim up to a
    # common multiple of 8.  Padded Kpool rows produce zero pooled pixels;
    # matching zero Kup columns cancel the relu(bias) garbage exactly.
    kps, kus = [], []
    for _, k, s, p in branch_defs:
        kp, ku = branch_matrices_np(H, W, k, s, p)
        kps.append(kp)
        kus.append(ku)
    pqm = max(kp.shape[0] for kp in kps)
    pqm = ((pqm + 7) // 8) * 8
    B = len(kps)
    kp_all = np.zeros((B, pqm, H * W), np.float32)
    ku_all = np.zeros((B, H * W, pqm), np.float32)
    for i, (kp, ku) in enumerate(zip(kps, kus)):
        kp_all[i, :kp.shape[0], :] = kp
        ku_all[i, :, :ku.shape[1]] = ku
    # pre-cast constants to bf16 once (halves DMA/VMEM for the Kron matrices)
    return (jnp.asarray(kp_all, dtype=MATMUL_DTYPE),
            jnp.asarray(ku_all, dtype=MATMUL_DTYPE))


# ------------------------------- parameters --------------------------------

def _fold_bn(gamma, beta, mean, var, eps=1e-5):
    scale = gamma / jnp.sqrt(var + eps)
    bias = beta - mean * scale
    return scale[None, :], bias[None, :]


def init_pappm_params(key, inplanes, branch_planes, outplanes):
    def bn_params(k, c):
        k1, k2, k3, k4 = jax.random.split(k, 4)
        gamma = jax.random.uniform(k1, (c,), jnp.float32, 0.5, 1.5)
        beta = 0.1 * jax.random.normal(k2, (c,), jnp.float32)
        mean = 0.1 * jax.random.normal(k3, (c,), jnp.float32)
        var = jax.random.uniform(k4, (c,), jnp.float32, 0.5, 1.5)
        return _fold_bn(gamma, beta, mean, var)

    keys = jax.random.split(key, 16)
    p = {}
    specs = [
        ("scale0", inplanes, branch_planes),
        ("scale1", inplanes, branch_planes),
        ("scale2", inplanes, branch_planes),
        ("scale3", inplanes, branch_planes),
        ("scale4", inplanes, branch_planes),
        ("compression", 5 * branch_planes, outplanes),
        ("shortcut", inplanes, outplanes),
    ]
    i = 0
    for name, cin, cout in specs:
        s, b = bn_params(keys[i], cin); i += 1
        w = 0.1 * jax.random.normal(keys[i], (cin, cout), jnp.float32); i += 1
        p[name] = (s, b, w)
    # scale_process: BN(4*Cb) + grouped 3x3 conv (groups=4, pad=1, no bias);
    # weights stored tap-major: (G, 9, cb_in, cb_out).
    s, b = bn_params(keys[i], GROUPS * branch_planes); i += 1
    wg = 0.1 * jax.random.normal(
        keys[i], (GROUPS, 9, branch_planes, branch_planes), jnp.float32); i += 1
    p["scale_process"] = (s, b, wg)
    return p


# --------------------------------- forward ---------------------------------

def pappm_forward(x, params, branch_planes, outplanes):
    N, cin, H, W = x.shape
    cb = branch_planes
    HW = H * W
    M = N * HW

    # channels-last once at the module boundary
    x3 = jnp.transpose(x, (0, 2, 3, 1)).reshape(N, HW, cin)
    x2d = x3.reshape(M, cin)

    # scale0: BN -> ReLU -> 1x1 conv    (x_ in the PyTorch code)
    s0, b0, w0 = params["scale0"]
    xbar2d = bn_relu_conv1x1(x2d, s0, b0, w0.astype(MATMUL_DTYPE))   # [M, cb]
    base3 = xbar2d.reshape(N, HW, cb)

    # scale_process params split per group (group order == branch order)
    sp_s, sp_b, sp_w = params["scale_process"]
    sp_s4 = sp_s.reshape(GROUPS, 1, cb)
    sp_b4 = sp_b.reshape(GROUPS, 1, cb)
    sp_w4 = sp_w.reshape(GROUPS, 9 * cb, cb).astype(MATMUL_DTYPE)

    branch_defs = [("scale1", 5, 2, 2), ("scale2", 9, 4, 4),
                   ("scale3", 17, 8, 8), ("scale4", None, None, None)]
    kp_all, ku_all = build_branch_krons(H, W, branch_defs)            # bf16
    br_s = jnp.stack([params[n][0] for n, _, _, _ in branch_defs])    # (B,1,cin)
    br_b = jnp.stack([params[n][1] for n, _, _, _ in branch_defs])
    br_w = jnp.stack(
        [params[n][2] for n, _, _, _ in branch_defs]).astype(MATMUL_DTYPE)

    # all 4 pooled branches + per-group scale_process in ONE pallas_call
    scale_out = fused_branches(kp_all, ku_all, x3, br_s, br_b, br_w,
                               base3, sp_s4, sp_b4, sp_w4, H, W)      # (G,N,HW,cb)
    scale_out_g = scale_out.reshape(GROUPS, M, cb)                    # free reshape

    # compression + shortcut fused (single K=5*cb matmul, no HBM concat)
    cm_s, cm_b, cm_w = params["compression"]
    sh_s, sh_b, sh_w = params["shortcut"]
    out2d = compress_shortcut(xbar2d, scale_out_g, x2d,
                              cm_s, cm_b, cm_w.astype(MATMUL_DTYPE),
                              sh_s, sh_b, sh_w.astype(MATMUL_DTYPE))  # [M, out]

    return jnp.transpose(out2d.reshape(N, H, W, outplanes), (0, 3, 1, 2))


# ----------------------------------- main -----------------------------------

if __name__ == "__main__":
    inplanes, branch_planes, outplanes = 8, 4, 8
    N, H, W = 2, 16, 16

    key = jax.random.PRNGKey(0)
    kx, kp = jax.random.split(key)
    x = jax.random.normal(kx, (N, inplanes, H, W), jnp.float32)
    params = init_pappm_params(kp, inplanes, branch_planes, outplanes)

    fwd = jax.jit(pappm_forward, static_argnums=(2, 3))
    out = jax.block_until_ready(fwd(x, params, branch_planes, outplanes))

    assert out.shape == (N, outplanes, H, W), out.shape
    assert bool(jnp.all(jnp.isfinite(out)))
    print("KERNEL_OK")
</pallas_src>

<mosaic_0001>
module attributes {stable_mosaic.version = 11 : i64} {
  func.func @_bn_relu_conv1x1_kernel(%arg0: i32, %arg1: memref<512x8xf32, #tpu.memory_space<vmem>>, %arg2: memref<1x8xf32, #tpu.memory_space<vmem>>, %arg3: memref<1x8xf32, #tpu.memory_space<vmem>>, %arg4: memref<8x4xbf16, #tpu.memory_space<vmem>>, %arg5: memref<512x4xf32, #tpu.memory_space<vmem>>) attributes {dimension_semantics = [#tpu.dimension_semantics<parallel>], iteration_bounds = array<i64: 1>, scalar_prefetch = 0 : i64, scratch_operands = 0 : i64, tpu.core_type = #tpu.core_type<tc>, window_params = [{transform_indices = @transform_0, window_bounds = array<i64: 512, 8>}, {pipeline_mode = #tpu.pipeline_mode<synchronous>, transform_indices = @transform_1, window_bounds = array<i64: 1, 8>}, {pipeline_mode = #tpu.pipeline_mode<synchronous>, transform_indices = @transform_2, window_bounds = array<i64: 1, 8>}, {pipeline_mode = #tpu.pipeline_mode<synchronous>, transform_indices = @transform_3, window_bounds = array<i64: 8, 4>}, {transform_indices = @transform_4, window_bounds = array<i64: 512, 4>}]} {
    %c0 = arith.constant 0 : index
    %c0_0 = arith.constant 0 : index
    %0 = vector.load %arg1[%c0, %c0_0] : memref<512x8xf32, #tpu.memory_space<vmem>>, vector<512x8xf32>
    %c0_1 = arith.constant 0 : index
    %c0_2 = arith.constant 0 : index
    %1 = vector.load %arg2[%c0_1, %c0_2] : memref<1x8xf32, #tpu.memory_space<vmem>>, vector<1x8xf32>
    %2 = vector.broadcast %1 : vector<1x8xf32> to vector<512x8xf32>
    %3 = arith.mulf %0, %2 : vector<512x8xf32>
    %c0_3 = arith.constant 0 : index
    %c0_4 = arith.constant 0 : index
    %4 = vector.load %arg3[%c0_3, %c0_4] : memref<1x8xf32, #tpu.memory_space<vmem>>, vector<1x8xf32>
    %5 = vector.broadcast %4 : vector<1x8xf32> to vector<512x8xf32>
    %6 = arith.addf %3, %5 : vector<512x8xf32>
    %cst = arith.constant 0.000000e+00 : f32
    %7 = vector.broadcast %cst : f32 to vector<512x8xf32>
    %8 = arith.maximumf %6, %7 : vector<512x8xf32>
    %9 = arith.truncf %8 : vector<512x8xf32> to vector<512x8xbf16>
    %c0_5 = arith.constant 0 : index
    %c0_6 = arith.constant 0 : index
    %10 = vector.load %arg4[%c0_5, %c0_6] : memref<8x4xbf16, #tpu.memory_space<vmem>>, vector<8x4xbf16>
    %cst_7 = arith.constant dense<0.000000e+00> : vector<512x4xf32>
    %11 = tpu.matmul %9, %10, %cst_7 {dimension_numbers = #tpu.dot_dimension_numbers<[1], [0], [0], [1], [0, 0, 1, 1], [], []>} : vector<512x8xbf16>, vector<8x4xbf16>, vector<512x4xf32> -> vector<512x4xf32>
    %c0_8 = arith.constant 0 : index
    %c0_9 = arith.constant 0 : index
    %12 = vector.load %arg5[%c0_8, %c0_9] : memref<512x4xf32, #tpu.memory_space<vmem>>, vector<512x4xf32>
    tpu.vector_store %arg5[%c0_8, %c0_9], %11 {strides = array<i32>} : memref<512x4xf32, #tpu.memory_space<vmem>>, vector<512x4xf32>,
    return
  }
  func.func @transform_0(%arg0: i32) -> (i32, i32) {
    %c0_i32 = arith.constant 0 : i32
    %c0_i32_0 = arith.constant 0 : i32
    return %arg0, %c0_i32 : i32, i32
  }
  func.func @transform_1(%arg0: i32) -> (i32, i32) {
    %c0_i32 = arith.constant 0 : i32
    %c0_i32_0 = arith.constant 0 : i32
    %c0_i32_1 = arith.constant 0 : i32
    return %c0_i32, %c0_i32_0 : i32, i32
  }
  func.func @transform_2(%arg0: i32) -> (i32, i32) {
    %c0_i32 = arith.constant 0 : i32
    %c0_i32_0 = arith.constant 0 : i32
    %c0_i32_1 = arith.constant 0 : i32
    return %c0_i32, %c0_i32_0 : i32, i32
  }
  func.func @transform_3(%arg0: i32) -> (i32, i32) {
    %c0_i32 = arith.constant 0 : i32
    %c0_i32_0 = arith.constant 0 : i32
    %c0_i32_1 = arith.constant 0 : i32
    return %c0_i32, %c0_i32_0 : i32, i32
  }
  func.func @transform_4(%arg0: i32) -> (i32, i32) {
    %c0_i32 = arith.constant 0 : i32
    %c0_i32_0 = arith.constant 0 : i32
    return %arg0, %c0_i32 : i32, i32
  }
}

module attributes {stable_mosaic.version = 11 : i64} {
  func.func @_branch_kernel(%arg0: i32, %arg1: i32, %arg2: memref<1x64x256xbf16, #tpu.memory_space<vmem>>, %arg3: memref<1x256x64xbf16, #tpu.memory_space<vmem>>, %arg4: memref<1x256x8xf32, #tpu.memory_space<vmem>>, %arg5: memref<1x1x8xf32, #tpu.memory_space<vmem>>, %arg6: memref<1x1x8xf32, #tpu.memory_space<vmem>>, %arg7: memref<1x8x4xbf16, #tpu.memory_space<vmem>>, %arg8: memref<1x256x4xf32, #tpu.memory_space<vmem>>, %arg9: memref<1x1x4xf32, #tpu.memory_space<vmem>>, %arg10: memref<1x1x4xf32, #tpu.memory_space<vmem>>, %arg11: memref<1x36x4xbf16, #tpu.memory_space<vmem>>, %arg12: memref<1x1x256x4xf32, #tpu.memory_space<vmem>>, %arg13: memref<18x18x4xf32, #tpu.memory_space<vmem>>) attributes {dimension_semantics = [#tpu.dimension_semantics<parallel>, #tpu.dimension_semantics<parallel>], iteration_bounds = array<i64: 2, 4>, scalar_prefetch = 0 : i64, scratch_operands = 1 : i64, tpu.core_type = #tpu.core_type<tc>, window_params = [{transform_indices = @transform_0, window_bounds = array<i64: 1, 64, 256>}, {transform_indices = @transform_1, window_bounds = array<i64: 1, 256, 64>}, {transform_indices = @transform_2, window_bounds = array<i64: 1, 256, 8>}, {transform_indices = @transform_3, window_bounds = array<i64: 1, 1, 8>}, {transform_indices = @transform_4, window_bounds = array<i64: 1, 1, 8>}, {transform_indices = @transform_5, window_bounds = array<i64: 1, 8, 4>}, {transform_indices = @transform_6, window_bounds = array<i64: 1, 256, 4>}, {transform_indices = @transform_7, window_bounds = array<i64: 1, 1, 4>}, {transform_indices = @transform_8, window_bounds = array<i64: 1, 1, 4>}, {transform_indices = @transform_9, window_bounds = array<i64: 1, 36, 4>}, {transform_indices = @transform_10, window_bounds = array<i64: 1, 1, 256, 4>}]} {
    %c0 = arith.constant 0 : index
    %c0_0 = arith.constant 0 : index
    %c0_1 = arith.constant 0 : index
    %0 = vector.load %arg2[%c0, %c0_0, %c0_1] : memref<1x64x256xbf16, #tpu.memory_space<vmem>>, vector<1x64x256xbf16>
    %1 = vector.shape_cast %0 : vector<1x64x256xbf16> to vector<64x256xbf16>
    %c0_2 = arith.constant 0 : index
    %c0_3 = arith.constant 0 : index
    %c0_4 = arith.constant 0 : index
    %2 = vector.load %arg4[%c0_2, %c0_3, %c0_4] : memref<1x256x8xf32, #tpu.memory_space<vmem>>, vector<1x256x8xf32>
    %3 = vector.shape_cast %2 : vector<1x256x8xf32> to vector<256x8xf32>
    %4 = arith.truncf %3 : vector<256x8xf32> to vector<256x8xbf16>
    %cst = arith.constant dense<0.000000e+00> : vector<64x8xf32>
    %5 = tpu.matmul %1, %4, %cst {dimension_numbers = #tpu.dot_dimension_numbers<[1], [0], [0], [1], [0, 0, 1, 1], [], []>} : vector<64x256xbf16>, vector<256x8xbf16>, vector<64x8xf32> -> vector<64x8xf32>
    %c0_5 = arith.constant 0 : index
    %c0_6 = arith.constant 0 : index
    %c0_7 = arith.constant 0 : index
    %6 = vector.load %arg5[%c0_5, %c0_6, %c0_7] : memref<1x1x8xf32, #tpu.memory_space<vmem>>, vector<1x1x8xf32>
    %7 = vector.shape_cast %6 : vector<1x1x8xf32> to vector<1x8xf32>
    %8 = vector.broadcast %7 : vector<1x8xf32> to vector<64x8xf32>
    %9 = arith.mulf %5, %8 : vector<64x8xf32>
    %c0_8 = arith.constant 0 : index
    %c0_9 = arith.constant 0 : index
    %c0_10 = arith.constant 0 : index
    %10 = vector.load %arg6[%c0_8, %c0_9, %c0_10] : memref<1x1x8xf32, #tpu.memory_space<vmem>>, vector<1x1x8xf32>
    %11 = vector.shape_cast %10 : vector<1x1x8xf32> to vector<1x8xf32>
    %12 = vector.broadcast %11 : vector<1x8xf32> to vector<64x8xf32>
    %13 = arith.addf %9, %12 : vector<64x8xf32>
    %cst_11 = arith.constant 0.000000e+00 : f32
    %14 = vector.broadcast %cst_11 : f32 to vector<64x8xf32>
    %15 = arith.maximumf %13, %14 : vector<64x8xf32>
    %16 = arith.truncf %15 : vector<64x8xf32> to vector<64x8xbf16>
    %c0_12 = arith.constant 0 : index
    %c0_13 = arith.constant 0 : index
    %c0_14 = arith.constant 0 : index
    %17 = vector.load %arg7[%c0_12, %c0_13, %c0_14] : memref<1x8x4xbf16, #tpu.memory_space<vmem>>, vector<1x8x4xbf16>
    %18 = vector.shape_cast %17 : vector<1x8x4xbf16> to vector<8x4xbf16>
    %cst_15 = arith.constant dense<0.000000e+00> : vector<64x4xf32>
    %19 = tpu.matmul %16, %18, %cst_15 {dimension_numbers = #tpu.dot_dimension_numbers<[1], [0], [0], [1], [0, 0, 1, 1], [], []>} : vector<64x8xbf16>, vector<8x4xbf16>, vector<64x4xf32> -> vector<64x4xf32>
    %c0_16 = arith.constant 0 : index
    %c0_17 = arith.constant 0 : index
    %c0_18 = arith.constant 0 : index
    %20 = vector.load %arg3[%c0_16, %c0_17, %c0_18] : memref<1x256x64xbf16, #tpu.memory_space<vmem>>, vector<1x256x64xbf16>
    %21 = vector.shape_cast %20 : vector<1x256x64xbf16> to vector<256x64xbf16>
    %22 = arith.truncf %19 : vector<64x4xf32> to vector<64x4xbf16>
    %cst_19 = arith.constant dense<0.000000e+00> : vector<256x4xf32>
    %23 = tpu.matmul %21, %22, %cst_19 {dimension_numbers = #tpu.dot_dimension_numbers<[1], [0], [0], [1], [0, 0, 1, 1], [], []>} : vector<256x64xbf16>, vector<64x4xbf16>, vector<256x4xf32> -> vector<256x4xf32>
    %c0_20 = arith.constant 0 : index
    %c0_21 = arith.constant 0 : index
    %c0_22 = arith.constant 0 : index
    %24 = vector.load %arg8[%c0_20, %c0_21, %c0_22] : memref<1x256x4xf32, #tpu.memory_space<vmem>>, vector<1x256x4xf32>
    %25 = vector.shape_cast %24 : vector<1x256x4xf32> to vector<256x4xf32>
    %26 = arith.addf %23, %25 : vector<256x4xf32>
    %c0_23 = arith.constant 0 : index
    %c0_24 = arith.constant 0 : index
    %c0_25 = arith.constant 0 : index
    %27 = vector.load %arg9[%c0_23, %c0_24, %c0_25] : memref<1x1x4xf32, #tpu.memory_space<vmem>>, vector<1x1x4xf32>
    %28 = vector.shape_cast %27 : vector<1x1x4xf32> to vector<1x4xf32>
    %29 = vector.broadcast %28 : vector<1x4xf32> to vector<256x4xf32>
    %30 = arith.mulf %26, %29 : vector<256x4xf32>
    %c0_26 = arith.constant 0 : index
    %c0_27 = arith.constant 0 : index
    %c0_28 = arith.constant 0 : index
    %31 = vector.load %arg10[%c0_26, %c0_27, %c0_28] : memref<1x1x4xf32, #tpu.memory_space<vmem>>, vector<1x1x4xf32>
    %32 = vector.shape_cast %31 : vector<1x1x4xf32> to vector<1x4xf32>
    %33 = vector.broadcast %32 : vector<1x4xf32> to vector<256x4xf32>
    %34 = arith.addf %30, %33 : vector<256x4xf32>
    %cst_29 = arith.constant 0.000000e+00 : f32
    %35 = vector.broadcast %cst_29 : f32 to vector<256x4xf32>
    %36 = arith.maximumf %34, %35 : vector<256x4xf32>
    %cst_30 = arith.constant 0.000000e+00 : f32
    %37 = vector.broadcast %cst_30 : f32 to vector<18x18x4xf32>
    %c0_31 = arith.constant 0 : index
    %c0_32 = arith.constant 0 : index
    %c0_33 = arith.constant 0 : index
    %38 = vector.load %arg13[%c0_31, %c0_32, %c0_33] : memref<18x18x4xf32, #tpu.memory_space<vmem>>, vector<18x18x4xf32>
    tpu.vector_store %arg13[%c0_31, %c0_32, %c0_33], %37 {strides = array<i32>} : memref<18x18x4xf32, #tpu.memory_space<vmem>>, vector<18x18x4xf32>,
    %39 = vector.shape_cast %36 : vector<256x4xf32> to vector<16x16x4xf32>
    %c1 = arith.constant 1 : index
    %c1_34 = arith.constant 1 : index
    %c0_35 = arith.constant 0 : index
    %40 = vector.load %arg13[%c1, %c1_34, %c0_35] : memref<18x18x4xf32, #tpu.memory_space<vmem>>, vector<16x16x4xf32>
    tpu.vector_store %arg13[%c1, %c1_34, %c0_35], %39 {strides = array<i32>} : memref<18x18x4xf32, #tpu.memory_space<vmem>>, vector<16x16x4xf32>,
    %c0_36 = arith.constant 0 : index
    %c0_37 = arith.constant 0 : index
    %c0_38 = arith.constant 0 : index
    %41 = vector.load %arg13[%c0_36, %c0_37, %c0_38] : memref<18x18x4xf32, #tpu.memory_space<vmem>>, vector<16x16x4xf32>
    %42 = vector.shape_cast %41 : vector<16x16x4xf32> to vector<256x4xf32>
    %c0_39 = arith.constant 0 : index
    %c1_40 = arith.constant 1 : index
    %c0_41 = arith.constant 0 : index
    %43 = vector.load %arg13[%c0_39, %c1_40, %c0_41] : memref<18x18x4xf32, #tpu.memory_space<vmem>>, vector<16x16x4xf32>
    %44 = vector.shape_cast %43 : vector<16x16x4xf32> to vector<256x4xf32>
    %c0_42 = arith.constant 0 : index
    %c2 = arith.constant 2 : index
    %c0_43 = arith.constant 0 : index
    %45 = vector.load %arg13[%c0_42, %c2, %c0_43] : memref<18x18x4xf32, #tpu.memory_space<vmem>>, vector<16x16x4xf32>
    %46 = vector.shape_cast %45 : vector<16x16x4xf32> to vector<256x4xf32>
    %c1_44 = arith.constant 1 : index
    %c0_45 = arith.constant 0 : index
    %c0_46 = arith.constant 0 : index
    %47 = vector.load %arg13[%c1_44, %c0_45, %c0_46] : memref<18x18x4xf32, #tpu.memory_space<vmem>>, vector<16x16x4xf32>
    %48 = vector.shape_cast %47 : vector<16x16x4xf32> to vector<256x4xf32>
    %c1_47 = arith.constant 1 : index
    %c1_48 = arith.constant 1 : index
    %c0_49 = arith.constant 0 : index
    %49 = vector.load %arg13[%c1_47, %c1_48, %c0_49] : memref<18x18x4xf32, #tpu.memory_space<vmem>>, vector<16x16x4xf32>
    %50 = vector.shape_cast %49 : vector<16x16x4xf32> to vector<256x4xf32>
    %c1_50 = arith.constant 1 : index
    %c2_51 = arith.constant 2 : index
    %c0_52 = arith.constant 0 : index
    %51 = vector.load %arg13[%c1_50, %c2_51, %c0_52] : memref<18x18x4xf32, #tpu.memory_space<vmem>>, vector<16x16x4xf32>
    %52 = vector.shape_cast %51 : vector<16x16x4xf32> to vector<256x4xf32>
    %c2_53 = arith.constant 2 : index
    %c0_54 = arith.constant 0 : index
    %c0_55 = arith.constant 0 : index
    %53 = vector.load %arg13[%c2_53, %c0_54, %c0_55] : memref<18x18x4xf32, #tpu.memory_space<vmem>>, vector<16x16x4xf32>
    %54 = vector.shape_cast %53 : vector<16x16x4xf32> to vector<256x4xf32>
    %c2_56 = arith.constant 2 : index
    %c1_57 = arith.constant 1 : index
    %c0_58 = arith.constant 0 : index
    %55 = vector.load %arg13[%c2_56, %c1_57, %c0_58] : memref<18x18x4xf32, #tpu.memory_space<vmem>>, vector<16x16x4xf32>
    %56 = vector.shape_cast %55 : vector<16x16x4xf32> to vector<256x4xf32>
    %c2_59 = arith.constant 2 : index
    %c2_60 = arith.constant 2 : index
    %c0_61 = arith.constant 0 : index
    %57 = vector.load %arg13[%c2_59, %c2_60, %c0_61] : memref<18x18x4xf32, #tpu.memory_space<vmem>>, vector<16x16x4xf32>
    %58 = vector.shape_cast %57 : vector<16x16x4xf32> to vector<256x4xf32>
    %59 = tpu.concatenate %42, %44, %46, %48, %50, %52, %54, %56, %58 in 1 : vector<256x4xf32>, vector<256x4xf32>, vector<256x4xf32>, vector<256x4xf32>, vector<256x4xf32>, vector<256x4xf32>, vector<256x4xf32>, vector<256x4xf32>, vector<256x4xf32> -> vector<256x36xf32>
    %60 = arith.truncf %59 : vector<256x36xf32> to vector<256x36xbf16>
    %c0_62 = arith.constant 0 : index
    %c0_63 = arith.constant 0 : index
    %c0_64 = arith.constant 0 : index
    %61 = vector.load %arg11[%c0_62, %c0_63, %c0_64] : memref<1x36x4xbf16, #tpu.memory_space<vmem>>, vector<1x36x4xbf16>
    %62 = vector.shape_cast %61 : vector<1x36x4xbf16> to vector<36x4xbf16>
    %cst_65 = arith.constant dense<0.000000e+00> : vector<256x4xf32>
    %63 = tpu.matmul %60, %62, %cst_65 {dimension_numbers = #tpu.dot_dimension_numbers<[1], [0], [0], [1], [0, 0, 1, 1], [], []>} : vector<256x36xbf16>, vector<36x4xbf16>, vector<256x4xf32> -> vector<256x4xf32>
    %c0_66 = arith.constant 0 : index
    %c0_67 = arith.constant 0 : index
    %c0_68 = arith.constant 0 : index
    %c0_69 = arith.constant 0 : index
    %64 = vector.load %arg12[%c0_66, %c0_67, %c0_68, %c0_69] : memref<1x1x256x4xf32, #tpu.memory_space<vmem>>, vector<1x1x256x4xf32>
    %65 = vector.shape_cast %64 : vector<1x1x256x4xf32> to vector<256x4xf32>
    %66 = vector.shape_cast %63 : vector<256x4xf32> to vector<1x1x256x4xf32>
    tpu.vector_store %arg12[%c0_66, %c0_67, %c0_68, %c0_69], %66 {strides = array<i32>} : memref<1x1x256x4xf32, #tpu.memory_space<vmem>>, vector<1x1x256x4xf32>,
    return
  }
  func.func @transform_0(%arg0: i32, %arg1: i32) -> (i32, i32, i32) {
    %c0_i32 = arith.constant 0 : i32
    %c0_i32_0 = arith.constant 0 : i32
    %c0_i32_1 = arith.constant 0 : i32
    return %arg1, %c0_i32, %c0_i32_0 : i32, i32, i32
  }
  func.func @transform_1(%arg0: i32, %arg1: i32) -> (i32, i32, i32) {
    %c0_i32 = arith.constant 0 : i32
    %c0_i32_0 = arith.constant 0 : i32
    %c0_i32_1 = arith.constant 0 : i32
    return %arg1, %c0_i32, %c0_i32_0 : i32, i32, i32
  }
  func.func @transform_2(%arg0: i32, %arg1: i32) -> (i32, i32, i32) {
    %c0_i32 = arith.constant 0 : i32
    %c0_i32_0 = arith.constant 0 : i32
    %c0_i32_1 = arith.constant 0 : i32
    return %arg0, %c0_i32, %c0_i32_0 : i32, i32, i32
  }
  func.func @transform_3(%arg0: i32, %arg1: i32) -> (i32, i32, i32) {
    %c0_i32 = arith.constant 0 : i32
    %c0_i32_0 = arith.constant 0 : i32
    %c0_i32_1 = arith.constant 0 : i32
    return %arg1, %c0_i32, %c0_i32_0 : i32, i32, i32
  }
  func.func @transform_4(%arg0: i32, %arg1: i32) -> (i32, i32, i32) {
    %c0_i32 = arith.constant 0 : i32
    %c0_i32_0 = arith.constant 0 : i32
    %c0_i32_1 = arith.constant 0 : i32
    return %arg1, %c0_i32, %c0_i32_0 : i32, i32, i32
  }
  func.func @transform_5(%arg0: i32, %arg1: i32) -> (i32, i32, i32) {
    %c0_i32 = arith.constant 0 : i32
    %c0_i32_0 = arith.constant 0 : i32
    %c0_i32_1 = arith.constant 0 : i32
    return %arg1, %c0_i32, %c0_i32_0 : i32, i32, i32
  }
  func.func @transform_6(%arg0: i32, %arg1: i32) -> (i32, i32, i32) {
    %c0_i32 = arith.constant 0 : i32
    %c0_i32_0 = arith.constant 0 : i32
    %c0_i32_1 = arith.constant 0 : i32
    return %arg0, %c0_i32, %c0_i32_0 : i32, i32, i32
  }
  func.func @transform_7(%arg0: i32, %arg1: i32) -> (i32, i32, i32) {
    %c0_i32 = arith.constant 0 : i32
    %c0_i32_0 = arith.constant 0 : i32
    %c0_i32_1 = arith.constant 0 : i32
    return %arg1, %c0_i32, %c0_i32_0 : i32, i32, i32
  }
  func.func @transform_8(%arg0: i32, %arg1: i32) -> (i32, i32, i32) {
    %c0_i32 = arith.constant 0 : i32
    %c0_i32_0 = arith.constant 0 : i32
    %c0_i32_1 = arith.constant 0 : i32
    return %arg1, %c0_i32, %c0_i32_0 : i32, i32, i32
  }
  func.func @transform_9(%arg0: i32, %arg1: i32) -> (i32, i32, i32) {
    %c0_i32 = arith.constant 0 : i32
    %c0_i32_0 = arith.constant 0 : i32
    %c0_i32_1 = arith.constant 0 : i32
    return %arg1, %c0_i32, %c0_i32_0 : i32, i32, i32
  }
  func.func @transform_10(%arg0: i32, %arg1: i32) -> (i32, i32, i32, i32) {
    %c0_i32 = arith.constant 0 : i32
    %c0_i32_0 = arith.constant 0 : i32
    %c0_i32_1 = arith.constant 0 : i32
    return %arg1, %arg0, %c0_i32, %c0_i32_0 : i32, i32, i32, i32
  }
}

module attributes {stable_mosaic.version = 11 : i64} {
  func.func @_compress_shortcut_kernel(%arg0: i32, %arg1: memref<512x4xf32, #tpu.memory_space<vmem>>, %arg2: memref<4x512x4xf32, #tpu.memory_space<vmem>>, %arg3: memref<512x8xf32, #tpu.memory_space<vmem>>, %arg4: memref<1x20xf32, #tpu.memory_space<vmem>>, %arg5: memref<1x20xf32, #tpu.memory_space<vmem>>, %arg6: memref<20x8xbf16, #tpu.memory_space<vmem>>, %arg7: memref<1x8xf32, #tpu.memory_space<vmem>>, %arg8: memref<1x8xf32, #tpu.memory_space<vmem>>, %arg9: memref<8x8xbf16, #tpu.memory_space<vmem>>, %arg10: memref<512x8xf32, #tpu.memory_space<vmem>>) attributes {dimension_semantics = [#tpu.dimension_semantics<parallel>], iteration_bounds = array<i64: 1>, scalar_prefetch = 0 : i64, scratch_operands = 0 : i64, tpu.core_type = #tpu.core_type<tc>, window_params = [{transform_indices = @transform_0, window_bounds = array<i64: 512, 4>}, {transform_indices = @transform_1, window_bounds = array<i64: 4, 512, 4>}, {transform_indices = @transform_2, window_bounds = array<i64: 512, 8>}, {pipeline_mode = #tpu.pipeline_mode<synchronous>, transform_indices = @transform_3, window_bounds = array<i64: 1, 20>}, {pipeline_mode = #tpu.pipeline_mode<synchronous>, transform_indices = @transform_4, window_bounds = array<i64: 1, 20>}, {pipeline_mode = #tpu.pipeline_mode<synchronous>, transform_indices = @transform_5, window_bounds = array<i64: 20, 8>}, {pipeline_mode = #tpu.pipeline_mode<synchronous>, transform_indices = @transform_6, window_bounds = array<i64: 1, 8>}, {pipeline_mode = #tpu.pipeline_mode<synchronous>, transform_indices = @transform_7, window_bounds = array<i64: 1, 8>}, {pipeline_mode = #tpu.pipeline_mode<synchronous>, transform_indices = @transform_8, window_bounds = array<i64: 8, 8>}, {transform_indices = @transform_9, window_bounds = array<i64: 512, 8>}]} {
    %c0 = arith.constant 0 : index
    %c0_0 = arith.constant 0 : index
    %0 = vector.load %arg1[%c0, %c0_0] : memref<512x4xf32, #tpu.memory_space<vmem>>, vector<512x4xf32>
    %c0_1 = arith.constant 0 : index
    %c0_2 = arith.constant 0 : index
    %c0_3 = arith.constant 0 : index
    %1 = vector.load %arg2[%c0_1, %c0_2, %c0_3] : memref<4x512x4xf32, #tpu.memory_space<vmem>>, vector<1x512x4xf32>
    %2 = vector.shape_cast %1 : vector<1x512x4xf32> to vector<512x4xf32>
    %c1 = arith.constant 1 : index
    %c0_4 = arith.constant 0 : index
    %c0_5 = arith.constant 0 : index
    %3 = vector.load %arg2[%c1, %c0_4, %c0_5] : memref<4x512x4xf32, #tpu.memory_space<vmem>>, vector<1x512x4xf32>
    %4 = vector.shape_cast %3 : vector<1x512x4xf32> to vector<512x4xf32>
    %c2 = arith.constant 2 : index
    %c0_6 = arith.constant 0 : index
    %c0_7 = arith.constant 0 : index
    %5 = vector.load %arg2[%c2, %c0_6, %c0_7] : memref<4x512x4xf32, #tpu.memory_space<vmem>>, vector<1x512x4xf32>
    %6 = vector.shape_cast %5 : vector<1x512x4xf32> to vector<512x4xf32>
    %c3 = arith.constant 3 : index
    %c0_8 = arith.constant 0 : index
    %c0_9 = arith.constant 0 : index
    %7 = vector.load %arg2[%c3, %c0_8, %c0_9] : memref<4x512x4xf32, #tpu.memory_space<vmem>>, vector<1x512x4xf32>
    %8 = vector.shape_cast %7 : vector<1x512x4xf32> to vector<512x4xf32>
    %9 = tpu.concatenate %0, %2, %4, %6, %8 in 1 : vector<512x4xf32>, vector<512x4xf32>, vector<512x4xf32>, vector<512x4xf32>, vector<512x4xf32> -> vector<512x20xf32>
    %c0_10 = arith.constant 0 : index
    %c0_11 = arith.constant 0 : index
    %10 = vector.load %arg4[%c0_10, %c0_11] : memref<1x20xf32, #tpu.memory_space<vmem>>, vector<1x20xf32>
    %11 = vector.broadcast %10 : vector<1x20xf32> to vector<512x20xf32>
    %12 = arith.mulf %9, %11 : vector<512x20xf32>
    %c0_12 = arith.constant 0 : index
    %c0_13 = arith.constant 0 : index
    %13 = vector.load %arg5[%c0_12, %c0_13] : memref<1x20xf32, #tpu.memory_space<vmem>>, vector<1x20xf32>
    %14 = vector.broadcast %13 : vector<1x20xf32> to vector<512x20xf32>
    %15 = arith.addf %12, %14 : vector<512x20xf32>
    %cst = arith.constant 0.000000e+00 : f32
    %16 = vector.broadcast %cst : f32 to vector<512x20xf32>
    %17 = arith.maximumf %15, %16 : vector<512x20xf32>
    %18 = arith.truncf %17 : vector<512x20xf32> to vector<512x20xbf16>
    %c0_14 = arith.constant 0 : index
    %c0_15 = arith.constant 0 : index
    %19 = vector.load %arg6[%c0_14, %c0_15] : memref<20x8xbf16, #tpu.memory_space<vmem>>, vector<20x8xbf16>
    %cst_16 = arith.constant dense<0.000000e+00> : vector<512x8xf32>
    %20 = tpu.matmul %18, %19, %cst_16 {dimension_numbers = #tpu.dot_dimension_numbers<[1], [0], [0], [1], [0, 0, 1, 1], [], []>} : vector<512x20xbf16>, vector<20x8xbf16>, vector<512x8xf32> -> vector<512x8xf32>
    %c0_17 = arith.constant 0 : index
    %c0_18 = arith.constant 0 : index
    %21 = vector.load %arg3[%c0_17, %c0_18] : memref<512x8xf32, #tpu.memory_space<vmem>>, vector<512x8xf32>
    %c0_19 = arith.constant 0 : index
    %c0_20 = arith.constant 0 : index
    %22 = vector.load %arg7[%c0_19, %c0_20] : memref<1x8xf32, #tpu.memory_space<vmem>>, vector<1x8xf32>
    %23 = vector.broadcast %22 : vector<1x8xf32> to vector<512x8xf32>
    %24 = arith.mulf %21, %23 : vector<512x8xf32>
    %c0_21 = arith.constant 0 : index
    %c0_22 = arith.constant 0 : index
    %25 = vector.load %arg8[%c0_21, %c0_22] : memref<1x8xf32, #tpu.memory_space<vmem>>, vector<1x8xf32>
    %26 = vector.broadcast %25 : vector<1x8xf32> to vector<512x8xf32>
    %27 = arith.addf %24, %26 : vector<512x8xf32>
    %cst_23 = arith.constant 0.000000e+00 : f32
    %28 = vector.broadcast %cst_23 : f32 to vector<512x8xf32>
    %29 = arith.maximumf %27, %28 : vector<512x8xf32>
    %30 = arith.truncf %29 : vector<512x8xf32> to vector<512x8xbf16>
    %c0_24 = arith.constant 0 : index
    %c0_25 = arith.constant 0 : index
    %31 = vector.load %arg9[%c0_24, %c0_25] : memref<8x8xbf16, #tpu.memory_space<vmem>>, vector<8x8xbf16>
    %cst_26 = arith.constant dense<0.000000e+00> : vector<512x8xf32>
    %32 = tpu.matmul %30, %31, %cst_26 {dimension_numbers = #tpu.dot_dimension_numbers<[1], [0], [0], [1], [0, 0, 1, 1], [], []>} : vector<512x8xbf16>, vector<8x8xbf16>, vector<512x8xf32> -> vector<512x8xf32>
    %33 = arith.addf %20, %32 : vector<512x8xf32>
    %c0_27 = arith.constant 0 : index
    %c0_28 = arith.constant 0 : index
    %34 = vector.load %arg10[%c0_27, %c0_28] : memref<512x8xf32, #tpu.memory_space<vmem>>, vector<512x8xf32>
    tpu.vector_store %arg10[%c0_27, %c0_28], %33 {strides = array<i32>} : memref<512x8xf32, #tpu.memory_space<vmem>>, vector<512x8xf32>,
    return
  }
  func.func @transform_0(%arg0: i32) -> (i32, i32) {
    %c0_i32 = arith.constant 0 : i32
    %c0_i32_0 = arith.constant 0 : i32
    return %arg0, %c0_i32 : i32, i32
  }
  func.func @transform_1(%arg0: i32) -> (i32, i32, i32) {
    %c0_i32 = arith.constant 0 : i32
    %c0_i32_0 = arith.constant 0 : i32
    %c0_i32_1 = arith.constant 0 : i32
    return %c0_i32, %arg0, %c0_i32_0 : i32, i32, i32
  }
  func.func @transform_2(%arg0: i32) -> (i32, i32) {
    %c0_i32 = arith.constant 0 : i32
    %c0_i32_0 = arith.constant 0 : i32
    return %arg0, %c0_i32 : i32, i32
  }
  func.func @transform_3(%arg0: i32) -> (i32, i32) {
    %c0_i32 = arith.constant 0 : i32
    %c0_i32_0 = arith.constant 0 : i32
    %c0_i32_1 = arith.constant 0 : i32
    return %c0_i32, %c0_i32_0 : i32, i32
  }
  func.func @transform_4(%arg0: i32) -> (i32, i32) {
    %c0_i32 = arith.constant 0 : i32
    %c0_i32_0 = arith.constant 0 : i32
    %c0_i32_1 = arith.constant 0 : i32
    return %c0_i32, %c0_i32_0 : i32, i32
  }
  func.func @transform_5(%arg0: i32) -> (i32, i32) {
    %c0_i32 = arith.constant 0 : i32
    %c0_i32_0 = arith.constant 0 : i32
    %c0_i32_1 = arith.constant 0 : i32
    return %c0_i32, %c0_i32_0 : i32, i32
  }
  func.func @transform_6(%arg0: i32) -> (i32, i32) {
    %c0_i32 = arith.constant 0 : i32
    %c0_i32_0 = arith.constant 0 : i32
    %c0_i32_1 = arith.constant 0 : i32
    return %c0_i32, %c0_i32_0 : i32, i32
  }
  func.func @transform_7(%arg0: i32) -> (i32, i32) {
    %c0_i32 = arith.constant 0 : i32
    %c0_i32_0 = arith.constant 0 : i32
    %c0_i32_1 = arith.constant 0 : i32
    return %c0_i32, %c0_i32_0 : i32, i32
  }
  func.func @transform_8(%arg0: i32) -> (i32, i32) {
    %c0_i32 = arith.constant 0 : i32
    %c0_i32_0 = arith.constant 0 : i32
    %c0_i32_1 = arith.constant 0 : i32
    return %c0_i32, %c0_i32_0 : i32, i32
  }
  func.func @transform_9(%arg0: i32) -> (i32, i32) {
    %c0_i32 = arith.constant 0 : i32
    %c0_i32_0 = arith.constant 0 : i32
    return %arg0, %c0_i32 : i32, i32
  }
}

</mosaic_0001>

<llo_original>
// kernel: pappm_forward.3
$region0: #{pappm_forward.3}
  #allocation0 [shape = 'u32[]', space=smem, size = 0x4, offset = 0x4, fixed_abs, tag = 'smem constant byte address 0x4 - core index']
  #allocation1 [shape = 'u32[72,128]{1,0:T(1,128)}', space=vmem, size = 0x9000, scoped, tag = 'internal scratch']
  %s0 = inlined_call_operand.vmem [shape: f32[512,8], index: 0, kind: input, shape index: {}]
  %s1 = inlined_call_operand.vmem [shape: f32[1,8], index: 1, kind: input, shape index: {}]
  %s2 = inlined_call_operand.vmem [shape: f32[1,8], index: 2, kind: input, shape index: {}]
  %s3 = inlined_call_operand.vmem [shape: bf16[8,4], index: 3, kind: input, shape index: {}]
  %s4 = inlined_call_operand.vmem [shape: f32[512,4], index: 4, kind: output, shape index: {}]
  %s5 = sld [smem:[#allocation0]]
  $region26: #{pappm_forward.3} parent=0
    _
  %s7 = ssub.s32 1, %s5
  %s8 = scalar_select 0, %s7, %s5
  // Predicated region
  $region2: #{pappm_forward.3} parent=0 // pred_check
    _
  $region3: #{pappm_forward.3} parent=0 // pred_check_branch
    %10 = sbr.rel (0) target = $region5
  $region4: #{pappm_forward.3} parent=0 // pred_region
    _
  $region5: #{pappm_forward.3} parent=0 // pred_fallthru
    _
  // Predicated region
  $region6: #{pappm_forward.3} parent=0 // pred_check
    _
  $region7: #{pappm_forward.3} parent=0 // pred_check_branch
    %12 = sbr.rel (0) target = $region9
  $region8: #{pappm_forward.3} parent=0 // pred_region
    _
  $region9: #{pappm_forward.3} parent=0 // pred_fallthru
    _
  // Predicated region
  $region10: #{pappm_forward.3} parent=0 // pred_check
    _
  $region11: #{pappm_forward.3} parent=0 // pred_check_branch
    %14 = sbr.rel (0) target = $region13
  $region12: #{pappm_forward.3} parent=0 // pred_region
    _
  $region13: #{pappm_forward.3} parent=0 // pred_fallthru
    _
  // Predicated region
  $region14: #{pappm_forward.3} parent=0 // pred_check
    _
  $region15: #{pappm_forward.3} parent=0 // pred_check_branch
    %16 = sbr.rel (0) target = $region17
  $region16: #{pappm_forward.3} parent=0 // pred_region
    _
  $region17: #{pappm_forward.3} parent=0 // pred_fallthru
    _
  %v18 = vld [vmem:[%s0] sm:$0xff]
  %v19 = vld [vmem:[%s0 + $0x8] sm:$0xff]
  %v20 = vld [vmem:[%s0 + $0x10] sm:$0xff]
  %v21 = vld [vmem:[%s0 + $0x18] sm:$0xff]
  %v22 = vld [vmem:[%s0 + $0x20] sm:$0xff]
  %v23 = vld [vmem:[%s0 + $0x28] sm:$0xff]
  %v24 = vld [vmem:[%s0 + $0x30] sm:$0xff]
  %v25 = vld [vmem:[%s0 + $0x38] sm:$0xff]
  %v26 = vld [vmem:[%s0 + $0x40] sm:$0xff]
  %v27 = vld [vmem:[%s0 + $0x48] sm:$0xff]
  %v28 = vld [vmem:[%s0 + $0x50] sm:$0xff]
  %v29 = vld [vmem:[%s0 + $0x58] sm:$0xff]
  %v30 = vld [vmem:[%s0 + $0x60] sm:$0xff]
  %v31 = vld [vmem:[%s0 + $0x68] sm:$0xff]
  %v32 = vld [vmem:[%s0 + $0x70] sm:$0xff]
  %v33 = vld [vmem:[%s0 + $0x78] sm:$0xff]
  %v34 = vld [vmem:[%s0 + $0x80] sm:$0xff]
  %v35 = vld [vmem:[%s0 + $0x88] sm:$0xff]
  %v36 = vld [vmem:[%s0 + $0x90] sm:$0xff]
  %v37 = vld [vmem:[%s0 + $0x98] sm:$0xff]
  %v38 = vld [vmem:[%s0 + $0xa0] sm:$0xff]
  %v39 = vld [vmem:[%s0 + $0xa8] sm:$0xff]
  %v40 = vld [vmem:[%s0 + $0xb0] sm:$0xff]
  %v41 = vld [vmem:[%s0 + $0xb8] sm:$0xff]
  %v42 = vld [vmem:[%s0 + $0xc0] sm:$0xff]
  %v43 = vld [vmem:[%s0 + $0xc8] sm:$0xff]
  %v44 = vld [vmem:[%s0 + $0xd0] sm:$0xff]
  %v45 = vld [vmem:[%s0 + $0xd8] sm:$0xff]
  %v46 = vld [vmem:[%s0 + $0xe0] sm:$0xff]
  %v47 = vld [vmem:[%s0 + $0xe8] sm:$0xff]
  %v48 = vld [vmem:[%s0 + $0xf0] sm:$0xff]
  %v49 = vld [vmem:[%s0 + $0xf8] sm:$0xff]
  %v50 = vld [vmem:[%s0 + $0x100] sm:$0xff]
  %v51 = vld [vmem:[%s0 + $0x108] sm:$0xff]
  %v52 = vld [vmem:[%s0 + $0x110] sm:$0xff]
  %v53 = vld [vmem:[%s0 + $0x118] sm:$0xff]
  %v54 = vld [vmem:[%s0 + $0x120] sm:$0xff]
  %v55 = vld [vmem:[%s0 + $0x128] sm:$0xff]
  %v56 = vld [vmem:[%s0 + $0x130] sm:$0xff]
  %v57 = vld [vmem:[%s0 + $0x138] sm:$0xff]
  %v58 = vld [vmem:[%s0 + $0x140] sm:$0xff]
  %v59 = vld [vmem:[%s0 + $0x148] sm:$0xff]
  %v60 = vld [vmem:[%s0 + $0x150] sm:$0xff]
  %v61 = vld [vmem:[%s0 + $0x158] sm:$0xff]
  %v62 = vld [vmem:[%s0 + $0x160] sm:$0xff]
  %v63 = vld [vmem:[%s0 + $0x168] sm:$0xff]
  %v64 = vld [vmem:[%s0 + $0x170] sm:$0xff]
  %v65 = vld [vmem:[%s0 + $0x178] sm:$0xff]
  %v66 = vld [vmem:[%s0 + $0x180] sm:$0xff]
  %v67 = vld [vmem:[%s0 + $0x188] sm:$0xff]
  %v68 = vld [vmem:[%s0 + $0x190] sm:$0xff]
  %v69 = vld [vmem:[%s0 + $0x198] sm:$0xff]
  %v70 = vld [vmem:[%s0 + $0x1a0] sm:$0xff]
  %v71 = vld [vmem:[%s0 + $0x1a8] sm:$0xff]
  %v72 = vld [vmem:[%s0 + $0x1b0] sm:$0xff]
  %v73 = vld [vmem:[%s0 + $0x1b8] sm:$0xff]
  %v74 = vld [vmem:[%s0 + $0x1c0] sm:$0xff]
  %v75 = vld [vmem:[%s0 + $0x1c8] sm:$0xff]
  %v76 = vld [vmem:[%s0 + $0x1d0] sm:$0xff]
  %v77 = vld [vmem:[%s0 + $0x1d8] sm:$0xff]
  %v78 = vld [vmem:[%s0 + $0x1e0] sm:$0xff]
  %v79 = vld [vmem:[%s0 + $0x1e8] sm:$0xff]
  %v80 = vld [vmem:[%s0 + $0x1f0] sm:$0xff]
  %v81 = vld [vmem:[%s0 + $0x1f8] sm:$0xff]
  %v82 = vld [vmem:[%s1] sm:$0x1]
  %v84 = vperm.slane %v82, 0
  %v86 = vmul.f32 %v18, %v84
  %v87 = vmul.f32 %v19, %v84
  %v88 = vmul.f32 %v20, %v84
  %v89 = vmul.f32 %v21, %v84
  %v90 = vmul.f32 %v22, %v84
  %v91 = vmul.f32 %v23, %v84
  %v92 = vmul.f32 %v24, %v84
  %v93 = vmul.f32 %v25, %v84
  %v94 = vmul.f32 %v26, %v84
  %v95 = vmul.f32 %v27, %v84
  %v96 = vmul.f32 %v28, %v84
  %v97 = vmul.f32 %v29, %v84
  %v98 = vmul.f32 %v30, %v84
  %v99 = vmul.f32 %v31, %v84
  %v100 = vmul.f32 %v32, %v84
  %v101 = vmul.f32 %v33, %v84
  %v102 = vmul.f32 %v34, %v84
  %v103 = vmul.f32 %v35, %v84
  %v104 = vmul.f32 %v36, %v84
  %v105 = vmul.f32 %v37, %v84
  %v106 = vmul.f32 %v38, %v84
  %v107 = vmul.f32 %v39, %v84
  %v108 = vmul.f32 %v40, %v84
  %v109 = vmul.f32 %v41, %v84
  %v110 = vmul.f32 %v42, %v84
  %v111 = vmul.f32 %v43, %v84
  %v112 = vmul.f32 %v44, %v84
  %v113 = vmul.f32 %v45, %v84
  %v114 = vmul.f32 %v46, %v84
  %v115 = vmul.f32 %v47, %v84
  %v116 = vmul.f32 %v48, %v84
  %v117 = vmul.f32 %v49, %v84
  %v118 = vmul.f32 %v50, %v84
  %v119 = vmul.f32 %v51, %v84
  %v120 = vmul.f32 %v52, %v84
  %v121 = vmul.f32 %v53, %v84
  %v122 = vmul.f32 %v54, %v84
  %v123 = vmul.f32 %v55, %v84
  %v124 = vmul.f32 %v56, %v84
  %v125 = vmul.f32 %v57, %v84
  %v126 = vmul.f32 %v58, %v84
  %v127 = vmul.f32 %v59, %v84
  %v128 = vmul.f32 %v60, %v84
  %v129 = vmul.f32 %v61, %v84
  %v130 = vmul.f32 %v62, %v84
  %v131 = vmul.f32 %v63, %v84
  %v132 = vmul.f32 %v64, %v84
  %v133 = vmul.f32 %v65, %v84
  %v134 = vmul.f32 %v66, %v84
  %v135 = vmul.f32 %v67, %v84
  %v136 = vmul.f32 %v68, %v84
  %v137 = vmul.f32 %v69, %v84
  %v138 = vmul.f32 %v70, %v84
  %v139 = vmul.f32 %v71, %v84
  %v140 = vmul.f32 %v72, %v84
  %v141 = vmul.f32 %v73, %v84
  %v142 = vmul.f32 %v74, %v84
  %v143 = vmul.f32 %v75, %v84
  %v144 = vmul.f32 %v76, %v84
  %v145 = vmul.f32 %v77, %v84
  %v146 = vmul.f32 %v78, %v84
  %v147 = vmul.f32 %v79, %v84
  %v148 = vmul.f32 %v80, %v84
  %v149 = vmul.f32 %v81, %v84
  %v150 = vld [vmem:[%s2] sm:$0x1]
  %v152 = vperm.slane %v150, 0
  %v154 = vadd.f32 %v86, %v152
  %v155 = vadd.f32 %v87, %v152
  %v156 = vadd.f32 %v88, %v152
  %v157 = vadd.f32 %v89, %v152
  %v158 = vadd.f32 %v90, %v152
  %v159 = vadd.f32 %v91, %v152
  %v160 = vadd.f32 %v92, %v152
  %v161 = vadd.f32 %v93, %v152
  %v162 = vadd.f32 %v94, %v152
  %v163 = vadd.f32 %v95, %v152
  %v164 = vadd.f32 %v96, %v152
  %v165 = vadd.f32 %v97, %v152
  %v166 = vadd.f32 %v98, %v152
  %v167 = vadd.f32 %v99, %v152
  %v168 = vadd.f32 %v100, %v152
  %v169 = vadd.f32 %v101, %v152
  %v170 = vadd.f32 %v102, %v152
  %v171 = vadd.f32 %v103, %v152
  %v172 = vadd.f32 %v104, %v152
  %v173 = vadd.f32 %v105, %v152
  %v174 = vadd.f32 %v106, %v152
  %v175 = vadd.f32 %v107, %v152
  %v176 = vadd.f32 %v108, %v152
  %v177 = vadd.f32 %v109, %v152
  %v178 = vadd.f32 %v110, %v152
  %v179 = vadd.f32 %v111, %v152
  %v180 = vadd.f32 %v112, %v152
  %v181 = vadd.f32 %v113, %v152
  %v182 = vadd.f32 %v114, %v152
  %v183 = vadd.f32 %v115, %v152
  %v184 = vadd.f32 %v116, %v152
  %v185 = vadd.f32 %v117, %v152
  %v186 = vadd.f32 %v118, %v152
  %v187 = vadd.f32 %v119, %v152
  %v188 = vadd.f32 %v120, %v152
  %v189 = vadd.f32 %v121, %v152
  %v190 = vadd.f32 %v122, %v152
  %v191 = vadd.f32 %v123, %v152
  %v192 = vadd.f32 %v124, %v152
  %v193 = vadd.f32 %v125, %v152
  %v194 = vadd.f32 %v126, %v152
  %v195 = vadd.f32 %v127, %v152
  %v196 = vadd.f32 %v128, %v152
  %v197 = vadd.f32 %v129, %v152
  %v198 = vadd.f32 %v130, %v152
  %v199 = vadd.f32 %v131, %v152
  %v200 = vadd.f32 %v132, %v152
  %v201 = vadd.f32 %v133, %v152
  %v202 = vadd.f32 %v134, %v152
  %v203 = vadd.f32 %v135, %v152
  %v204 = vadd.f32 %v136, %v152
  %v205 = vadd.f32 %v137, %v152
  %v206 = vadd.f32 %v138, %v152
  %v207 = vadd.f32 %v139, %v152
  %v208 = vadd.f32 %v140, %v152
  %v209 = vadd.f32 %v141, %v152
  %v210 = vadd.f32 %v142, %v152
  %v211 = vadd.f32 %v143, %v152
  %v212 = vadd.f32 %v144, %v152
  %v213 = vadd.f32 %v145, %v152
  %v214 = vadd.f32 %v146, %v152
  %v215 = vadd.f32 %v147, %v152
  %v216 = vadd.f32 %v148, %v152
  %v217 = vadd.f32 %v149, %v152
  %v218 = vmax.f32 %v154, 0.0
  %v219 = vmax.f32 %v155, 0.0
  %v220 = vmax.f32 %v156, 0.0
  %v221 = vmax.f32 %v157, 0.0
  %v222 = vmax.f32 %v158, 0.0
  %v223 = vmax.f32 %v159, 0.0
  %v224 = vmax.f32 %v160, 0.0
  %v225 = vmax.f32 %v161, 0.0
  %v226 = vmax.f32 %v162, 0.0
  %v227 = vmax.f32 %v163, 0.0
  %v228 = vmax.f32 %v164, 0.0
  %v229 = vmax.f32 %v165, 0.0
  %v230 = vmax.f32 %v166, 0.0
  %v231 = vmax.f32 %v167, 0.0
  %v232 = vmax.f32 %v168, 0.0
  %v233 = vmax.f32 %v169, 0.0
  %v234 = vmax.f32 %v170, 0.0
  %v235 = vmax.f32 %v171, 0.0
  %v236 = vmax.f32 %v172, 0.0
  %v237 = vmax.f32 %v173, 0.0
  %v238 = vmax.f32 %v174, 0.0
  %v239 = vmax.f32 %v175, 0.0
  %v240 = vmax.f32 %v176, 0.0
  %v241 = vmax.f32 %v177, 0.0
  %v242 = vmax.f32 %v178, 0.0
  %v243 = vmax.f32 %v179, 0.0
  %v244 = vmax.f32 %v180, 0.0
  %v245 = vmax.f32 %v181, 0.0
  %v246 = vmax.f32 %v182, 0.0
  %v247 = vmax.f32 %v183, 0.0
  %v248 = vmax.f32 %v184, 0.0
  %v249 = vmax.f32 %v185, 0.0
  %v250 = vmax.f32 %v186, 0.0
  %v251 = vmax.f32 %v187, 0.0
  %v252 = vmax.f32 %v188, 0.0
  %v253 = vmax.f32 %v189, 0.0
  %v254 = vmax.f32 %v190, 0.0
  %v255 = vmax.f32 %v191, 0.0
  %v256 = vmax.f32 %v192, 0.0
  %v257 = vmax.f32 %v193, 0.0
  %v258 = vmax.f32 %v194, 0.0
  %v259 = vmax.f32 %v195, 0.0
  %v260 = vmax.f32 %v196, 0.0
  %v261 = vmax.f32 %v197, 0.0
  %v262 = vmax.f32 %v198, 0.0
  %v263 = vmax.f32 %v199, 0.0
  %v264 = vmax.f32 %v200, 0.0
  %v265 = vmax.f32 %v201, 0.0
  %v266 = vmax.f32 %v202, 0.0
  %v267 = vmax.f32 %v203, 0.0
  %v268 = vmax.f32 %v204, 0.0
  %v269 = vmax.f32 %v205, 0.0
  %v270 = vmax.f32 %v206, 0.0
  %v271 = vmax.f32 %v207, 0.0
  %v272 = vmax.f32 %v208, 0.0
  %v273 = vmax.f32 %v209, 0.0
  %v274 = vmax.f32 %v210, 0.0
  %v275 = vmax.f32 %v211, 0.0
  %v276 = vmax.f32 %v212, 0.0
  %v277 = vmax.f32 %v213, 0.0
  %v278 = vmax.f32 %v214, 0.0
  %v279 = vmax.f32 %v215, 0.0
  %v280 = vmax.f32 %v216, 0.0
  %v281 = vmax.f32 %v217, 0.0
  %v282 = vpack.c.bf16 %v219, %v218
  %v283 = vpack.c.bf16 %v221, %v220
  %v284 = vpack.c.bf16 %v223, %v222
  %v285 = vpack.c.bf16 %v225, %v224
  %v286 = vpack.c.bf16 %v227, %v226
  %v287 = vpack.c.bf16 %v229, %v228
  %v288 = vpack.c.bf16 %v231, %v230
  %v289 = vpack.c.bf16 %v233, %v232
  %v290 = vpack.c.bf16 %v235, %v234
  %v291 = vpack.c.bf16 %v237, %v236
  %v292 = vpack.c.bf16 %v239, %v238
  %v293 = vpack.c.bf16 %v241, %v240
  %v294 = vpack.c.bf16 %v243, %v242
  %v295 = vpack.c.bf16 %v245, %v244
  %v296 = vpack.c.bf16 %v247, %v246
  %v297 = vpack.c.bf16 %v249, %v248
  %v298 = vpack.c.bf16 %v251, %v250
  %v299 = vpack.c.bf16 %v253, %v252
  %v300 = vpack.c.bf16 %v255, %v254
  %v301 = vpack.c.bf16 %v257, %v256
  %v302 = vpack.c.bf16 %v259, %v258
  %v303 = vpack.c.bf16 %v261, %v260
  %v304 = vpack.c.bf16 %v263, %v262
  %v305 = vpack.c.bf16 %v265, %v264
  %v306 = vpack.c.bf16 %v267, %v266
  %v307 = vpack.c.bf16 %v269, %v268
  %v308 = vpack.c.bf16 %v271, %v270
  %v309 = vpack.c.bf16 %v273, %v272
  %v310 = vpack.c.bf16 %v275, %v274
  %v311 = vpack.c.bf16 %v277, %v276
  %v312 = vpack.c.bf16 %v279, %v278
  %v313 = vpack.c.bf16 %v281, %v280
  %v314 = vld [vmem:[%s3] sm:$0xf]
  %vm315 = vcmask 64512
  %v317 = vsel %vm315, %v282, 0
  %v320 = vsel %vm315, %v283, 0
  %v323 = vsel %vm315, %v284, 0
  %v326 = vsel %vm315, %v285, 0
  %v329 = vsel %vm315, %v286, 0
  %v332 = vsel %vm315, %v287, 0
  %v335 = vsel %vm315, %v288, 0
  %v338 = vsel %vm315, %v289, 0
  %v341 = vsel %vm315, %v290, 0
  %v344 = vsel %vm315, %v291, 0
  %v347 = vsel %vm315, %v292, 0
  %v350 = vsel %vm315, %v293, 0
  %v353 = vsel %vm315, %v294, 0
  %v356 = vsel %vm315, %v295, 0
  %v359 = vsel %vm315, %v296, 0
  %v362 = vsel %vm315, %v297, 0
  %v365 = vsel %vm315, %v298, 0
  %v368 = vsel %vm315, %v299, 0
  %v371 = vsel %vm315, %v300, 0
  %v374 = vsel %vm315, %v301, 0
  %v377 = vsel %vm315, %v302, 0
  %v380 = vsel %vm315, %v303, 0
  %v383 = vsel %vm315, %v304, 0
  %v386 = vsel %vm315, %v305, 0
  %v389 = vsel %vm315, %v306, 0
  %v392 = vsel %vm315, %v307, 0
  %v395 = vsel %vm315, %v308, 0
  %v398 = vsel %vm315, %v309, 0
  %v401 = vsel %vm315, %v310, 0
  %v404 = vsel %vm315, %v311, 0
  %v407 = vsel %vm315, %v312, 0
  %v410 = vsel %vm315, %v313, 0
  %vm412 = vcmask 1043456
  %v414 = vsel %vm412, %v314, 0
  %416 = vmatpush.bf16.msra.mxu0 0
  %417 = vmatpush.bf16.msra.mxu0 0
  %418 = vmatpush.bf16.msra.mxu0 0
  %419 = vmatpush.bf16.msra.mxu0 0
  %420 = vmatpush.bf16.msra.mxu0 0
  %421 = vmatpush.bf16.msra.mxu0 0
  %422 = vmatpush.bf16.msra.mxu0 0
  %423 = vmatpush.bf16.msra.mxu0 %v414
  %424 = vmatmul.bf16.gmra.mxu0 %v317
  %v425 = vpop.f32.mrf.mxu0
  %v426 = vadd.f32 0.0, %v425
  %v427 = vpop.f32.mrf.mxu0
  %v428 = vadd.f32 0.0, %v427
  %429 = vmatmul.bf16.gmra.mxu0 %v320
  %v430 = vpop.f32.mrf.mxu0
  %v431 = vadd.f32 0.0, %v430
  %v432 = vpop.f32.mrf.mxu0
  %v433 = vadd.f32 0.0, %v432
  %434 = vmatmul.bf16.gmra.mxu0 %v323
  %v435 = vpop.f32.mrf.mxu0
  %v436 = vadd.f32 0.0, %v435
  %v437 = vpop.f32.mrf.mxu0
  %v438 = vadd.f32 0.0, %v437
  %439 = vmatmul.bf16.gmra.mxu0 %v326
  %v440 = vpop.f32.mrf.mxu0
  %v441 = vadd.f32 0.0, %v440
  %v442 = vpop.f32.mrf.mxu0
  %v443 = vadd.f32 0.0, %v442
  %444 = vmatmul.bf16.gmra.mxu0 %v329
  %v445 = vpop.f32.mrf.mxu0
  %v446 = vadd.f32 0.0, %v445
  %v447 = vpop.f32.mrf.mxu0
  %v448 = vadd.f32 0.0, %v447
  %449 = vmatmul.bf16.gmra.mxu0 %v332
  %v450 = vpop.f32.mrf.mxu0
  %v451 = vadd.f32 0.0, %v450
  %v452 = vpop.f32.mrf.mxu0
  %v453 = vadd.f32 0.0, %v452
  %454 = vmatmul.bf16.gmra.mxu0 %v335
  %v455 = vpop.f32.mrf.mxu0
  %v456 = vadd.f32 0.0, %v455
  %v457 = vpop.f32.mrf.mxu0
  %v458 = vadd.f32 0.0, %v457
  %459 = vmatmul.bf16.gmra.mxu0 %v338
  %v460 = vpop.f32.mrf.mxu0
  %v461 = vadd.f32 0.0, %v460
  %v462 = vpop.f32.mrf.mxu0
  %v463 = vadd.f32 0.0, %v462
  %464 = vmatmul.bf16.gmra.mxu0 %v341
  %v465 = vpop.f32.mrf.mxu0
  %v466 = vadd.f32 0.0, %v465
  %v467 = vpop.f32.mrf.mxu0
  %v468 = vadd.f32 0.0, %v467
  %469 = vmatmul.bf16.gmra.mxu0 %v344
  %v470 = vpop.f32.mrf.mxu0
  %v471 = vadd.f32 0.0, %v470
  %v472 = vpop.f32.mrf.mxu0
  %v473 = vadd.f32 0.0, %v472
  %474 = vmatmul.bf16.gmra.mxu0 %v347
  %v475 = vpop.f32.mrf.mxu0
  %v476 = vadd.f32 0.0, %v475
  %v477 = vpop.f32.mrf.mxu0
  %v478 = vadd.f32 0.0, %v477
  %479 = vmatmul.bf16.gmra.mxu0 %v350
  %v480 = vpop.f32.mrf.mxu0
  %v481 = vadd.f32 0.0, %v480
  %v482 = vpop.f32.mrf.mxu0
  %v483 = vadd.f32 0.0, %v482
  %484 = vmatmul.bf16.gmra.mxu0 %v353
  %v485 = vpop.f32.mrf.mxu0
  %v486 = vadd.f32 0.0, %v485
  %v487 = vpop.f32.mrf.mxu0
  %v488 = vadd.f32 0.0, %v487
  %489 = vmatmul.bf16.gmra.mxu0 %v356
  %v490 = vpop.f32.mrf.mxu0
  %v491 = vadd.f32 0.0, %v490
  %v492 = vpop.f32.mrf.mxu0
  %v493 = vadd.f32 0.0, %v492
  %494 = vmatmul.bf16.gmra.mxu0 %v359
  %v495 = vpop.f32.mrf.mxu0
  %v496 = vadd.f32 0.0, %v495
  %v497 = vpop.f32.mrf.mxu0
  %v498 = vadd.f32 0.0, %v497
  %499 = vmatmul.bf16.gmra.mxu0 %v362
  %v500 = vpop.f32.mrf.mxu0
  %v501 = vadd.f32 0.0, %v500
  %v502 = vpop.f32.mrf.mxu0
  %v503 = vadd.f32 0.0, %v502
  %504 = vmatmul.bf16.gmra.mxu0 %v365
  %v505 = vpop.f32.mrf.mxu0
  %v506 = vadd.f32 0.0, %v505
  %v507 = vpop.f32.mrf.mxu0
  %v508 = vadd.f32 0.0, %v507
  %509 = vmatmul.bf16.gmra.mxu0 %v368
  %v510 = vpop.f32.mrf.mxu0
  %v511 = vadd.f32 0.0, %v510
  %v512 = vpop.f32.mrf.mxu0
  %v513 = vadd.f32 0.0, %v512
  %514 = vmatmul.bf16.gmra.mxu0 %v371
  %v515 = vpop.f32.mrf.mxu0
  %v516 = vadd.f32 0.0, %v515
  %v517 = vpop.f32.mrf.mxu0
  %v518 = vadd.f32 0.0, %v517
  %519 = vmatmul.bf16.gmra.mxu0 %v374
  %v520 = vpop.f32.mrf.mxu0
  %v521 = vadd.f32 0.0, %v520
  %v522 = vpop.f32.mrf.mxu0
  %v523 = vadd.f32 0.0, %v522
  %524 = vmatmul.bf16.gmra.mxu0 %v377
  %v525 = vpop.f32.mrf.mxu0
  %v526 = vadd.f32 0.0, %v525
  %v527 = vpop.f32.mrf.mxu0
  %v528 = vadd.f32 0.0, %v527
  %529 = vmatmul.bf16.gmra.mxu0 %v380
  %v530 = vpop.f32.mrf.mxu0
  %v531 = vadd.f32 0.0, %v530
  %v532 = vpop.f32.mrf.mxu0
  %v533 = vadd.f32 0.0, %v532
  %534 = vmatmul.bf16.gmra.mxu0 %v383
  %v535 = vpop.f32.mrf.mxu0
  %v536 = vadd.f32 0.0, %v535
  %v537 = vpop.f32.mrf.mxu0
  %v538 = vadd.f32 0.0, %v537
  %539 = vmatmul.bf16.gmra.mxu0 %v386
  %v540 = vpop.f32.mrf.mxu0
  %v541 = vadd.f32 0.0, %v540
  %v542 = vpop.f32.mrf.mxu0
  %v543 = vadd.f32 0.0, %v542
  %544 = vmatmul.bf16.gmra.mxu0 %v389
  %v545 = vpop.f32.mrf.mxu0
  %v546 = vadd.f32 0.0, %v545
  %v547 = vpop.f32.mrf.mxu0
  %v548 = vadd.f32 0.0, %v547
  %549 = vmatmul.bf16.gmra.mxu0 %v392
  %v550 = vpop.f32.mrf.mxu0
  %v551 = vadd.f32 0.0, %v550
  %v552 = vpop.f32.mrf.mxu0
  %v553 = vadd.f32 0.0, %v552
  %554 = vmatmul.bf16.gmra.mxu0 %v395
  %v555 = vpop.f32.mrf.mxu0
  %v556 = vadd.f32 0.0, %v555
  %v557 = vpop.f32.mrf.mxu0
  %v558 = vadd.f32 0.0, %v557
  %559 = vmatmul.bf16.gmra.mxu0 %v398
  %v560 = vpop.f32.mrf.mxu0
  %v561 = vadd.f32 0.0, %v560
  %v562 = vpop.f32.mrf.mxu0
  %v563 = vadd.f32 0.0, %v562
  %564 = vmatmul.bf16.gmra.mxu0 %v401
  %v565 = vpop.f32.mrf.mxu0
  %v566 = vadd.f32 0.0, %v565
  %v567 = vpop.f32.mrf.mxu0
  %v568 = vadd.f32 0.0, %v567
  %569 = vmatmul.bf16.gmra.mxu0 %v404
  %v570 = vpop.f32.mrf.mxu0
  %v571 = vadd.f32 0.0, %v570
  %v572 = vpop.f32.mrf.mxu0
  %v573 = vadd.f32 0.0, %v572
  %574 = vmatmul.bf16.gmra.mxu0 %v407
  %v575 = vpop.f32.mrf.mxu0
  %v576 = vadd.f32 0.0, %v575
  %v577 = vpop.f32.mrf.mxu0
  %v578 = vadd.f32 0.0, %v577
  %579 = vmatmul.bf16.gmra.mxu0 %v410
  %v580 = vpop.f32.mrf.mxu0
  %v581 = vadd.f32 0.0, %v580
  %v582 = vpop.f32.mrf.mxu0
  %v583 = vadd.f32 0.0, %v582
  %584 = vdwg.mxu0
  %vm585 = vcmask 31744
  %586 = vst.msk [vmem:[%s4] sm:$0xff] %vm585, %v426
  %587 = vst.msk [vmem:[%s4 + $0x8] sm:$0xff] %vm585, %v428
  %588 = vst.msk [vmem:[%s4 + $0x10] sm:$0xff] %vm585, %v431
  %589 = vst.msk [vmem:[%s4 + $0x18] sm:$0xff] %vm585, %v433
  %590 = vst.msk [vmem:[%s4 + $0x20] sm:$0xff] %vm585, %v436
  %591 = vst.msk [vmem:[%s4 + $0x28] sm:$0xff] %vm585, %v438
  %592 = vst.msk [vmem:[%s4 + $0x30] sm:$0xff] %vm585, %v441
  %593 = vst.msk [vmem:[%s4 + $0x38] sm:$0xff] %vm585, %v443
  %594 = vst.msk [vmem:[%s4 + $0x40] sm:$0xff] %vm585, %v446
  %595 = vst.msk [vmem:[%s4 + $0x48] sm:$0xff] %vm585, %v448
  %596 = vst.msk [vmem:[%s4 + $0x50] sm:$0xff] %vm585, %v451
  %597 = vst.msk [vmem:[%s4 + $0x58] sm:$0xff] %vm585, %v453
  %598 = vst.msk [vmem:[%s4 + $0x60] sm:$0xff] %vm585, %v456
  %599 = vst.msk [vmem:[%s4 + $0x68] sm:$0xff] %vm585, %v458
  %600 = vst.msk [vmem:[%s4 + $0x70] sm:$0xff] %vm585, %v461
  %601 = vst.msk [vmem:[%s4 + $0x78] sm:$0xff] %vm585, %v463
  %602 = vst.msk [vmem:[%s4 + $0x80] sm:$0xff] %vm585, %v466
  %603 = vst.msk [vmem:[%s4 + $0x88] sm:$0xff] %vm585, %v468
  %604 = vst.msk [vmem:[%s4 + $0x90] sm:$0xff] %vm585, %v471
  %605 = vst.msk [vmem:[%s4 + $0x98] sm:$0xff] %vm585, %v473
  %606 = vst.msk [vmem:[%s4 + $0xa0] sm:$0xff] %vm585, %v476
  %607 = vst.msk [vmem:[%s4 + $0xa8] sm:$0xff] %vm585, %v478
  %608 = vst.msk [vmem:[%s4 + $0xb0] sm:$0xff] %vm585, %v481
  %609 = vst.msk [vmem:[%s4 + $0xb8] sm:$0xff] %vm585, %v483
  %610 = vst.msk [vmem:[%s4 + $0xc0] sm:$0xff] %vm585, %v486
  %611 = vst.msk [vmem:[%s4 + $0xc8] sm:$0xff] %vm585, %v488
  %612 = vst.msk [vmem:[%s4 + $0xd0] sm:$0xff] %vm585, %v491
  %613 = vst.msk [vmem:[%s4 + $0xd8] sm:$0xff] %vm585, %v493
  %614 = vst.msk [vmem:[%s4 + $0xe0] sm:$0xff] %vm585, %v496
  %615 = vst.msk [vmem:[%s4 + $0xe8] sm:$0xff] %vm585, %v498
  %616 = vst.msk [vmem:[%s4 + $0xf0] sm:$0xff] %vm585, %v501
  %617 = vst.msk [vmem:[%s4 + $0xf8] sm:$0xff] %vm585, %v503
  %618 = vst.msk [vmem:[%s4 + $0x100] sm:$0xff] %vm585, %v506
  %619 = vst.msk [vmem:[%s4 + $0x108] sm:$0xff] %vm585, %v508
  %620 = vst.msk [vmem:[%s4 + $0x110] sm:$0xff] %vm585, %v511
  %621 = vst.msk [vmem:[%s4 + $0x118] sm:$0xff] %vm585, %v513
  %622 = vst.msk [vmem:[%s4 + $0x120] sm:$0xff] %vm585, %v516
  %623 = vst.msk [vmem:[%s4 + $0x128] sm:$0xff] %vm585, %v518
  %624 = vst.msk [vmem:[%s4 + $0x130] sm:$0xff] %vm585, %v521
  %625 = vst.msk [vmem:[%s4 + $0x138] sm:$0xff] %vm585, %v523
  %626 = vst.msk [vmem:[%s4 + $0x140] sm:$0xff] %vm585, %v526
  %627 = vst.msk [vmem:[%s4 + $0x148] sm:$0xff] %vm585, %v528
  %628 = vst.msk [vmem:[%s4 + $0x150] sm:$0xff] %vm585, %v531
  %629 = vst.msk [vmem:[%s4 + $0x158] sm:$0xff] %vm585, %v533
  %630 = vst.msk [vmem:[%s4 + $0x160] sm:$0xff] %vm585, %v536
  %631 = vst.msk [vmem:[%s4 + $0x168] sm:$0xff] %vm585, %v538
  %632 = vst.msk [vmem:[%s4 + $0x170] sm:$0xff] %vm585, %v541
  %633 = vst.msk [vmem:[%s4 + $0x178] sm:$0xff] %vm585, %v543
  %634 = vst.msk [vmem:[%s4 + $0x180] sm:$0xff] %vm585, %v546
  %635 = vst.msk [vmem:[%s4 + $0x188] sm:$0xff] %vm585, %v548
  %636 = vst.msk [vmem:[%s4 + $0x190] sm:$0xff] %vm585, %v551
  %637 = vst.msk [vmem:[%s4 + $0x198] sm:$0xff] %vm585, %v553
  %638 = vst.msk [vmem:[%s4 + $0x1a0] sm:$0xff] %vm585, %v556
  %639 = vst.msk [vmem:[%s4 + $0x1a8] sm:$0xff] %vm585, %v558
  %640 = vst.msk [vmem:[%s4 + $0x1b0] sm:$0xff] %vm585, %v561
  %641 = vst.msk [vmem:[%s4 + $0x1b8] sm:$0xff] %vm585, %v563
  %642 = vst.msk [vmem:[%s4 + $0x1c0] sm:$0xff] %vm585, %v566
  %643 = vst.msk [vmem:[%s4 + $0x1c8] sm:$0xff] %vm585, %v568
  %644 = vst.msk [vmem:[%s4 + $0x1d0] sm:$0xff] %vm585, %v571
  %645 = vst.msk [vmem:[%s4 + $0x1d8] sm:$0xff] %vm585, %v573
  %646 = vst.msk [vmem:[%s4 + $0x1e0] sm:$0xff] %vm585, %v576
  %647 = vst.msk [vmem:[%s4 + $0x1e8] sm:$0xff] %vm585, %v578
  %648 = vst.msk [vmem:[%s4 + $0x1f0] sm:$0xff] %vm585, %v581
  %649 = vst.msk [vmem:[%s4 + $0x1f8] sm:$0xff] %vm585, %v583
  // Predicated region
  $region18: #{pappm_forward.3} parent=0 // pred_check
    _
  $region19: #{pappm_forward.3} parent=0 // pred_check_branch
    %651 = sbr.rel (0) target = $region21
  $region20: #{pappm_forward.3} parent=0 // pred_region
    _
  $region21: #{pappm_forward.3} parent=0 // pred_fallthru
    _
  // Predicated region
  $region22: #{pappm_forward.3} parent=0 // pred_check
    _
  $region23: #{pappm_forward.3} parent=0 // pred_check_branch
    %653 = sbr.rel (0) target = $region25
  $region24: #{pappm_forward.3} parent=0 // pred_region
    _
  $region25: #{pappm_forward.3} parent=0 // pred_fallthru
    _

// kernel: pappm_forward.5
$region0: #{pappm_forward.5}
  #allocation0 [shape = 'u32[]', space=smem, size = 0x4, offset = 0x4, fixed_abs, tag = 'smem constant byte address 0x4 - core index']
  #allocation1 [shape = 'u32[72,128]{1,0:T(1,128)}', space=vmem, size = 0x9000, scoped, tag = 'internal scratch']
  %s0 = inlined_call_operand.vmem [shape: f32[512,4], index: 0, kind: input, shape index: {}]
  %s1 = inlined_call_operand.vmem [shape: f32[4,512,4], index: 1, kind: input, shape index: {}]
  %s2 = inlined_call_operand.vmem [shape: f32[512,8], index: 2, kind: input, shape index: {}]
  %s3 = inlined_call_operand.vmem [shape: f32[1,20], index: 3, kind: input, shape index: {}]
  %s4 = inlined_call_operand.vmem [shape: f32[1,20], index: 4, kind: input, shape index: {}]
  %s5 = inlined_call_operand.vmem [shape: bf16[20,8], index: 5, kind: input, shape index: {}]
  %s6 = inlined_call_operand.vmem [shape: f32[1,8], index: 6, kind: input, shape index: {}]
  %s7 = inlined_call_operand.vmem [shape: f32[1,8], index: 7, kind: input, shape index: {}]
  %s8 = inlined_call_operand.vmem [shape: bf16[8,8], index: 8, kind: input, shape index: {}]
  %s9 = inlined_call_operand.vmem [shape: f32[512,8], index: 9, kind: output, shape index: {}]
  %s10 = sld [smem:[#allocation0]]
  $region46: #{pappm_forward.5} parent=0
    _
  %s12 = ssub.s32 1, %s10
  %s13 = scalar_select 0, %s12, %s10
  // Predicated region
  $region2: #{pappm_forward.5} parent=0 // pred_check
    _
  $region3: #{pappm_forward.5} parent=0 // pred_check_branch
    %15 = sbr.rel (0) target = $region5
  $region4: #{pappm_forward.5} parent=0 // pred_region
    _
  $region5: #{pappm_forward.5} parent=0 // pred_fallthru
    _
  // Predicated region
  $region6: #{pappm_forward.5} parent=0 // pred_check
    _
  $region7: #{pappm_forward.5} parent=0 // pred_check_branch
    %17 = sbr.rel (0) target = $region9
  $region8: #{pappm_forward.5} parent=0 // pred_region
    _
  $region9: #{pappm_forward.5} parent=0 // pred_fallthru
    _
  // Predicated region
  $region10: #{pappm_forward.5} parent=0 // pred_check
    _
  $region11: #{pappm_forward.5} parent=0 // pred_check_branch
    %19 = sbr.rel (0) target = $region13
  $region12: #{pappm_forward.5} parent=0 // pred_region
    _
  $region13: #{pappm_forward.5} parent=0 // pred_fallthru
    _
  // Predicated region
  $region14: #{pappm_forward.5} parent=0 // pred_check
    _
  $region15: #{pappm_forward.5} parent=0 // pred_check_branch
    %21 = sbr.rel (0) target = $region17
  $region16: #{pappm_forward.5} parent=0 // pred_region
    _
  $region17: #{pappm_forward.5} parent=0 // pred_fallthru
    _
  // Predicated region
  $region18: #{pappm_forward.5} parent=0 // pred_check
    _
  $region19: #{pappm_forward.5} parent=0 // pred_check_branch
    %23 = sbr.rel (0) target = $region21
  $region20: #{pappm_forward.5} parent=0 // pred_region
    _
  $region21: #{pappm_forward.5} parent=0 // pred_fallthru
    _
  // Predicated region
  $region22: #{pappm_forward.5} parent=0 // pred_check
    _
  $region23: #{pappm_forward.5} parent=0 // pred_check_branch
    %25 = sbr.rel (0) target = $region25
  $region24: #{pappm_forward.5} parent=0 // pred_region
    _
  $region25: #{pappm_forward.5} parent=0 // pred_fallthru
    _
  // Predicated region
  $region26: #{pappm_forward.5} parent=0 // pred_check
    _
  $region27: #{pappm_forward.5} parent=0 // pred_check_branch
    %27 = sbr.rel (0) target = $region29
  $region28: #{pappm_forward.5} parent=0 // pred_region
    _
  $region29: #{pappm_forward.5} parent=0 // pred_fallthru
    _
  // Predicated region
  $region30: #{pappm_forward.5} parent=0 // pred_check
    _
  $region31: #{pappm_forward.5} parent=0 // pred_check_branch
    %29 = sbr.rel (0) target = $region33
  $region32: #{pappm_forward.5} parent=0 // pred_region
    _
  $region33: #{pappm_forward.5} parent=0 // pred_fallthru
    _
  // Predicated region
  $region34: #{pappm_forward.5} parent=0 // pred_check
    _
  $region35: #{pappm_forward.5} parent=0 // pred_check_branch
    %31 = sbr.rel (0) target = $region37
  $region36: #{pappm_forward.5} parent=0 // pred_region
    _
  $region37: #{pappm_forward.5} parent=0 // pred_fallthru
    _
  %v33 = vld [vmem:[%s0] sm:$0xff]
  %v34 = vld [vmem:[%s0 + $0x8] sm:$0xff]
  %v35 = vld [vmem:[%s0 + $0x10] sm:$0xff]
  %v36 = vld [vmem:[%s0 + $0x18] sm:$0xff]
  %v37 = vld [vmem:[%s0 + $0x20] sm:$0xff]
  %v38 = vld [vmem:[%s0 + $0x28] sm:$0xff]
  %v39 = vld [vmem:[%s0 + $0x30] sm:$0xff]
  %v40 = vld [vmem:[%s0 + $0x38] sm:$0xff]
  %v41 = vld [vmem:[%s0 + $0x40] sm:$0xff]
  %v42 = vld [vmem:[%s0 + $0x48] sm:$0xff]
  %v43 = vld [vmem:[%s0 + $0x50] sm:$0xff]
  %v44 = vld [vmem:[%s0 + $0x58] sm:$0xff]
  %v45 = vld [vmem:[%s0 + $0x60] sm:$0xff]
  %v46 = vld [vmem:[%s0 + $0x68] sm:$0xff]
  %v47 = vld [vmem:[%s0 + $0x70] sm:$0xff]
  %v48 = vld [vmem:[%s0 + $0x78] sm:$0xff]
  %v49 = vld [vmem:[%s0 + $0x80] sm:$0xff]
  %v50 = vld [vmem:[%s0 + $0x88] sm:$0xff]
  %v51 = vld [vmem:[%s0 + $0x90] sm:$0xff]
  %v52 = vld [vmem:[%s0 + $0x98] sm:$0xff]
  %v53 = vld [vmem:[%s0 + $0xa0] sm:$0xff]
  %v54 = vld [vmem:[%s0 + $0xa8] sm:$0xff]
  %v55 = vld [vmem:[%s0 + $0xb0] sm:$0xff]
  %v56 = vld [vmem:[%s0 + $0xb8] sm:$0xff]
  %v57 = vld [vmem:[%s0 + $0xc0] sm:$0xff]
  %v58 = vld [vmem:[%s0 + $0xc8] sm:$0xff]
  %v59 = vld [vmem:[%s0 + $0xd0] sm:$0xff]
  %v60 = vld [vmem:[%s0 + $0xd8] sm:$0xff]
  %v61 = vld [vmem:[%s0 + $0xe0] sm:$0xff]
  %v62 = vld [vmem:[%s0 + $0xe8] sm:$0xff]
  %v63 = vld [vmem:[%s0 + $0xf0] sm:$0xff]
  %v64 = vld [vmem:[%s0 + $0xf8] sm:$0xff]
  %v65 = vld [vmem:[%s0 + $0x100] sm:$0xff]
  %v66 = vld [vmem:[%s0 + $0x108] sm:$0xff]
  %v67 = vld [vmem:[%s0 + $0x110] sm:$0xff]
  %v68 = vld [vmem:[%s0 + $0x118] sm:$0xff]
  %v69 = vld [vmem:[%s0 + $0x120] sm:$0xff]
  %v70 = vld [vmem:[%s0 + $0x128] sm:$0xff]
  %v71 = vld [vmem:[%s0 + $0x130] sm:$0xff]
  %v72 = vld [vmem:[%s0 + $0x138] sm:$0xff]
  %v73 = vld [vmem:[%s0 + $0x140] sm:$0xff]
  %v74 = vld [vmem:[%s0 + $0x148] sm:$0xff]
  %v75 = vld [vmem:[%s0 + $0x150] sm:$0xff]
  %v76 = vld [vmem:[%s0 + $0x158] sm:$0xff]
  %v77 = vld [vmem:[%s0 + $0x160] sm:$0xff]
  %v78 = vld [vmem:[%s0 + $0x168] sm:$0xff]
  %v79 = vld [vmem:[%s0 + $0x170] sm:$0xff]
  %v80 = vld [vmem:[%s0 + $0x178] sm:$0xff]
  %v81 = vld [vmem:[%s0 + $0x180] sm:$0xff]
  %v82 = vld [vmem:[%s0 + $0x188] sm:$0xff]
  %v83 = vld [vmem:[%s0 + $0x190] sm:$0xff]
  %v84 = vld [vmem:[%s0 + $0x198] sm:$0xff]
  %v85 = vld [vmem:[%s0 + $0x1a0] sm:$0xff]
  %v86 = vld [vmem:[%s0 + $0x1a8] sm:$0xff]
  %v87 = vld [vmem:[%s0 + $0x1b0] sm:$0xff]
  %v88 = vld [vmem:[%s0 + $0x1b8] sm:$0xff]
  %v89 = vld [vmem:[%s0 + $0x1c0] sm:$0xff]
  %v90 = vld [vmem:[%s0 + $0x1c8] sm:$0xff]
  %v91 = vld [vmem:[%s0 + $0x1d0] sm:$0xff]
  %v92 = vld [vmem:[%s0 + $0x1d8] sm:$0xff]
  %v93 = vld [vmem:[%s0 + $0x1e0] sm:$0xff]
  %v94 = vld [vmem:[%s0 + $0x1e8] sm:$0xff]
  %v95 = vld [vmem:[%s0 + $0x1f0] sm:$0xff]
  %v96 = vld [vmem:[%s0 + $0x1f8] sm:$0xff]
  %v97 = vld [vmem:[%s1] sm:$0xff]
  %v98 = vld [vmem:[%s1 + $0x8] sm:$0xff]
  %v99 = vld [vmem:[%s1 + $0x10] sm:$0xff]
  %v100 = vld [vmem:[%s1 + $0x18] sm:$0xff]
  %v101 = vld [vmem:[%s1 + $0x20] sm:$0xff]
  %v102 = vld [vmem:[%s1 + $0x28] sm:$0xff]
  %v103 = vld [vmem:[%s1 + $0x30] sm:$0xff]
  %v104 = vld [vmem:[%s1 + $0x38] sm:$0xff]
  %v105 = vld [vmem:[%s1 + $0x40] sm:$0xff]
  %v106 = vld [vmem:[%s1 + $0x48] sm:$0xff]
  %v107 = vld [vmem:[%s1 + $0x50] sm:$0xff]
  %v108 = vld [vmem:[%s1 + $0x58] sm:$0xff]
  %v109 = vld [vmem:[%s1 + $0x60] sm:$0xff]
  %v110 = vld [vmem:[%s1 + $0x68] sm:$0xff]
  %v111 = vld [vmem:[%s1 + $0x70] sm:$0xff]
  %v112 = vld [vmem:[%s1 + $0x78] sm:$0xff]
  %v113 = vld [vmem:[%s1 + $0x80] sm:$0xff]
  %v114 = vld [vmem:[%s1 + $0x88] sm:$0xff]
  %v115 = vld [vmem:[%s1 + $0x90] sm:$0xff]
  %v116 = vld [vmem:[%s1 + $0x98] sm:$0xff]
  %v117 = vld [vmem:[%s1 + $0xa0] sm:$0xff]
  %v118 = vld [vmem:[%s1 + $0xa8] sm:$0xff]
  %v119 = vld [vmem:[%s1 + $0xb0] sm:$0xff]
  %v120 = vld [vmem:[%s1 + $0xb8] sm:$0xff]
  %v121 = vld [vmem:[%s1 + $0xc0] sm:$0xff]
  %v122 = vld [vmem:[%s1 + $0xc8] sm:$0xff]
  %v123 = vld [vmem:[%s1 + $0xd0] sm:$0xff]
  %v124 = vld [vmem:[%s1 + $0xd8] sm:$0xff]
  %v125 = vld [vmem:[%s1 + $0xe0] sm:$0xff]
  %v126 = vld [vmem:[%s1 + $0xe8] sm:$0xff]
  %v127 = vld [vmem:[%s1 + $0xf0] sm:$0xff]
  %v128 = vld [vmem:[%s1 + $0xf8] sm:$0xff]
  %v129 = vld [vmem:[%s1 + $0x100] sm:$0xff]
  %v130 = vld [vmem:[%s1 + $0x108] sm:$0xff]
  %v131 = vld [vmem:[%s1 + $0x110] sm:$0xff]
  %v132 = vld [vmem:[%s1 + $0x118] sm:$0xff]
  %v133 = vld [vmem:[%s1 + $0x120] sm:$0xff]
  %v134 = vld [vmem:[%s1 + $0x128] sm:$0xff]
  %v135 = vld [vmem:[%s1 + $0x130] sm:$0xff]
  %v136 = vld [vmem:[%s1 + $0x138] sm:$0xff]
  %v137 = vld [vmem:[%s1 + $0x140] sm:$0xff]
  %v138 = vld [vmem:[%s1 + $0x148] sm:$0xff]
  %v139 = vld [vmem:[%s1 + $0x150] sm:$0xff]
  %v140 = vld [vmem:[%s1 + $0x158] sm:$0xff]
  %v141 = vld [vmem:[%s1 + $0x160] sm:$0xff]
  %v142 = vld [vmem:[%s1 + $0x168] sm:$0xff]
  %v143 = vld [vmem:[%s1 + $0x170] sm:$0xff]
  %v144 = vld [vmem:[%s1 + $0x178] sm:$0xff]
  %v145 = vld [vmem:[%s1 + $0x180] sm:$0xff]
  %v146 = vld [vmem:[%s1 + $0x188] sm:$0xff]
  %v147 = vld [vmem:[%s1 + $0x190] sm:$0xff]
  %v148 = vld [vmem:[%s1 + $0x198] sm:$0xff]
  %v149 = vld [vmem:[%s1 + $0x1a0] sm:$0xff]
  %v150 = vld [vmem:[%s1 + $0x1a8] sm:$0xff]
  %v151 = vld [vmem:[%s1 + $0x1b0] sm:$0xff]
  %v152 = vld [vmem:[%s1 + $0x1b8] sm:$0xff]
  %v153 = vld [vmem:[%s1 + $0x1c0] sm:$0xff]
  %v154 = vld [vmem:[%s1 + $0x1c8] sm:$0xff]
  %v155 = vld [vmem:[%s1 + $0x1d0] sm:$0xff]
  %v156 = vld [vmem:[%s1 + $0x1d8] sm:$0xff]
  %v157 = vld [vmem:[%s1 + $0x1e0] sm:$0xff]
  %v158 = vld [vmem:[%s1 + $0x1e8] sm:$0xff]
  %v159 = vld [vmem:[%s1 + $0x1f0] sm:$0xff]
  %v160 = vld [vmem:[%s1 + $0x1f8] sm:$0xff]
  %s161 = scalar_lea.vmem %s1, 512
  %v162 = vld [vmem:[%s161] sm:$0xff]
  %v163 = vld [vmem:[%s161 + $0x8] sm:$0xff]
  %v164 = vld [vmem:[%s161 + $0x10] sm:$0xff]
  %v165 = vld [vmem:[%s161 + $0x18] sm:$0xff]
  %v166 = vld [vmem:[%s161 + $0x20] sm:$0xff]
  %v167 = vld [vmem:[%s161 + $0x28] sm:$0xff]
  %v168 = vld [vmem:[%s161 + $0x30] sm:$0xff]
  %v169 = vld [vmem:[%s161 + $0x38] sm:$0xff]
  %v170 = vld [vmem:[%s161 + $0x40] sm:$0xff]
  %v171 = vld [vmem:[%s161 + $0x48] sm:$0xff]
  %v172 = vld [vmem:[%s161 + $0x50] sm:$0xff]
  %v173 = vld [vmem:[%s161 + $0x58] sm:$0xff]
  %v174 = vld [vmem:[%s161 + $0x60] sm:$0xff]
  %v175 = vld [vmem:[%s161 + $0x68] sm:$0xff]
  %v176 = vld [vmem:[%s161 + $0x70] sm:$0xff]
  %v177 = vld [vmem:[%s161 + $0x78] sm:$0xff]
  %v178 = vld [vmem:[%s161 + $0x80] sm:$0xff]
  %v179 = vld [vmem:[%s161 + $0x88] sm:$0xff]
  %v180 = vld [vmem:[%s161 + $0x90] sm:$0xff]
  %v181 = vld [vmem:[%s161 + $0x98] sm:$0xff]
  %v182 = vld [vmem:[%s161 + $0xa0] sm:$0xff]
  %v183 = vld [vmem:[%s161 + $0xa8] sm:$0xff]
  %v184 = vld [vmem:[%s161 + $0xb0] sm:$0xff]
  %v185 = vld [vmem:[%s161 + $0xb8] sm:$0xff]
  %v186 = vld [vmem:[%s161 + $0xc0] sm:$0xff]
  %v187 = vld [vmem:[%s161 + $0xc8] sm:$0xff]
  %v188 = vld [vmem:[%s161 + $0xd0] sm:$0xff]
  %v189 = vld [vmem:[%s161 + $0xd8] sm:$0xff]
  %v190 = vld [vmem:[%s161 + $0xe0] sm:$0xff]
  %v191 = vld [vmem:[%s161 + $0xe8] sm:$0xff]
  %v192 = vld [vmem:[%s161 + $0xf0] sm:$0xff]
  %v193 = vld [vmem:[%s161 + $0xf8] sm:$0xff]
  %v194 = vld [vmem:[%s161 + $0x100] sm:$0xff]
  %v195 = vld [vmem:[%s161 + $0x108] sm:$0xff]
  %v196 = vld [vmem:[%s161 + $0x110] sm:$0xff]
  %v197 = vld [vmem:[%s161 + $0x118] sm:$0xff]
  %v198 = vld [vmem:[%s161 + $0x120] sm:$0xff]
  %v199 = vld [vmem:[%s161 + $0x128] sm:$0xff]
  %v200 = vld [vmem:[%s161 + $0x130] sm:$0xff]
  %v201 = vld [vmem:[%s161 + $0x138] sm:$0xff]
  %v202 = vld [vmem:[%s161 + $0x140] sm:$0xff]
  %v203 = vld [vmem:[%s161 + $0x148] sm:$0xff]
  %v204 = vld [vmem:[%s161 + $0x150] sm:$0xff]
  %v205 = vld [vmem:[%s161 + $0x158] sm:$0xff]
  %v206 = vld [vmem:[%s161 + $0x160] sm:$0xff]
  %v207 = vld [vmem:[%s161 + $0x168] sm:$0xff]
  %v208 = vld [vmem:[%s161 + $0x170] sm:$0xff]
  %v209 = vld [vmem:[%s161 + $0x178] sm:$0xff]
  %v210 = vld [vmem:[%s161 + $0x180] sm:$0xff]
  %v211 = vld [vmem:[%s161 + $0x188] sm:$0xff]
  %v212 = vld [vmem:[%s161 + $0x190] sm:$0xff]
  %v213 = vld [vmem:[%s161 + $0x198] sm:$0xff]
  %v214 = vld [vmem:[%s161 + $0x1a0] sm:$0xff]
  %v215 = vld [vmem:[%s161 + $0x1a8] sm:$0xff]
  %v216 = vld [vmem:[%s161 + $0x1b0] sm:$0xff]
  %v217 = vld [vmem:[%s161 + $0x1b8] sm:$0xff]
  %v218 = vld [vmem:[%s161 + $0x1c0] sm:$0xff]
  %v219 = vld [vmem:[%s161 + $0x1c8] sm:$0xff]
  %v220 = vld [vmem:[%s161 + $0x1d0] sm:$0xff]
  %v221 = vld [vmem:[%s161 + $0x1d8] sm:$0xff]
  %v222 = vld [vmem:[%s161 + $0x1e0] sm:$0xff]
  %v223 = vld [vmem:[%s161 + $0x1e8] sm:$0xff]
  %v224 = vld [vmem:[%s161 + $0x1f0] sm:$0xff]
  %v225 = vld [vmem:[%s161 + $0x1f8] sm:$0xff]
  %s226 = scalar_lea.vmem %s1, 1024
  %v227 = vld [vmem:[%s226] sm:$0xff]
  %v228 = vld [vmem:[%s226 + $0x8] sm:$0xff]
  %v229 = vld [vmem:[%s226 + $0x10] sm:$0xff]
  %v230 = vld [vmem:[%s226 + $0x18] sm:$0xff]
  %v231 = vld [vmem:[%s226 + $0x20] sm:$0xff]
  %v232 = vld [vmem:[%s226 + $0x28] sm:$0xff]
  %v233 = vld [vmem:[%s226 + $0x30] sm:$0xff]
  %v234 = vld [vmem:[%s226 + $0x38] sm:$0xff]
  %v235 = vld [vmem:[%s226 + $0x40] sm:$0xff]
  %v236 = vld [vmem:[%s226 + $0x48] sm:$0xff]
  %v237 = vld [vmem:[%s226 + $0x50] sm:$0xff]
  %v238 = vld [vmem:[%s226 + $0x58] sm:$0xff]
  %v239 = vld [vmem:[%s226 + $0x60] sm:$0xff]
  %v240 = vld [vmem:[%s226 + $0x68] sm:$0xff]
  %v241 = vld [vmem:[%s226 + $0x70] sm:$0xff]
  %v242 = vld [vmem:[%s226 + $0x78] sm:$0xff]
  %v243 = vld [vmem:[%s226 + $0x80] sm:$0xff]
  %v244 = vld [vmem:[%s226 + $0x88] sm:$0xff]
  %v245 = vld [vmem:[%s226 + $0x90] sm:$0xff]
  %v246 = vld [vmem:[%s226 + $0x98] sm:$0xff]
  %v247 = vld [vmem:[%s226 + $0xa0] sm:$0xff]
  %v248 = vld [vmem:[%s226 + $0xa8] sm:$0xff]
  %v249 = vld [vmem:[%s226 + $0xb0] sm:$0xff]
  %v250 = vld [vmem:[%s226 + $0xb8] sm:$0xff]
  %v251 = vld [vmem:[%s226 + $0xc0] sm:$0xff]
  %v252 = vld [vmem:[%s226 + $0xc8] sm:$0xff]
  %v253 = vld [vmem:[%s226 + $0xd0] sm:$0xff]
  %v254 = vld [vmem:[%s226 + $0xd8] sm:$0xff]
  %v255 = vld [vmem:[%s226 + $0xe0] sm:$0xff]
  %v256 = vld [vmem:[%s226 + $0xe8] sm:$0xff]
  %v257 = vld [vmem:[%s226 + $0xf0] sm:$0xff]
  %v258 = vld [vmem:[%s226 + $0xf8] sm:$0xff]
  %v259 = vld [vmem:[%s226 + $0x100] sm:$0xff]
  %v260 = vld [vmem:[%s226 + $0x108] sm:$0xff]
  %v261 = vld [vmem:[%s226 + $0x110] sm:$0xff]
  %v262 = vld [vmem:[%s226 + $0x118] sm:$0xff]
  %v263 = vld [vmem:[%s226 + $0x120] sm:$0xff]
  %v264 = vld [vmem:[%s226 + $0x128] sm:$0xff]
  %v265 = vld [vmem:[%s226 + $0x130] sm:$0xff]
  %v266 = vld [vmem:[%s226 + $0x138] sm:$0xff]
  %v267 = vld [vmem:[%s226 + $0x140] sm:$0xff]
  %v268 = vld [vmem:[%s226 + $0x148] sm:$0xff]
  %v269 = vld [vmem:[%s226 + $0x150] sm:$0xff]
  %v270 = vld [vmem:[%s226 + $0x158] sm:$0xff]
  %v271 = vld [vmem:[%s226 + $0x160] sm:$0xff]
  %v272 = vld [vmem:[%s226 + $0x168] sm:$0xff]
  %v273 = vld [vmem:[%s226 + $0x170] sm:$0xff]
  %v274 = vld [vmem:[%s226 + $0x178] sm:$0xff]
  %v275 = vld [vmem:[%s226 + $0x180] sm:$0xff]
  %v276 = vld [vmem:[%s226 + $0x188] sm:$0xff]
  %v277 = vld [vmem:[%s226 + $0x190] sm:$0xff]
  %v278 = vld [vmem:[%s226 + $0x198] sm:$0xff]
  %v279 = vld [vmem:[%s226 + $0x1a0] sm:$0xff]
  %v280 = vld [vmem:[%s226 + $0x1a8] sm:$0xff]
  %v281 = vld [vmem:[%s226 + $0x1b0] sm:$0xff]
  %v282 = vld [vmem:[%s226 + $0x1b8] sm:$0xff]
  %v283 = vld [vmem:[%s226 + $0x1c0] sm:$0xff]
  %v284 = vld [vmem:[%s226 + $0x1c8] sm:$0xff]
  %v285 = vld [vmem:[%s226 + $0x1d0] sm:$0xff]
  %v286 = vld [vmem:[%s226 + $0x1d8] sm:$0xff]
  %v287 = vld [vmem:[%s226 + $0x1e0] sm:$0xff]
  %v288 = vld [vmem:[%s226 + $0x1e8] sm:$0xff]
  %v289 = vld [vmem:[%s226 + $0x1f0] sm:$0xff]
  %v290 = vld [vmem:[%s226 + $0x1f8] sm:$0xff]
  %s291 = scalar_lea.vmem %s1, 1536
  %v292 = vld [vmem:[%s291] sm:$0xff]
  %v293 = vld [vmem:[%s291 + $0x8] sm:$0xff]
  %v294 = vld [vmem:[%s291 + $0x10] sm:$0xff]
  %v295 = vld [vmem:[%s291 + $0x18] sm:$0xff]
  %v296 = vld [vmem:[%s291 + $0x20] sm:$0xff]
  %v297 = vld [vmem:[%s291 + $0x28] sm:$0xff]
  %v298 = vld [vmem:[%s291 + $0x30] sm:$0xff]
  %v299 = vld [vmem:[%s291 + $0x38] sm:$0xff]
  %v300 = vld [vmem:[%s291 + $0x40] sm:$0xff]
  %v301 = vld [vmem:[%s291 + $0x48] sm:$0xff]
  %v302 = vld [vmem:[%s291 + $0x50] sm:$0xff]
  %v303 = vld [vmem:[%s291 + $0x58] sm:$0xff]
  %v304 = vld [vmem:[%s291 + $0x60] sm:$0xff]
  %v305 = vld [vmem:[%s291 + $0x68] sm:$0xff]
  %v306 = vld [vmem:[%s291 + $0x70] sm:$0xff]
  %v307 = vld [vmem:[%s291 + $0x78] sm:$0xff]
  %v308 = vld [vmem:[%s291 + $0x80] sm:$0xff]
  %v309 = vld [vmem:[%s291 + $0x88] sm:$0xff]
  %v310 = vld [vmem:[%s291 + $0x90] sm:$0xff]
  %v311 = vld [vmem:[%s291 + $0x98] sm:$0xff]
  %v312 = vld [vmem:[%s291 + $0xa0] sm:$0xff]
  %v313 = vld [vmem:[%s291 + $0xa8] sm:$0xff]
  %v314 = vld [vmem:[%s291 + $0xb0] sm:$0xff]
  %v315 = vld [vmem:[%s291 + $0xb8] sm:$0xff]
  %v316 = vld [vmem:[%s291 + $0xc0] sm:$0xff]
  %v317 = vld [vmem:[%s291 + $0xc8] sm:$0xff]
  %v318 = vld [vmem:[%s291 + $0xd0] sm:$0xff]
  %v319 = vld [vmem:[%s291 + $0xd8] sm:$0xff]
  %v320 = vld [vmem:[%s291 + $0xe0] sm:$0xff]
  %v321 = vld [vmem:[%s291 + $0xe8] sm:$0xff]
  %v322 = vld [vmem:[%s291 + $0xf0] sm:$0xff]
  %v323 = vld [vmem:[%s291 + $0xf8] sm:$0xff]
  %v324 = vld [vmem:[%s291 + $0x100] sm:$0xff]
  %v325 = vld [vmem:[%s291 + $0x108] sm:$0xff]
  %v326 = vld [vmem:[%s291 + $0x110] sm:$0xff]
  %v327 = vld [vmem:[%s291 + $0x118] sm:$0xff]
  %v328 = vld [vmem:[%s291 + $0x120] sm:$0xff]
  %v329 = vld [vmem:[%s291 + $0x128] sm:$0xff]
  %v330 = vld [vmem:[%s291 + $0x130] sm:$0xff]
  %v331 = vld [vmem:[%s291 + $0x138] sm:$0xff]
  %v332 = vld [vmem:[%s291 + $0x140] sm:$0xff]
  %v333 = vld [vmem:[%s291 + $0x148] sm:$0xff]
  %v334 = vld [vmem:[%s291 + $0x150] sm:$0xff]
  %v335 = vld [vmem:[%s291 + $0x158] sm:$0xff]
  %v336 = vld [vmem:[%s291 + $0x160] sm:$0xff]
  %v337 = vld [vmem:[%s291 + $0x168] sm:$0xff]
  %v338 = vld [vmem:[%s291 + $0x170] sm:$0xff]
  %v339 = vld [vmem:[%s291 + $0x178] sm:$0xff]
  %v340 = vld [vmem:[%s291 + $0x180] sm:$0xff]
  %v341 = vld [vmem:[%s291 + $0x188] sm:$0xff]
  %v342 = vld [vmem:[%s291 + $0x190] sm:$0xff]
  %v343 = vld [vmem:[%s291 + $0x198] sm:$0xff]
  %v344 = vld [vmem:[%s291 + $0x1a0] sm:$0xff]
  %v345 = vld [vmem:[%s291 + $0x1a8] sm:$0xff]
  %v346 = vld [vmem:[%s291 + $0x1b0] sm:$0xff]
  %v347 = vld [vmem:[%s291 + $0x1b8] sm:$0xff]
  %v348 = vld [vmem:[%s291 + $0x1c0] sm:$0xff]
  %v349 = vld [vmem:[%s291 + $0x1c8] sm:$0xff]
  %v350 = vld [vmem:[%s291 + $0x1d0] sm:$0xff]
  %v351 = vld [vmem:[%s291 + $0x1d8] sm:$0xff]
  %v352 = vld [vmem:[%s291 + $0x1e0] sm:$0xff]
  %v353 = vld [vmem:[%s291 + $0x1e8] sm:$0xff]
  %v354 = vld [vmem:[%s291 + $0x1f0] sm:$0xff]
  %v355 = vld [vmem:[%s291 + $0x1f8] sm:$0xff]
  %420 = vrot.lane.b32.xlu0 %v97, 4
  %v421 = vpop.permute.xlu0 %420
  %422 = vrot.lane.b32.xlu0 %v98, 4
  %v423 = vpop.permute.xlu0 %422
  %424 = vrot.lane.b32.xlu0 %v99, 4
  %v425 = vpop.permute.xlu0 %424
  %426 = vrot.lane.b32.xlu0 %v100, 4
  %v427 = vpop.permute.xlu0 %426
  %428 = vrot.lane.b32.xlu0 %v101, 4
  %v429 = vpop.permute.xlu0 %428
  %430 = vrot.lane.b32.xlu0 %v102, 4
  %v431 = vpop.permute.xlu0 %430
  %432 = vrot.lane.b32.xlu0 %v103, 4
  %v433 = vpop.permute.xlu0 %432
  %434 = vrot.lane.b32.xlu0 %v104, 4
  %v435 = vpop.permute.xlu0 %434
  %436 = vrot.lane.b32.xlu0 %v105, 4
  %v437 = vpop.permute.xlu0 %436
  %438 = vrot.lane.b32.xlu0 %v106, 4
  %v439 = vpop.permute.xlu0 %438
  %440 = vrot.lane.b32.xlu0 %v107, 4
  %v441 = vpop.permute.xlu0 %440
  %442 = vrot.lane.b32.xlu0 %v108, 4
  %v443 = vpop.permute.xlu0 %442
  %444 = vrot.lane.b32.xlu0 %v109, 4
  %v445 = vpop.permute.xlu0 %444
  %446 = vrot.lane.b32.xlu0 %v110, 4
  %v447 = vpop.permute.xlu0 %446
  %448 = vrot.lane.b32.xlu0 %v111, 4
  %v449 = vpop.permute.xlu0 %448
  %450 = vrot.lane.b32.xlu0 %v112, 4
  %v451 = vpop.permute.xlu0 %450
  %452 = vrot.lane.b32.xlu0 %v113, 4
  %v453 = vpop.permute.xlu0 %452
  %454 = vrot.lane.b32.xlu0 %v114, 4
  %v455 = vpop.permute.xlu0 %454
  %456 = vrot.lane.b32.xlu0 %v115, 4
  %v457 = vpop.permute.xlu0 %456
  %458 = vrot.lane.b32.xlu0 %v116, 4
  %v459 = vpop.permute.xlu0 %458
  %460 = vrot.lane.b32.xlu0 %v117, 4
  %v461 = vpop.permute.xlu0 %460
  %462 = vrot.lane.b32.xlu0 %v118, 4
  %v463 = vpop.permute.xlu0 %462
  %464 = vrot.lane.b32.xlu0 %v119, 4
  %v465 = vpop.permute.xlu0 %464
  %466 = vrot.lane.b32.xlu0 %v120, 4
  %v467 = vpop.permute.xlu0 %466
  %468 = vrot.lane.b32.xlu0 %v121, 4
  %v469 = vpop.permute.xlu0 %468
  %470 = vrot.lane.b32.xlu0 %v122, 4
  %v471 = vpop.permute.xlu0 %470
  %472 = vrot.lane.b32.xlu0 %v123, 4
  %v473 = vpop.permute.xlu0 %472
  %474 = vrot.lane.b32.xlu0 %v124, 4
  %v475 = vpop.permute.xlu0 %474
  %476 = vrot.lane.b32.xlu0 %v125, 4
  %v477 = vpop.permute.xlu0 %476
  %478 = vrot.lane.b32.xlu0 %v126, 4
  %v479 = vpop.permute.xlu0 %478
  %480 = vrot.lane.b32.xlu0 %v127, 4
  %v481 = vpop.permute.xlu0 %480
  %482 = vrot.lane.b32.xlu0 %v128, 4
  %v483 = vpop.permute.xlu0 %482
  %484 = vrot.lane.b32.xlu0 %v129, 4
  %v485 = vpop.permute.xlu0 %484
  %486 = vrot.lane.b32.xlu0 %v130, 4
  %v487 = vpop.permute.xlu0 %486
  %488 = vrot.lane.b32.xlu0 %v131, 4
  %v489 = vpop.permute.xlu0 %488
  %490 = vrot.lane.b32.xlu0 %v132, 4
  %v491 = vpop.permute.xlu0 %490
  %492 = vrot.lane.b32.xlu0 %v133, 4
  %v493 = vpop.permute.xlu0 %492
  %494 = vrot.lane.b32.xlu0 %v134, 4
  %v495 = vpop.permute.xlu0 %494
  %496 = vrot.lane.b32.xlu0 %v135, 4
  %v497 = vpop.permute.xlu0 %496
  %498 = vrot.lane.b32.xlu0 %v136, 4
  %v499 = vpop.permute.xlu0 %498
  %500 = vrot.lane.b32.xlu0 %v137, 4
  %v501 = vpop.permute.xlu0 %500
  %502 = vrot.lane.b32.xlu0 %v138, 4
  %v503 = vpop.permute.xlu0 %502
  %504 = vrot.lane.b32.xlu0 %v139, 4
  %v505 = vpop.permute.xlu0 %504
  %506 = vrot.lane.b32.xlu0 %v140, 4
  %v507 = vpop.permute.xlu0 %506
  %508 = vrot.lane.b32.xlu0 %v141, 4
  %v509 = vpop.permute.xlu0 %508
  %510 = vrot.lane.b32.xlu0 %v142, 4
  %v511 = vpop.permute.xlu0 %510
  %512 = vrot.lane.b32.xlu0 %v143, 4
  %v513 = vpop.permute.xlu0 %512
  %514 = vrot.lane.b32.xlu0 %v144, 4
  %v515 = vpop.permute.xlu0 %514
  %516 = vrot.lane.b32.xlu0 %v145, 4
  %v517 = vpop.permute.xlu0 %516
  %518 = vrot.lane.b32.xlu0 %v146, 4
  %v519 = vpop.permute.xlu0 %518
  %520 = vrot.lane.b32.xlu0 %v147, 4
  %v521 = vpop.permute.xlu0 %520
  %522 = vrot.lane.b32.xlu0 %v148, 4
  %v523 = vpop.permute.xlu0 %522
  %524 = vrot.lane.b32.xlu0 %v149, 4
  %v525 = vpop.permute.xlu0 %524
  %526 = vrot.lane.b32.xlu0 %v150, 4
  %v527 = vpop.permute.xlu0 %526
  %528 = vrot.lane.b32.xlu0 %v151, 4
  %v529 = vpop.permute.xlu0 %528
  %530 = vrot.lane.b32.xlu0 %v152, 4
  %v531 = vpop.permute.xlu0 %530
  %532 = vrot.lane.b32.xlu0 %v153, 4
  %v533 = vpop.permute.xlu0 %532
  %534 = vrot.lane.b32.xlu0 %v154, 4
  %v535 = vpop.permute.xlu0 %534
  %536 = vrot.lane.b32.xlu0 %v155, 4
  %v537 = vpop.permute.xlu0 %536
  %538 = vrot.lane.b32.xlu0 %v156, 4
  %v539 = vpop.permute.xlu0 %538
  %540 = vrot.lane.b32.xlu0 %v157, 4
  %v541 = vpop.permute.xlu0 %540
  %542 = vrot.lane.b32.xlu0 %v158, 4
  %v543 = vpop.permute.xlu0 %542
  %544 = vrot.lane.b32.xlu0 %v159, 4
  %v545 = vpop.permute.xlu0 %544
  %546 = vrot.lane.b32.xlu0 %v160, 4
  %v547 = vpop.permute.xlu0 %546
  %676 = vrot.lane.b32.xlu0 %v162, 8
  %v677 = vpop.permute.xlu0 %676
  %678 = vrot.lane.b32.xlu0 %v163, 8
  %v679 = vpop.permute.xlu0 %678
  %680 = vrot.lane.b32.xlu0 %v164, 8
  %v681 = vpop.permute.xlu0 %680
  %682 = vrot.lane.b32.xlu0 %v165, 8
  %v683 = vpop.permute.xlu0 %682
  %684 = vrot.lane.b32.xlu0 %v166, 8
  %v685 = vpop.permute.xlu0 %684
  %686 = vrot.lane.b32.xlu0 %v167, 8
  %v687 = vpop.permute.xlu0 %686
  %688 = vrot.lane.b32.xlu0 %v168, 8
  %v689 = vpop.permute.xlu0 %688
  %690 = vrot.lane.b32.xlu0 %v169, 8
  %v691 = vpop.permute.xlu0 %690
  %692 = vrot.lane.b32.xlu0 %v170, 8
  %v693 = vpop.permute.xlu0 %692
  %694 = vrot.lane.b32.xlu0 %v171, 8
  %v695 = vpop.permute.xlu0 %694
  %696 = vrot.lane.b32.xlu0 %v172, 8
  %v697 = vpop.permute.xlu0 %696
  %698 = vrot.lane.b32.xlu0 %v173, 8
  %v699 = vpop.permute.xlu0 %698
  %700 = vrot.lane.b32.xlu0 %v174, 8
  %v701 = vpop.permute.xlu0 %700
  %702 = vrot.lane.b32.xlu0 %v175, 8
  %v703 = vpop.permute.xlu0 %702
  %704 = vrot.lane.b32.xlu0 %v176, 8
  %v705 = vpop.permute.xlu0 %704
  %706 = vrot.lane.b32.xlu0 %v177, 8
  %v707 = vpop.permute.xlu0 %706
  %708 = vrot.lane.b32.xlu0 %v178, 8
  %v709 = vpop.permute.xlu0 %708
  %710 = vrot.lane.b32.xlu0 %v179, 8
  %v711 = vpop.permute.xlu0 %710
  %712 = vrot.lane.b32.xlu0 %v180, 8
  %v713 = vpop.permute.xlu0 %712
  %714 = vrot.lane.b32.xlu0 %v181, 8
  %v715 = vpop.permute.xlu0 %714
  %716 = vrot.lane.b32.xlu0 %v182, 8
  %v717 = vpop.permute.xlu0 %716
  %718 = vrot.lane.b32.xlu0 %v183, 8
  %v719 = vpop.permute.xlu0 %718
  %720 = vrot.lane.b32.xlu0 %v184, 8
  %v721 = vpop.permute.xlu0 %720
  %722 = vrot.lane.b32.xlu0 %v185, 8
  %v723 = vpop.permute.xlu0 %722
  %724 = vrot.lane.b32.xlu0 %v186, 8
  %v725 = vpop.permute.xlu0 %724
  %726 = vrot.lane.b32.xlu0 %v187, 8
  %v727 = vpop.permute.xlu0 %726
  %728 = vrot.lane.b32.xlu0 %v188, 8
  %v729 = vpop.permute.xlu0 %728
  %730 = vrot.lane.b32.xlu0 %v189, 8
  %v731 = vpop.permute.xlu0 %730
  %732 = vrot.lane.b32.xlu0 %v190, 8
  %v733 = vpop.permute.xlu0 %732
  %734 = vrot.lane.b32.xlu0 %v191, 8
  %v735 = vpop.permute.xlu0 %734
  %736 = vrot.lane.b32.xlu0 %v192, 8
  %v737 = vpop.permute.xlu0 %736
  %738 = vrot.lane.b32.xlu0 %v193, 8
  %v739 = vpop.permute.xlu0 %738
  %740 = vrot.lane.b32.xlu0 %v194, 8
  %v741 = vpop.permute.xlu0 %740
  %742 = vrot.lane.b32.xlu0 %v195, 8
  %v743 = vpop.permute.xlu0 %742
  %744 = vrot.lane.b32.xlu0 %v196, 8
  %v745 = vpop.permute.xlu0 %744
  %746 = vrot.lane.b32.xlu0 %v197, 8
  %v747 = vpop.permute.xlu0 %746
  %748 = vrot.lane.b32.xlu0 %v198, 8
  %v749 = vpop.permute.xlu0 %748
  %750 = vrot.lane.b32.xlu0 %v199, 8
  %v751 = vpop.permute.xlu0 %750
  %752 = vrot.lane.b32.xlu0 %v200, 8
  %v753 = vpop.permute.xlu0 %752
  %754 = vrot.lane.b32.xlu0 %v201, 8
  %v755 = vpop.permute.xlu0 %754
  %756 = vrot.lane.b32.xlu0 %v202, 8
  %v757 = vpop.permute.xlu0 %756
  %758 = vrot.lane.b32.xlu0 %v203, 8
  %v759 = vpop.permute.xlu0 %758
  %760 = vrot.lane.b32.xlu0 %v204, 8
  %v761 = vpop.permute.xlu0 %760
  %762 = vrot.lane.b32.xlu0 %v205, 8
  %v763 = vpop.permute.xlu0 %762
  %764 = vrot.lane.b32.xlu0 %v206, 8
  %v765 = vpop.permute.xlu0 %764
  %766 = vrot.lane.b32.xlu0 %v207, 8
  %v767 = vpop.permute.xlu0 %766
  %768 = vrot.lane.b32.xlu0 %v208, 8
  %v769 = vpop.permute.xlu0 %768
  %770 = vrot.lane.b32.xlu0 %v209, 8
  %v771 = vpop.permute.xlu0 %770
  %772 = vrot.lane.b32.xlu0 %v210, 8
  %v773 = vpop.permute.xlu0 %772
  %774 = vrot.lane.b32.xlu0 %v211, 8
  %v775 = vpop.permute.xlu0 %774
  %776 = vrot.lane.b32.xlu0 %v212, 8
  %v777 = vpop.permute.xlu0 %776
  %778 = vrot.lane.b32.xlu0 %v213, 8
  %v779 = vpop.permute.xlu0 %778
  %780 = vrot.lane.b32.xlu0 %v214, 8
  %v781 = vpop.permute.xlu0 %780
  %782 = vrot.lane.b32.xlu0 %v215, 8
  %v783 = vpop.permute.xlu0 %782
  %784 = vrot.lane.b32.xlu0 %v216, 8
  %v785 = vpop.permute.xlu0 %784
  %786 = vrot.lane.b32.xlu0 %v217, 8
  %v787 = vpop.permute.xlu0 %786
  %788 = vrot.lane.b32.xlu0 %v218, 8
  %v789 = vpop.permute.xlu0 %788
  %790 = vrot.lane.b32.xlu0 %v219, 8
  %v791 = vpop.permute.xlu0 %790
  %792 = vrot.lane.b32.xlu0 %v220, 8
  %v793 = vpop.permute.xlu0 %792
  %794 = vrot.lane.b32.xlu0 %v221, 8
  %v795 = vpop.permute.xlu0 %794
  %796 = vrot.lane.b32.xlu0 %v222, 8
  %v797 = vpop.permute.xlu0 %796
  %798 = vrot.lane.b32.xlu0 %v223, 8
  %v799 = vpop.permute.xlu0 %798
  %800 = vrot.lane.b32.xlu0 %v224, 8
  %v801 = vpop.permute.xlu0 %800
  %802 = vrot.lane.b32.xlu0 %v225, 8
  %v803 = vpop.permute.xlu0 %802
  %932 = vrot.lane.b32.xlu0 %v227, 12
  %v933 = vpop.permute.xlu0 %932
  %934 = vrot.lane.b32.xlu0 %v228, 12
  %v935 = vpop.permute.xlu0 %934
  %936 = vrot.lane.b32.xlu0 %v229, 12
  %v937 = vpop.permute.xlu0 %936
  %938 = vrot.lane.b32.xlu0 %v230, 12
  %v939 = vpop.permute.xlu0 %938
  %940 = vrot.lane.b32.xlu0 %v231, 12
  %v941 = vpop.permute.xlu0 %940
  %942 = vrot.lane.b32.xlu0 %v232, 12
  %v943 = vpop.permute.xlu0 %942
  %944 = vrot.lane.b32.xlu0 %v233, 12
  %v945 = vpop.permute.xlu0 %944
  %946 = vrot.lane.b32.xlu0 %v234, 12
  %v947 = vpop.permute.xlu0 %946
  %948 = vrot.lane.b32.xlu0 %v235, 12
  %v949 = vpop.permute.xlu0 %948
  %950 = vrot.lane.b32.xlu0 %v236, 12
  %v951 = vpop.permute.xlu0 %950
  %952 = vrot.lane.b32.xlu0 %v237, 12
  %v953 = vpop.permute.xlu0 %952
  %954 = vrot.lane.b32.xlu0 %v238, 12
  %v955 = vpop.permute.xlu0 %954
  %956 = vrot.lane.b32.xlu0 %v239, 12
  %v957 = vpop.permute.xlu0 %956
  %958 = vrot.lane.b32.xlu0 %v240, 12
  %v959 = vpop.permute.xlu0 %958
  %960 = vrot.lane.b32.xlu0 %v241, 12
  %v961 = vpop.permute.xlu0 %960
  %962 = vrot.lane.b32.xlu0 %v242, 12
  %v963 = vpop.permute.xlu0 %962
  %964 = vrot.lane.b32.xlu0 %v243, 12
  %v965 = vpop.permute.xlu0 %964
  %966 = vrot.lane.b32.xlu0 %v244, 12
  %v967 = vpop.permute.xlu0 %966
  %968 = vrot.lane.b32.xlu0 %v245, 12
  %v969 = vpop.permute.xlu0 %968
  %970 = vrot.lane.b32.xlu0 %v246, 12
  %v971 = vpop.permute.xlu0 %970
  %972 = vrot.lane.b32.xlu0 %v247, 12
  %v973 = vpop.permute.xlu0 %972
  %974 = vrot.lane.b32.xlu0 %v248, 12
  %v975 = vpop.permute.xlu0 %974
  %976 = vrot.lane.b32.xlu0 %v249, 12
  %v977 = vpop.permute.xlu0 %976
  %978 = vrot.lane.b32.xlu0 %v250, 12
  %v979 = vpop.permute.xlu0 %978
  %980 = vrot.lane.b32.xlu0 %v251, 12
  %v981 = vpop.permute.xlu0 %980
  %982 = vrot.lane.b32.xlu0 %v252, 12
  %v983 = vpop.permute.xlu0 %982
  %984 = vrot.lane.b32.xlu0 %v253, 12
  %v985 = vpop.permute.xlu0 %984
  %986 = vrot.lane.b32.xlu0 %v254, 12
  %v987 = vpop.permute.xlu0 %986
  %988 = vrot.lane.b32.xlu0 %v255, 12
  %v989 = vpop.permute.xlu0 %988
  %990 = vrot.lane.b32.xlu0 %v256, 12
  %v991 = vpop.permute.xlu0 %990
  %992 = vrot.lane.b32.xlu0 %v257, 12
  %v993 = vpop.permute.xlu0 %992
  %994 = vrot.lane.b32.xlu0 %v258, 12
  %v995 = vpop.permute.xlu0 %994
  %996 = vrot.lane.b32.xlu0 %v259, 12
  %v997 = vpop.permute.xlu0 %996
  %998 = vrot.lane.b32.xlu0 %v260, 12
  %v999 = vpop.permute.xlu0 %998
  %1000 = vrot.lane.b32.xlu0 %v261, 12
  %v1001 = vpop.permute.xlu0 %1000
  %1002 = vrot.lane.b32.xlu0 %v262, 12
  %v1003 = vpop.permute.xlu0 %1002
  %1004 = vrot.lane.b32.xlu0 %v263, 12
  %v1005 = vpop.permute.xlu0 %1004
  %1006 = vrot.lane.b32.xlu0 %v264, 12
  %v1007 = vpop.permute.xlu0 %1006
  %1008 = vrot.lane.b32.xlu0 %v265, 12
  %v1009 = vpop.permute.xlu0 %1008
  %1010 = vrot.lane.b32.xlu0 %v266, 12
  %v1011 = vpop.permute.xlu0 %1010
  %1012 = vrot.lane.b32.xlu0 %v267, 12
  %v1013 = vpop.permute.xlu0 %1012
  %1014 = vrot.lane.b32.xlu0 %v268, 12
  %v1015 = vpop.permute.xlu0 %1014
  %1016 = vrot.lane.b32.xlu0 %v269, 12
  %v1017 = vpop.permute.xlu0 %1016
  %1018 = vrot.lane.b32.xlu0 %v270, 12
  %v1019 = vpop.permute.xlu0 %1018
  %1020 = vrot.lane.b32.xlu0 %v271, 12
  %v1021 = vpop.permute.xlu0 %1020
  %1022 = vrot.lane.b32.xlu0 %v272, 12
  %v1023 = vpop.permute.xlu0 %1022
  %1024 = vrot.lane.b32.xlu0 %v273, 12
  %v1025 = vpop.permute.xlu0 %1024
  %1026 = vrot.lane.b32.xlu0 %v274, 12
  %v1027 = vpop.permute.xlu0 %1026
  %1028 = vrot.lane.b32.xlu0 %v275, 12
  %v1029 = vpop.permute.xlu0 %1028
  %1030 = vrot.lane.b32.xlu0 %v276, 12
  %v1031 = vpop.permute.xlu0 %1030
  %1032 = vrot.lane.b32.xlu0 %v277, 12
  %v1033 = vpop.permute.xlu0 %1032
  %1034 = vrot.lane.b32.xlu0 %v278, 12
  %v1035 = vpop.permute.xlu0 %1034
  %1036 = vrot.lane.b32.xlu0 %v279, 12
  %v1037 = vpop.permute.xlu0 %1036
  %1038 = vrot.lane.b32.xlu0 %v280, 12
  %v1039 = vpop.permute.xlu0 %1038
  %1040 = vrot.lane.b32.xlu0 %v281, 12
  %v1041 = vpop.permute.xlu0 %1040
  %1042 = vrot.lane.b32.xlu0 %v282, 12
  %v1043 = vpop.permute.xlu0 %1042
  %1044 = vrot.lane.b32.xlu0 %v283, 12
  %v1045 = vpop.permute.xlu0 %1044
  %1046 = vrot.lane.b32.xlu0 %v284, 12
  %v1047 = vpop.permute.xlu0 %1046
  %1048 = vrot.lane.b32.xlu0 %v285, 12
  %v1049 = vpop.permute.xlu0 %1048
  %1050 = vrot.lane.b32.xlu0 %v286, 12
  %v1051 = vpop.permute.xlu0 %1050
  %1052 = vrot.lane.b32.xlu0 %v287, 12
  %v1053 = vpop.permute.xlu0 %1052
  %1054 = vrot.lane.b32.xlu0 %v288, 12
  %v1055 = vpop.permute.xlu0 %1054
  %1056 = vrot.lane.b32.xlu0 %v289, 12
  %v1057 = vpop.permute.xlu0 %1056
  %1058 = vrot.lane.b32.xlu0 %v290, 12
  %v1059 = vpop.permute.xlu0 %1058
  %1188 = vrot.lane.b32.xlu0 %v292, 16
  %v1189 = vpop.permute.xlu0 %1188
  %1190 = vrot.lane.b32.xlu0 %v293, 16
  %v1191 = vpop.permute.xlu0 %1190
  %1192 = vrot.lane.b32.xlu0 %v294, 16
  %v1193 = vpop.permute.xlu0 %1192
  %1194 = vrot.lane.b32.xlu0 %v295, 16
  %v1195 = vpop.permute.xlu0 %1194
  %1196 = vrot.lane.b32.xlu0 %v296, 16
  %v1197 = vpop.permute.xlu0 %1196
  %1198 = vrot.lane.b32.xlu0 %v297, 16
  %v1199 = vpop.permute.xlu0 %1198
  %1200 = vrot.lane.b32.xlu0 %v298, 16
  %v1201 = vpop.permute.xlu0 %1200
  %1202 = vrot.lane.b32.xlu0 %v299, 16
  %v1203 = vpop.permute.xlu0 %1202
  %1204 = vrot.lane.b32.xlu0 %v300, 16
  %v1205 = vpop.permute.xlu0 %1204
  %1206 = vrot.lane.b32.xlu0 %v301, 16
  %v1207 = vpop.permute.xlu0 %1206
  %1208 = vrot.lane.b32.xlu0 %v302, 16
  %v1209 = vpop.permute.xlu0 %1208
  %1210 = vrot.lane.b32.xlu0 %v303, 16
  %v1211 = vpop.permute.xlu0 %1210
  %1212 = vrot.lane.b32.xlu0 %v304, 16
  %v1213 = vpop.permute.xlu0 %1212
  %1214 = vrot.lane.b32.xlu0 %v305, 16
  %v1215 = vpop.permute.xlu0 %1214
  %1216 = vrot.lane.b32.xlu0 %v306, 16
  %v1217 = vpop.permute.xlu0 %1216
  %1218 = vrot.lane.b32.xlu0 %v307, 16
  %v1219 = vpop.permute.xlu0 %1218
  %1220 = vrot.lane.b32.xlu0 %v308, 16
  %v1221 = vpop.permute.xlu0 %1220
  %1222 = vrot.lane.b32.xlu0 %v309, 16
  %v1223 = vpop.permute.xlu0 %1222
  %1224 = vrot.lane.b32.xlu0 %v310, 16
  %v1225 = vpop.permute.xlu0 %1224
  %1226 = vrot.lane.b32.xlu0 %v311, 16
  %v1227 = vpop.permute.xlu0 %1226
  %1228 = vrot.lane.b32.xlu0 %v312, 16
  %v1229 = vpop.permute.xlu0 %1228
  %1230 = vrot.lane.b32.xlu0 %v313, 16
  %v1231 = vpop.permute.xlu0 %1230
  %1232 = vrot.lane.b32.xlu0 %v314, 16
  %v1233 = vpop.permute.xlu0 %1232
  %1234 = vrot.lane.b32.xlu0 %v315, 16
  %v1235 = vpop.permute.xlu0 %1234
  %1236 = vrot.lane.b32.xlu0 %v316, 16
  %v1237 = vpop.permute.xlu0 %1236
  %1238 = vrot.lane.b32.xlu0 %v317, 16
  %v1239 = vpop.permute.xlu0 %1238
  %1240 = vrot.lane.b32.xlu0 %v318, 16
  %v1241 = vpop.permute.xlu0 %1240
  %1242 = vrot.lane.b32.xlu0 %v319, 16
  %v1243 = vpop.permute.xlu0 %1242
  %1244 = vrot.lane.b32.xlu0 %v320, 16
  %v1245 = vpop.permute.xlu0 %1244
  %1246 = vrot.lane.b32.xlu0 %v321, 16
  %v1247 = vpop.permute.xlu0 %1246
  %1248 = vrot.lane.b32.xlu0 %v322, 16
  %v1249 = vpop.permute.xlu0 %1248
  %1250 = vrot.lane.b32.xlu0 %v323, 16
  %v1251 = vpop.permute.xlu0 %1250
  %1252 = vrot.lane.b32.xlu0 %v324, 16
  %v1253 = vpop.permute.xlu0 %1252
  %1254 = vrot.lane.b32.xlu0 %v325, 16
  %v1255 = vpop.permute.xlu0 %1254
  %1256 = vrot.lane.b32.xlu0 %v326, 16
  %v1257 = vpop.permute.xlu0 %1256
  %1258 = vrot.lane.b32.xlu0 %v327, 16
  %v1259 = vpop.permute.xlu0 %1258
  %1260 = vrot.lane.b32.xlu0 %v328, 16
  %v1261 = vpop.permute.xlu0 %1260
  %1262 = vrot.lane.b32.xlu0 %v329, 16
  %v1263 = vpop.permute.xlu0 %1262
  %1264 = vrot.lane.b32.xlu0 %v330, 16
  %v1265 = vpop.permute.xlu0 %1264
  %1266 = vrot.lane.b32.xlu0 %v331, 16
  %v1267 = vpop.permute.xlu0 %1266
  %1268 = vrot.lane.b32.xlu0 %v332, 16
  %v1269 = vpop.permute.xlu0 %1268
  %1270 = vrot.lane.b32.xlu0 %v333, 16
  %v1271 = vpop.permute.xlu0 %1270
  %1272 = vrot.lane.b32.xlu0 %v334, 16
  %v1273 = vpop.permute.xlu0 %1272
  %1274 = vrot.lane.b32.xlu0 %v335, 16
  %v1275 = vpop.permute.xlu0 %1274
  %1276 = vrot.lane.b32.xlu0 %v336, 16
  %v1277 = vpop.permute.xlu0 %1276
  %1278 = vrot.lane.b32.xlu0 %v337, 16
  %v1279 = vpop.permute.xlu0 %1278
  %1280 = vrot.lane.b32.xlu0 %v338, 16
  %v1281 = vpop.permute.xlu0 %1280
  %1282 = vrot.lane.b32.xlu0 %v339, 16
  %v1283 = vpop.permute.xlu0 %1282
  %1284 = vrot.lane.b32.xlu0 %v340, 16
  %v1285 = vpop.permute.xlu0 %1284
  %1286 = vrot.lane.b32.xlu0 %v341, 16
  %v1287 = vpop.permute.xlu0 %1286
  %1288 = vrot.lane.b32.xlu0 %v342, 16
  %v1289 = vpop.permute.xlu0 %1288
  %1290 = vrot.lane.b32.xlu0 %v343, 16
  %v1291 = vpop.permute.xlu0 %1290
  %1292 = vrot.lane.b32.xlu0 %v344, 16
  %v1293 = vpop.permute.xlu0 %1292
  %1294 = vrot.lane.b32.xlu0 %v345, 16
  %v1295 = vpop.permute.xlu0 %1294
  %1296 = vrot.lane.b32.xlu0 %v346, 16
  %v1297 = vpop.permute.xlu0 %1296
  %1298 = vrot.lane.b32.xlu0 %v347, 16
  %v1299 = vpop.permute.xlu0 %1298
  %1300 = vrot.lane.b32.xlu0 %v348, 16
  %v1301 = vpop.permute.xlu0 %1300
  %1302 = vrot.lane.b32.xlu0 %v349, 16
  %v1303 = vpop.permute.xlu0 %1302
  %1304 = vrot.lane.b32.xlu0 %v350, 16
  %v1305 = vpop.permute.xlu0 %1304
  %1306 = vrot.lane.b32.xlu0 %v351, 16
  %v1307 = vpop.permute.xlu0 %1306
  %1308 = vrot.lane.b32.xlu0 %v352, 16
  %v1309 = vpop.permute.xlu0 %1308
  %1310 = vrot.lane.b32.xlu0 %v353, 16
  %v1311 = vpop.permute.xlu0 %1310
  %1312 = vrot.lane.b32.xlu0 %v354, 16
  %v1313 = vpop.permute.xlu0 %1312
  %1314 = vrot.lane.b32.xlu0 %v355, 16
  %v1315 = vpop.permute.xlu0 %1314
  %vm1380 = vcmask 31744
  %v1381 = vsel %vm1380, %v33, %v421
  %v1382 = vsel %vm1380, %v34, %v423
  %v1383 = vsel %vm1380, %v35, %v425
  %v1384 = vsel %vm1380, %v36, %v427
  %v1385 = vsel %vm1380, %v37, %v429
  %v1386 = vsel %vm1380, %v38, %v431
  %v1387 = vsel %vm1380, %v39, %v433
  %v1388 = vsel %vm1380, %v40, %v435
  %v1389 = vsel %vm1380, %v41, %v437
  %v1390 = vsel %vm1380, %v42, %v439
  %v1391 = vsel %vm1380, %v43, %v441
  %v1392 = vsel %vm1380, %v44, %v443
  %v1393 = vsel %vm1380, %v45, %v445
  %v1394 = vsel %vm1380, %v46, %v447
  %v1395 = vsel %vm1380, %v47, %v449
  %v1396 = vsel %vm1380, %v48, %v451
  %v1397 = vsel %vm1380, %v49, %v453
  %v1398 = vsel %vm1380, %v50, %v455
  %v1399 = vsel %vm1380, %v51, %v457
  %v1400 = vsel %vm1380, %v52, %v459
  %v1401 = vsel %vm1380, %v53, %v461
  %v1402 = vsel %vm1380, %v54, %v463
  %v1403 = vsel %vm1380, %v55, %v465
  %v1404 = vsel %vm1380, %v56, %v467
  %v1405 = vsel %vm1380, %v57, %v469
  %v1406 = vsel %vm1380, %v58, %v471
  %v1407 = vsel %vm1380, %v59, %v473
  %v1408 = vsel %vm1380, %v60, %v475
  %v1409 = vsel %vm1380, %v61, %v477
  %v1410 = vsel %vm1380, %v62, %v479
  %v1411 = vsel %vm1380, %v63, %v481
  %v1412 = vsel %vm1380, %v64, %v483
  %v1413 = vsel %vm1380, %v65, %v485
  %v1414 = vsel %vm1380, %v66, %v487
  %v1415 = vsel %vm1380, %v67, %v489
  %v1416 = vsel %vm1380, %v68, %v491
  %v1417 = vsel %vm1380, %v69, %v493
  %v1418 = vsel %vm1380, %v70, %v495
  %v1419 = vsel %vm1380, %v71, %v497
  %v1420 = vsel %vm1380, %v72, %v499
  %v1421 = vsel %vm1380, %v73, %v501
  %v1422 = vsel %vm1380, %v74, %v503
  %v1423 = vsel %vm1380, %v75, %v505
  %v1424 = vsel %vm1380, %v76, %v507
  %v1425 = vsel %vm1380, %v77, %v509
  %v1426 = vsel %vm1380, %v78, %v511
  %v1427 = vsel %vm1380, %v79, %v513
  %v1428 = vsel %vm1380, %v80, %v515
  %v1429 = vsel %vm1380, %v81, %v517
  %v1430 = vsel %vm1380, %v82, %v519
  %v1431 = vsel %vm1380, %v83, %v521
  %v1432 = vsel %vm1380, %v84, %v523
  %v1433 = vsel %vm1380, %v85, %v525
  %v1434 = vsel %vm1380, %v86, %v527
  %v1435 = vsel %vm1380, %v87, %v529
  %v1436 = vsel %vm1380, %v88, %v531
  %v1437 = vsel %vm1380, %v89, %v533
  %v1438 = vsel %vm1380, %v90, %v535
  %v1439 = vsel %vm1380, %v91, %v537
  %v1440 = vsel %vm1380, %v92, %v539
  %v1441 = vsel %vm1380, %v93, %v541
  %v1442 = vsel %vm1380, %v94, %v543
  %v1443 = vsel %vm1380, %v95, %v545
  %v1444 = vsel %vm1380, %v96, %v547
  %vm1445 = vcmask 64512
  %v1446 = vsel %vm1445, %v1381, %v677
  %v1447 = vsel %vm1445, %v1382, %v679
  %v1448 = vsel %vm1445, %v1383, %v681
  %v1449 = vsel %vm1445, %v1384, %v683
  %v1450 = vsel %vm1445, %v1385, %v685
  %v1451 = vsel %vm1445, %v1386, %v687
  %v1452 = vsel %vm1445, %v1387, %v689
  %v1453 = vsel %vm1445, %v1388, %v691
  %v1454 = vsel %vm1445, %v1389, %v693
  %v1455 = vsel %vm1445, %v1390, %v695
  %v1456 = vsel %vm1445, %v1391, %v697
  %v1457 = vsel %vm1445, %v1392, %v699
  %v1458 = vsel %vm1445, %v1393, %v701
  %v1459 = vsel %vm1445, %v1394, %v703
  %v1460 = vsel %vm1445, %v1395, %v705
  %v1461 = vsel %vm1445, %v1396, %v707
  %v1462 = vsel %vm1445, %v1397, %v709
  %v1463 = vsel %vm1445, %v1398, %v711
  %v1464 = vsel %vm1445, %v1399, %v713
  %v1465 = vsel %vm1445, %v1400, %v715
  %v1466 = vsel %vm1445, %v1401, %v717
  %v1467 = vsel %vm1445, %v1402, %v719
  %v1468 = vsel %vm1445, %v1403, %v721
  %v1469 = vsel %vm1445, %v1404, %v723
  %v1470 = vsel %vm1445, %v1405, %v725
  %v1471 = vsel %vm1445, %v1406, %v727
  %v1472 = vsel %vm1445, %v1407, %v729
  %v1473 = vsel %vm1445, %v1408, %v731
  %v1474 = vsel %vm1445, %v1409, %v733
  %v1475 = vsel %vm1445, %v1410, %v735
  %v1476 = vsel %vm1445, %v1411, %v737
  %v1477 = vsel %vm1445, %v1412, %v739
  %v1478 = vsel %vm1445, %v1413, %v741
  %v1479 = vsel %vm1445, %v1414, %v743
  %v1480 = vsel %vm1445, %v1415, %v745
  %v1481 = vsel %vm1445, %v1416, %v747
  %v1482 = vsel %vm1445, %v1417, %v749
  %v1483 = vsel %vm1445, %v1418, %v751
  %v1484 = vsel %vm1445, %v1419, %v753
  %v1485 = vsel %vm1445, %v1420, %v755
  %v1486 = vsel %vm1445, %v1421, %v757
  %v1487 = vsel %vm1445, %v1422, %v759
  %v1488 = vsel %vm1445, %v1423, %v761
  %v1489 = vsel %vm1445, %v1424, %v763
  %v1490 = vsel %vm1445, %v1425, %v765
  %v1491 = vsel %vm1445, %v1426, %v767
  %v1492 = vsel %vm1445, %v1427, %v769
  %v1493 = vsel %vm1445, %v1428, %v771
  %v1494 = vsel %vm1445, %v1429, %v773
  %v1495 = vsel %vm1445, %v1430, %v775
  %v1496 = vsel %vm1445, %v1431, %v777
  %v1497 = vsel %vm1445, %v1432, %v779
  %v1498 = vsel %vm1445, %v1433, %v781
  %v1499 = vsel %vm1445, %v1434, %v783
  %v1500 = vsel %vm1445, %v1435, %v785
  %v1501 = vsel %vm1445, %v1436, %v787
  %v1502 = vsel %vm1445, %v1437, %v789
  %v1503 = vsel %vm1445, %v1438, %v791
  %v1504 = vsel %vm1445, %v1439, %v793
  %v1505 = vsel %vm1445, %v1440, %v795
  %v1506 = vsel %vm1445, %v1441, %v797
  %v1507 = vsel %vm1445, %v1442, %v799
  %v1508 = vsel %vm1445, %v1443, %v801
  %v1509 = vsel %vm1445, %v1444, %v803
  %vm1510 = vcmask 97280
  %v1511 = vsel %vm1510, %v1446, %v933
  %v1512 = vsel %vm1510, %v1447, %v935
  %v1513 = vsel %vm1510, %v1448, %v937
  %v1514 = vsel %vm1510, %v1449, %v939
  %v1515 = vsel %vm1510, %v1450, %v941
  %v1516 = vsel %vm1510, %v1451, %v943
  %v1517 = vsel %vm1510, %v1452, %v945
  %v1518 = vsel %vm1510, %v1453, %v947
  %v1519 = vsel %vm1510, %v1454, %v949
  %v1520 = vsel %vm1510, %v1455, %v951
  %v1521 = vsel %vm1510, %v1456, %v953
  %v1522 = vsel %vm1510, %v1457, %v955
  %v1523 = vsel %vm1510, %v1458, %v957
  %v1524 = vsel %vm1510, %v1459, %v959
  %v1525 = vsel %vm1510, %v1460, %v961
  %v1526 = vsel %vm1510, %v1461, %v963
  %v1527 = vsel %vm1510, %v1462, %v965
  %v1528 = vsel %vm1510, %v1463, %v967
  %v1529 = vsel %vm1510, %v1464, %v969
  %v1530 = vsel %vm1510, %v1465, %v971
  %v1531 = vsel %vm1510, %v1466, %v973
  %v1532 = vsel %vm1510, %v1467, %v975
  %v1533 = vsel %vm1510, %v1468, %v977
  %v1534 = vsel %vm1510, %v1469, %v979
  %v1535 = vsel %vm1510, %v1470, %v981
  %v1536 = vsel %vm1510, %v1471, %v983
  %v1537 = vsel %vm1510, %v1472, %v985
  %v1538 = vsel %vm1510, %v1473, %v987
  %v1539 = vsel %vm1510, %v1474, %v989
  %v1540 = vsel %vm1510, %v1475, %v991
  %v1541 = vsel %vm1510, %v1476, %v993
  %v1542 = vsel %vm1510, %v1477, %v995
  %v1543 = vsel %vm1510, %v1478, %v997
  %v1544 = vsel %vm1510, %v1479, %v999
  %v1545 = vsel %vm1510, %v1480, %v1001
  %v1546 = vsel %vm1510, %v1481, %v1003
  %v1547 = vsel %vm1510, %v1482, %v1005
  %v1548 = vsel %vm1510, %v1483, %v1007
  %v1549 = vsel %vm1510, %v1484, %v1009
  %v1550 = vsel %vm1510, %v1485, %v1011
  %v1551 = vsel %vm1510, %v1486, %v1013
  %v1552 = vsel %vm1510, %v1487, %v1015
  %v1553 = vsel %vm1510, %v1488, %v1017
  %v1554 = vsel %vm1510, %v1489, %v1019
  %v1555 = vsel %vm1510, %v1490, %v1021
  %v1556 = vsel %vm1510, %v1491, %v1023
  %v1557 = vsel %vm1510, %v1492, %v1025
  %v1558 = vsel %vm1510, %v1493, %v1027
  %v1559 = vsel %vm1510, %v1494, %v1029
  %v1560 = vsel %vm1510, %v1495, %v1031
  %v1561 = vsel %vm1510, %v1496, %v1033
  %v1562 = vsel %vm1510, %v1497, %v1035
  %v1563 = vsel %vm1510, %v1498, %v1037
  %v1564 = vsel %vm1510, %v1499, %v1039
  %v1565 = vsel %vm1510, %v1500, %v1041
  %v1566 = vsel %vm1510, %v1501, %v1043
  %v1567 = vsel %vm1510, %v1502, %v1045
  %v1568 = vsel %vm1510, %v1503, %v1047
  %v1569 = vsel %vm1510, %v1504, %v1049
  %v1570 = vsel %vm1510, %v1505, %v1051
  %v1571 = vsel %vm1510, %v1506, %v1053
  %v1572 = vsel %vm1510, %v1507, %v1055
  %v1573 = vsel %vm1510, %v1508, %v1057
  %v1574 = vsel %vm1510, %v1509, %v1059
  %vm1575 = vcmask 130048
  %v1576 = vsel %vm1575, %v1511, %v1189
  %v1577 = vsel %vm1575, %v1512, %v1191
  %v1578 = vsel %vm1575, %v1513, %v1193
  %v1579 = vsel %vm1575, %v1514, %v1195
  %v1580 = vsel %vm1575, %v1515, %v1197
  %v1581 = vsel %vm1575, %v1516, %v1199
  %v1582 = vsel %vm1575, %v1517, %v1201
  %v1583 = vsel %vm1575, %v1518, %v1203
  %v1584 = vsel %vm1575, %v1519, %v1205
  %v1585 = vsel %vm1575, %v1520, %v1207
  %v1586 = vsel %vm1575, %v1521, %v1209
  %v1587 = vsel %vm1575, %v1522, %v1211
  %v1588 = vsel %vm1575, %v1523, %v1213
  %v1589 = vsel %vm1575, %v1524, %v1215
  %v1590 = vsel %vm1575, %v1525, %v1217
  %v1591 = vsel %vm1575, %v1526, %v1219
  %v1592 = vsel %vm1575, %v1527, %v1221
  %v1593 = vsel %vm1575, %v1528, %v1223
  %v1594 = vsel %vm1575, %v1529, %v1225
  %v1595 = vsel %vm1575, %v1530, %v1227
  %v1596 = vsel %vm1575, %v1531, %v1229
  %v1597 = vsel %vm1575, %v1532, %v1231
  %v1598 = vsel %vm1575, %v1533, %v1233
  %v1599 = vsel %vm1575, %v1534, %v1235
  %v1600 = vsel %vm1575, %v1535, %v1237
  %v1601 = vsel %vm1575, %v1536, %v1239
  %v1602 = vsel %vm1575, %v1537, %v1241
  %v1603 = vsel %vm1575, %v1538, %v1243
  %v1604 = vsel %vm1575, %v1539, %v1245
  %v1605 = vsel %vm1575, %v1540, %v1247
  %v1606 = vsel %vm1575, %v1541, %v1249
  %v1607 = vsel %vm1575, %v1542, %v1251
  %v1608 = vsel %vm1575, %v1543, %v1253
  %v1609 = vsel %vm1575, %v1544, %v1255
  %v1610 = vsel %vm1575, %v1545, %v1257
  %v1611 = vsel %vm1575, %v1546, %v1259
  %v1612 = vsel %vm1575, %v1547, %v1261
  %v1613 = vsel %vm1575, %v1548, %v1263
  %v1614 = vsel %vm1575, %v1549, %v1265
  %v1615 = vsel %vm1575, %v1550, %v1267
  %v1616 = vsel %vm1575, %v1551, %v1269
  %v1617 = vsel %vm1575, %v1552, %v1271
  %v1618 = vsel %vm1575, %v1553, %v1273
  %v1619 = vsel %vm1575, %v1554, %v1275
  %v1620 = vsel %vm1575, %v1555, %v1277
  %v1621 = vsel %vm1575, %v1556, %v1279
  %v1622 = vsel %vm1575, %v1557, %v1281
  %v1623 = vsel %vm1575, %v1558, %v1283
  %v1624 = vsel %vm1575, %v1559, %v1285
  %v1625 = vsel %vm1575, %v1560, %v1287
  %v1626 = vsel %vm1575, %v1561, %v1289
  %v1627 = vsel %vm1575, %v1562, %v1291
  %v1628 = vsel %vm1575, %v1563, %v1293
  %v1629 = vsel %vm1575, %v1564, %v1295
  %v1630 = vsel %vm1575, %v1565, %v1297
  %v1631 = vsel %vm1575, %v1566, %v1299
  %v1632 = vsel %vm1575, %v1567, %v1301
  %v1633 = vsel %vm1575, %v1568, %v1303
  %v1634 = vsel %vm1575, %v1569, %v1305
  %v1635 = vsel %vm1575, %v1570, %v1307
  %v1636 = vsel %vm1575, %v1571, %v1309
  %v1637 = vsel %vm1575, %v1572, %v1311
  %v1638 = vsel %vm1575, %v1573, %v1313
  %v1639 = vsel %vm1575, %v1574, %v1315
  %v1640 = vld [vmem:[%s3] sm:$0x1]
  %v1642 = vperm.slane %v1640, 0
  %v1644 = vmul.f32 %v1576, %v1642
  %v1645 = vmul.f32 %v1577, %v1642
  %v1646 = vmul.f32 %v1578, %v1642
  %v1647 = vmul.f32 %v1579, %v1642
  %v1648 = vmul.f32 %v1580, %v1642
  %v1649 = vmul.f32 %v1581, %v1642
  %v1650 = vmul.f32 %v1582, %v1642
  %v1651 = vmul.f32 %v1583, %v1642
  %v1652 = vmul.f32 %v1584, %v1642
  %v1653 = vmul.f32 %v1585, %v1642
  %v1654 = vmul.f32 %v1586, %v1642
  %v1655 = vmul.f32 %v1587, %v1642
  %v1656 = vmul.f32 %v1588, %v1642
  %v1657 = vmul.f32 %v1589, %v1642
  %v1658 = vmul.f32 %v1590, %v1642
  %v1659 = vmul.f32 %v1591, %v1642
  %v1660 = vmul.f32 %v1592, %v1642
  %v1661 = vmul.f32 %v1593, %v1642
  %v1662 = vmul.f32 %v1594, %v1642
  %v1663 = vmul.f32 %v1595, %v1642
  %v1664 = vmul.f32 %v1596, %v1642
  %v1665 = vmul.f32 %v1597, %v1642
  %v1666 = vmul.f32 %v1598, %v1642
  %v1667 = vmul.f32 %v1599, %v1642
  %v1668 = vmul.f32 %v1600, %v1642
  %v1669 = vmul.f32 %v1601, %v1642
  %v1670 = vmul.f32 %v1602, %v1642
  %v1671 = vmul.f32 %v1603, %v1642
  %v1672 = vmul.f32 %v1604, %v1642
  %v1673 = vmul.f32 %v1605, %v1642
  %v1674 = vmul.f32 %v1606, %v1642
  %v1675 = vmul.f32 %v1607, %v1642
  %v1676 = vmul.f32 %v1608, %v1642
  %v1677 = vmul.f32 %v1609, %v1642
  %v1678 = vmul.f32 %v1610, %v1642
  %v1679 = vmul.f32 %v1611, %v1642
  %v1680 = vmul.f32 %v1612, %v1642
  %v1681 = vmul.f32 %v1613, %v1642
  %v1682 = vmul.f32 %v1614, %v1642
  %v1683 = vmul.f32 %v1615, %v1642
  %v1684 = vmul.f32 %v1616, %v1642
  %v1685 = vmul.f32 %v1617, %v1642
  %v1686 = vmul.f32 %v1618, %v1642
  %v1687 = vmul.f32 %v1619, %v1642
  %v1688 = vmul.f32 %v1620, %v1642
  %v1689 = vmul.f32 %v1621, %v1642
  %v1690 = vmul.f32 %v1622, %v1642
  %v1691 = vmul.f32 %v1623, %v1642
  %v1692 = vmul.f32 %v1624, %v1642
  %v1693 = vmul.f32 %v1625, %v1642
  %v1694 = vmul.f32 %v1626, %v1642
  %v1695 = vmul.f32 %v1627, %v1642
  %v1696 = vmul.f32 %v1628, %v1642
  %v1697 = vmul.f32 %v1629, %v1642
  %v1698 = vmul.f32 %v1630, %v1642
  %v1699 = vmul.f32 %v1631, %v1642
  %v1700 = vmul.f32 %v1632, %v1642
  %v1701 = vmul.f32 %v1633, %v1642
  %v1702 = vmul.f32 %v1634, %v1642
  %v1703 = vmul.f32 %v1635, %v1642
  %v1704 = vmul.f32 %v1636, %v1642
  %v1705 = vmul.f32 %v1637, %v1642
  %v1706 = vmul.f32 %v1638, %v1642
  %v1707 = vmul.f32 %v1639, %v1642
  %v1708 = vld [vmem:[%s4] sm:$0x1]
  %v1710 = vperm.slane %v1708, 0
  %v1712 = vadd.f32 %v1644, %v1710
  %v1713 = vadd.f32 %v1645, %v1710
  %v1714 = vadd.f32 %v1646, %v1710
  %v1715 = vadd.f32 %v1647, %v1710
  %v1716 = vadd.f32 %v1648, %v1710
  %v1717 = vadd.f32 %v1649, %v1710
  %v1718 = vadd.f32 %v1650, %v1710
  %v1719 = vadd.f32 %v1651, %v1710
  %v1720 = vadd.f32 %v1652, %v1710
  %v1721 = vadd.f32 %v1653, %v1710
  %v1722 = vadd.f32 %v1654, %v1710
  %v1723 = vadd.f32 %v1655, %v1710
  %v1724 = vadd.f32 %v1656, %v1710
  %v1725 = vadd.f32 %v1657, %v1710
  %v1726 = vadd.f32 %v1658, %v1710
  %v1727 = vadd.f32 %v1659, %v1710
  %v1728 = vadd.f32 %v1660, %v1710
  %v1729 = vadd.f32 %v1661, %v1710
  %v1730 = vadd.f32 %v1662, %v1710
  %v1731 = vadd.f32 %v1663, %v1710
  %v1732 = vadd.f32 %v1664, %v1710
  %v1733 = vadd.f32 %v1665, %v1710
  %v1734 = vadd.f32 %v1666, %v1710
  %v1735 = vadd.f32 %v1667, %v1710
  %v1736 = vadd.f32 %v1668, %v1710
  %v1737 = vadd.f32 %v1669, %v1710
  %v1738 = vadd.f32 %v1670, %v1710
  %v1739 = vadd.f32 %v1671, %v1710
  %v1740 = vadd.f32 %v1672, %v1710
  %v1741 = vadd.f32 %v1673, %v1710
  %v1742 = vadd.f32 %v1674, %v1710
  %v1743 = vadd.f32 %v1675, %v1710
  %v1744 = vadd.f32 %v1676, %v1710
  %v1745 = vadd.f32 %v1677, %v1710
  %v1746 = vadd.f32 %v1678, %v1710
  %v1747 = vadd.f32 %v1679, %v1710
  %v1748 = vadd.f32 %v1680, %v1710
  %v1749 = vadd.f32 %v1681, %v1710
  %v1750 = vadd.f32 %v1682, %v1710
  %v1751 = vadd.f32 %v1683, %v1710
  %v1752 = vadd.f32 %v1684, %v1710
  %v1753 = vadd.f32 %v1685, %v1710
  %v1754 = vadd.f32 %v1686, %v1710
  %v1755 = vadd.f32 %v1687, %v1710
  %v1756 = vadd.f32 %v1688, %v1710
  %v1757 = vadd.f32 %v1689, %v1710
  %v1758 = vadd.f32 %v1690, %v1710
  %v1759 = vadd.f32 %v1691, %v1710
  %v1760 = vadd.f32 %v1692, %v1710
  %v1761 = vadd.f32 %v1693, %v1710
  %v1762 = vadd.f32 %v1694, %v1710
  %v1763 = vadd.f32 %v1695, %v1710
  %v1764 = vadd.f32 %v1696, %v1710
  %v1765 = vadd.f32 %v1697, %v1710
  %v1766 = vadd.f32 %v1698, %v1710
  %v1767 = vadd.f32 %v1699, %v1710
  %v1768 = vadd.f32 %v1700, %v1710
  %v1769 = vadd.f32 %v1701, %v1710
  %v1770 = vadd.f32 %v1702, %v1710
  %v1771 = vadd.f32 %v1703, %v1710
  %v1772 = vadd.f32 %v1704, %v1710
  %v1773 = vadd.f32 %v1705, %v1710
  %v1774 = vadd.f32 %v1706, %v1710
  %v1775 = vadd.f32 %v1707, %v1710
  %v1776 = vmax.f32 %v1712, 0.0
  %v1777 = vmax.f32 %v1713, 0.0
  %v1778 = vmax.f32 %v1714, 0.0
  %v1779 = vmax.f32 %v1715, 0.0
  %v1780 = vmax.f32 %v1716, 0.0
  %v1781 = vmax.f32 %v1717, 0.0
  %v1782 = vmax.f32 %v1718, 0.0
  %v1783 = vmax.f32 %v1719, 0.0
  %v1784 = vmax.f32 %v1720, 0.0
  %v1785 = vmax.f32 %v1721, 0.0
  %v1786 = vmax.f32 %v1722, 0.0
  %v1787 = vmax.f32 %v1723, 0.0
  %v1788 = vmax.f32 %v1724, 0.0
  %v1789 = vmax.f32 %v1725, 0.0
  %v1790 = vmax.f32 %v1726, 0.0
  %v1791 = vmax.f32 %v1727, 0.0
  %v1792 = vmax.f32 %v1728, 0.0
  %v1793 = vmax.f32 %v1729, 0.0
  %v1794 = vmax.f32 %v1730, 0.0
  %v1795 = vmax.f32 %v1731, 0.0
  %v1796 = vmax.f32 %v1732, 0.0
  %v1797 = vmax.f32 %v1733, 0.0
  %v1798 = vmax.f32 %v1734, 0.0
  %v1799 = vmax.f32 %v1735, 0.0
  %v1800 = vmax.f32 %v1736, 0.0
  %v1801 = vmax.f32 %v1737, 0.0
  %v1802 = vmax.f32 %v1738, 0.0
  %v1803 = vmax.f32 %v1739, 0.0
  %v1804 = vmax.f32 %v1740, 0.0
  %v1805 = vmax.f32 %v1741, 0.0
  %v1806 = vmax.f32 %v1742, 0.0
  %v1807 = vmax.f32 %v1743, 0.0
  %v1808 = vmax.f32 %v1744, 0.0
  %v1809 = vmax.f32 %v1745, 0.0
  %v1810 = vmax.f32 %v1746, 0.0
  %v1811 = vmax.f32 %v1747, 0.0
  %v1812 = vmax.f32 %v1748, 0.0
  %v1813 = vmax.f32 %v1749, 0.0
  %v1814 = vmax.f32 %v1750, 0.0
  %v1815 = vmax.f32 %v1751, 0.0
  %v1816 = vmax.f32 %v1752, 0.0
  %v1817 = vmax.f32 %v1753, 0.0
  %v1818 = vmax.f32 %v1754, 0.0
  %v1819 = vmax.f32 %v1755, 0.0
  %v1820 = vmax.f32 %v1756, 0.0
  %v1821 = vmax.f32 %v1757, 0.0
  %v1822 = vmax.f32 %v1758, 0.0
  %v1823 = vmax.f32 %v1759, 0.0
  %v1824 = vmax.f32 %v1760, 0.0
  %v1825 = vmax.f32 %v1761, 0.0
  %v1826 = vmax.f32 %v1762, 0.0
  %v1827 = vmax.f32 %v1763, 0.0
  %v1828 = vmax.f32 %v1764, 0.0
  %v1829 = vmax.f32 %v1765, 0.0
  %v1830 = vmax.f32 %v1766, 0.0
  %v1831 = vmax.f32 %v1767, 0.0
  %v1832 = vmax.f32 %v1768, 0.0
  %v1833 = vmax.f32 %v1769, 0.0
  %v1834 = vmax.f32 %v1770, 0.0
  %v1835 = vmax.f32 %v1771, 0.0
  %v1836 = vmax.f32 %v1772, 0.0
  %v1837 = vmax.f32 %v1773, 0.0
  %v1838 = vmax.f32 %v1774, 0.0
  %v1839 = vmax.f32 %v1775, 0.0
  %v1840 = vpack.c.bf16 %v1777, %v1776
  %v1841 = vpack.c.bf16 %v1779, %v1778
  %v1842 = vpack.c.bf16 %v1781, %v1780
  %v1843 = vpack.c.bf16 %v1783, %v1782
  %v1844 = vpack.c.bf16 %v1785, %v1784
  %v1845 = vpack.c.bf16 %v1787, %v1786
  %v1846 = vpack.c.bf16 %v1789, %v1788
  %v1847 = vpack.c.bf16 %v1791, %v1790
  %v1848 = vpack.c.bf16 %v1793, %v1792
  %v1849 = vpack.c.bf16 %v1795, %v1794
  %v1850 = vpack.c.bf16 %v1797, %v1796
  %v1851 = vpack.c.bf16 %v1799, %v1798
  %v1852 = vpack.c.bf16 %v1801, %v1800
  %v1853 = vpack.c.bf16 %v1803, %v1802
  %v1854 = vpack.c.bf16 %v1805, %v1804
  %v1855 = vpack.c.bf16 %v1807, %v1806
  %v1856 = vpack.c.bf16 %v1809, %v1808
  %v1857 = vpack.c.bf16 %v1811, %v1810
  %v1858 = vpack.c.bf16 %v1813, %v1812
  %v1859 = vpack.c.bf16 %v1815, %v1814
  %v1860 = vpack.c.bf16 %v1817, %v1816
  %v1861 = vpack.c.bf16 %v1819, %v1818
  %v1862 = vpack.c.bf16 %v1821, %v1820
  %v1863 = vpack.c.bf16 %v1823, %v1822
  %v1864 = vpack.c.bf16 %v1825, %v1824
  %v1865 = vpack.c.bf16 %v1827, %v1826
  %v1866 = vpack.c.bf16 %v1829, %v1828
  %v1867 = vpack.c.bf16 %v1831, %v1830
  %v1868 = vpack.c.bf16 %v1833, %v1832
  %v1869 = vpack.c.bf16 %v1835, %v1834
  %v1870 = vpack.c.bf16 %v1837, %v1836
  %v1871 = vpack.c.bf16 %v1839, %v1838
  %v1872 = vld [vmem:[%s5] sm:$0xf]
  %v1873 = vld [vmem:[%s5 + $0x4] sm:$0xf]
  %v1874 = vld [vmem:[%s5 + $0x8] sm:$0x3]
  %v1875 = vld [vmem:[%s2] sm:$0xff]
  %v1876 = vld [vmem:[%s2 + $0x8] sm:$0xff]
  %v1877 = vld [vmem:[%s2 + $0x10] sm:$0xff]
  %v1878 = vld [vmem:[%s2 + $0x18] sm:$0xff]
  %v1879 = vld [vmem:[%s2 + $0x20] sm:$0xff]
  %v1880 = vld [vmem:[%s2 + $0x28] sm:$0xff]
  %v1881 = vld [vmem:[%s2 + $0x30] sm:$0xff]
  %v1882 = vld [vmem:[%s2 + $0x38] sm:$0xff]
  %v1883 = vld [vmem:[%s2 + $0x40] sm:$0xff]
  %v1884 = vld [vmem:[%s2 + $0x48] sm:$0xff]
  %v1885 = vld [vmem:[%s2 + $0x50] sm:$0xff]
  %v1886 = vld [vmem:[%s2 + $0x58] sm:$0xff]
  %v1887 = vld [vmem:[%s2 + $0x60] sm:$0xff]
  %v1888 = vld [vmem:[%s2 + $0x68] sm:$0xff]
  %v1889 = vld [vmem:[%s2 + $0x70] sm:$0xff]
  %v1890 = vld [vmem:[%s2 + $0x78] sm:$0xff]
  %v1891 = vld [vmem:[%s2 + $0x80] sm:$0xff]
  %v1892 = vld [vmem:[%s2 + $0x88] sm:$0xff]
  %v1893 = vld [vmem:[%s2 + $0x90] sm:$0xff]
  %v1894 = vld [vmem:[%s2 + $0x98] sm:$0xff]
  %v1895 = vld [vmem:[%s2 + $0xa0] sm:$0xff]
  %v1896 = vld [vmem:[%s2 + $0xa8] sm:$0xff]
  %v1897 = vld [vmem:[%s2 + $0xb0] sm:$0xff]
  %v1898 = vld [vmem:[%s2 + $0xb8] sm:$0xff]
  %v1899 = vld [vmem:[%s2 + $0xc0] sm:$0xff]
  %v1900 = vld [vmem:[%s2 + $0xc8] sm:$0xff]
  %v1901 = vld [vmem:[%s2 + $0xd0] sm:$0xff]
  %v1902 = vld [vmem:[%s2 + $0xd8] sm:$0xff]
  %v1903 = vld [vmem:[%s2 + $0xe0] sm:$0xff]
  %v1904 = vld [vmem:[%s2 + $0xe8] sm:$0xff]
  %v1905 = vld [vmem:[%s2 + $0xf0] sm:$0xff]
  %v1906 = vld [vmem:[%s2 + $0xf8] sm:$0xff]
  %v1907 = vld [vmem:[%s2 + $0x100] sm:$0xff]
  %v1908 = vld [vmem:[%s2 + $0x108] sm:$0xff]
  %v1909 = vld [vmem:[%s2 + $0x110] sm:$0xff]
  %v1910 = vld [vmem:[%s2 + $0x118] sm:$0xff]
  %v1911 = vld [vmem:[%s2 + $0x120] sm:$0xff]
  %v1912 = vld [vmem:[%s2 + $0x128] sm:$0xff]
  %v1913 = vld [vmem:[%s2 + $0x130] sm:$0xff]
  %v1914 = vld [vmem:[%s2 + $0x138] sm:$0xff]
  %v1915 = vld [vmem:[%s2 + $0x140] sm:$0xff]
  %v1916 = vld [vmem:[%s2 + $0x148] sm:$0xff]
  %v1917 = vld [vmem:[%s2 + $0x150] sm:$0xff]
  %v1918 = vld [vmem:[%s2 + $0x158] sm:$0xff]
  %v1919 = vld [vmem:[%s2 + $0x160] sm:$0xff]
  %v1920 = vld [vmem:[%s2 + $0x168] sm:$0xff]
  %v1921 = vld [vmem:[%s2 + $0x170] sm:$0xff]
  %v1922 = vld [vmem:[%s2 + $0x178] sm:$0xff]
  %v1923 = vld [vmem:[%s2 + $0x180] sm:$0xff]
  %v1924 = vld [vmem:[%s2 + $0x188] sm:$0xff]
  %v1925 = vld [vmem:[%s2 + $0x190] sm:$0xff]
  %v1926 = vld [vmem:[%s2 + $0x198] sm:$0xff]
  %v1927 = vld [vmem:[%s2 + $0x1a0] sm:$0xff]
  %v1928 = vld [vmem:[%s2 + $0x1a8] sm:$0xff]
  %v1929 = vld [vmem:[%s2 + $0x1b0] sm:$0xff]
  %v1930 = vld [vmem:[%s2 + $0x1b8] sm:$0xff]
  %v1931 = vld [vmem:[%s2 + $0x1c0] sm:$0xff]
  %v1932 = vld [vmem:[%s2 + $0x1c8] sm:$0xff]
  %v1933 = vld [vmem:[%s2 + $0x1d0] sm:$0xff]
  %v1934 = vld [vmem:[%s2 + $0x1d8] sm:$0xff]
  %v1935 = vld [vmem:[%s2 + $0x1e0] sm:$0xff]
  %v1936 = vld [vmem:[%s2 + $0x1e8] sm:$0xff]
  %v1937 = vld [vmem:[%s2 + $0x1f0] sm:$0xff]
  %v1938 = vld [vmem:[%s2 + $0x1f8] sm:$0xff]
  %v1939 = vld [vmem:[%s6] sm:$0x1]
  %v1941 = vperm.slane %v1939, 0
  %v1943 = vmul.f32 %v1875, %v1941
  %v1944 = vmul.f32 %v1876, %v1941
  %v1945 = vmul.f32 %v1877, %v1941
  %v1946 = vmul.f32 %v1878, %v1941
  %v1947 = vmul.f32 %v1879, %v1941
  %v1948 = vmul.f32 %v1880, %v1941
  %v1949 = vmul.f32 %v1881, %v1941
  %v1950 = vmul.f32 %v1882, %v1941
  %v1951 = vmul.f32 %v1883, %v1941
  %v1952 = vmul.f32 %v1884, %v1941
  %v1953 = vmul.f32 %v1885, %v1941
  %v1954 = vmul.f32 %v1886, %v1941
  %v1955 = vmul.f32 %v1887, %v1941
  %v1956 = vmul.f32 %v1888, %v1941
  %v1957 = vmul.f32 %v1889, %v1941
  %v1958 = vmul.f32 %v1890, %v1941
  %v1959 = vmul.f32 %v1891, %v1941
  %v1960 = vmul.f32 %v1892, %v1941
  %v1961 = vmul.f32 %v1893, %v1941
  %v1962 = vmul.f32 %v1894, %v1941
  %v1963 = vmul.f32 %v1895, %v1941
  %v1964 = vmul.f32 %v1896, %v1941
  %v1965 = vmul.f32 %v1897, %v1941
  %v1966 = vmul.f32 %v1898, %v1941
  %v1967 = vmul.f32 %v1899, %v1941
  %v1968 = vmul.f32 %v1900, %v1941
  %v1969 = vmul.f32 %v1901, %v1941
  %v1970 = vmul.f32 %v1902, %v1941
  %v1971 = vmul.f32 %v1903, %v1941
  %v1972 = vmul.f32 %v1904, %v1941
  %v1973 = vmul.f32 %v1905, %v1941
  %v1974 = vmul.f32 %v1906, %v1941
  %v1975 = vmul.f32 %v1907, %v1941
  %v1976 = vmul.f32 %v1908, %v1941
  %v1977 = vmul.f32 %v1909, %v1941
  %v1978 = vmul.f32 %v1910, %v1941
  %v1979 = vmul.f32 %v1911, %v1941
  %v1980 = vmul.f32 %v1912, %v1941
  %v1981 = vmul.f32 %v1913, %v1941
  %v1982 = vmul.f32 %v1914, %v1941
  %v1983 = vmul.f32 %v1915, %v1941
  %v1984 = vmul.f32 %v1916, %v1941
  %v1985 = vmul.f32 %v1917, %v1941
  %v1986 = vmul.f32 %v1918, %v1941
  %v1987 = vmul.f32 %v1919, %v1941
  %v1988 = vmul.f32 %v1920, %v1941
  %v1989 = vmul.f32 %v1921, %v1941
  %v1990 = vmul.f32 %v1922, %v1941
  %v1991 = vmul.f32 %v1923, %v1941
  %v1992 = vmul.f32 %v1924, %v1941
  %v1993 = vmul.f32 %v1925, %v1941
  %v1994 = vmul.f32 %v1926, %v1941
  %v1995 = vmul.f32 %v1927, %v1941
  %v1996 = vmul.f32 %v1928, %v1941
  %v1997 = vmul.f32 %v1929, %v1941
  %v1998 = vmul.f32 %v1930, %v1941
  %v1999 = vmul.f32 %v1931, %v1941
  %v2000 = vmul.f32 %v1932, %v1941
  %v2001 = vmul.f32 %v1933, %v1941
  %v2002 = vmul.f32 %v1934, %v1941
  %v2003 = vmul.f32 %v1935, %v1941
  %v2004 = vmul.f32 %v1936, %v1941
  %v2005 = vmul.f32 %v1937, %v1941
  %v2006 = vmul.f32 %v1938, %v1941
  %v2007 = vld [vmem:[%s7] sm:$0x1]
  %v2009 = vperm.slane %v2007, 0
  %v2011 = vadd.f32 %v1943, %v2009
  %v2012 = vadd.f32 %v1944, %v2009
  %v2013 = vadd.f32 %v1945, %v2009
  %v2014 = vadd.f32 %v1946, %v2009
  %v2015 = vadd.f32 %v1947, %v2009
  %v2016 = vadd.f32 %v1948, %v2009
  %v2017 = vadd.f32 %v1949, %v2009
  %v2018 = vadd.f32 %v1950, %v2009
  %v2019 = vadd.f32 %v1951, %v2009
  %v2020 = vadd.f32 %v1952, %v2009
  %v2021 = vadd.f32 %v1953, %v2009
  %v2022 = vadd.f32 %v1954, %v2009
  %v2023 = vadd.f32 %v1955, %v2009
  %v2024 = vadd.f32 %v1956, %v2009
  %v2025 = vadd.f32 %v1957, %v2009
  %v2026 = vadd.f32 %v1958, %v2009
  %v2027 = vadd.f32 %v1959, %v2009
  %v2028 = vadd.f32 %v1960, %v2009
  %v2029 = vadd.f32 %v1961, %v2009
  %v2030 = vadd.f32 %v1962, %v2009
  %v2031 = vadd.f32 %v1963, %v2009
  %v2032 = vadd.f32 %v1964, %v2009
  %v2033 = vadd.f32 %v1965, %v2009
  %v2034 = vadd.f32 %v1966, %v2009
  %v2035 = vadd.f32 %v1967, %v2009
  %v2036 = vadd.f32 %v1968, %v2009
  %v2037 = vadd.f32 %v1969, %v2009
  %v2038 = vadd.f32 %v1970, %v2009
  %v2039 = vadd.f32 %v1971, %v2009
  %v2040 = vadd.f32 %v1972, %v2009
  %v2041 = vadd.f32 %v1973, %v2009
  %v2042 = vadd.f32 %v1974, %v2009
  %v2043 = vadd.f32 %v1975, %v2009
  %v2044 = vadd.f32 %v1976, %v2009
  %v2045 = vadd.f32 %v1977, %v2009
  %v2046 = vadd.f32 %v1978, %v2009
  %v2047 = vadd.f32 %v1979, %v2009
  %v2048 = vadd.f32 %v1980, %v2009
  %v2049 = vadd.f32 %v1981, %v2009
  %v2050 = vadd.f32 %v1982, %v2009
  %v2051 = vadd.f32 %v1983, %v2009
  %v2052 = vadd.f32 %v1984, %v2009
  %v2053 = vadd.f32 %v1985, %v2009
  %v2054 = vadd.f32 %v1986, %v2009
  %v2055 = vadd.f32 %v1987, %v2009
  %v2056 = vadd.f32 %v1988, %v2009
  %v2057 = vadd.f32 %v1989, %v2009
  %v2058 = vadd.f32 %v1990, %v2009
  %v2059 = vadd.f32 %v1991, %v2009
  %v2060 = vadd.f32 %v1992, %v2009
  %v2061 = vadd.f32 %v1993, %v2009
  %v2062 = vadd.f32 %v1994, %v2009
  %v2063 = vadd.f32 %v1995, %v2009
  %v2064 = vadd.f32 %v1996, %v2009
  %v2065 = vadd.f32 %v1997, %v2009
  %v2066 = vadd.f32 %v1998, %v2009
  %v2067 = vadd.f32 %v1999, %v2009
  %v2068 = vadd.f32 %v2000, %v2009
  %v2069 = vadd.f32 %v2001, %v2009
  %v2070 = vadd.f32 %v2002, %v2009
  %v2071 = vadd.f32 %v2003, %v2009
  %v2072 = vadd.f32 %v2004, %v2009
  %v2073 = vadd.f32 %v2005, %v2009
  %v2074 = vadd.f32 %v2006, %v2009
  %v2075 = vmax.f32 %v2011, 0.0
  %v2076 = vmax.f32 %v2012, 0.0
  %v2077 = vmax.f32 %v2013, 0.0
  %v2078 = vmax.f32 %v2014, 0.0
  %v2079 = vmax.f32 %v2015, 0.0
  %v2080 = vmax.f32 %v2016, 0.0
  %v2081 = vmax.f32 %v2017, 0.0
  %v2082 = vmax.f32 %v2018, 0.0
  %v2083 = vmax.f32 %v2019, 0.0
  %v2084 = vmax.f32 %v2020, 0.0
  %v2085 = vmax.f32 %v2021, 0.0
  %v2086 = vmax.f32 %v2022, 0.0
  %v2087 = vmax.f32 %v2023, 0.0
  %v2088 = vmax.f32 %v2024, 0.0
  %v2089 = vmax.f32 %v2025, 0.0
  %v2090 = vmax.f32 %v2026, 0.0
  %v2091 = vmax.f32 %v2027, 0.0
  %v2092 = vmax.f32 %v2028, 0.0
  %v2093 = vmax.f32 %v2029, 0.0
  %v2094 = vmax.f32 %v2030, 0.0
  %v2095 = vmax.f32 %v2031, 0.0
  %v2096 = vmax.f32 %v2032, 0.0
  %v2097 = vmax.f32 %v2033, 0.0
  %v2098 = vmax.f32 %v2034, 0.0
  %v2099 = vmax.f32 %v2035, 0.0
  %v2100 = vmax.f32 %v2036, 0.0
  %v2101 = vmax.f32 %v2037, 0.0
  %v2102 = vmax.f32 %v2038, 0.0
  %v2103 = vmax.f32 %v2039, 0.0
  %v2104 = vmax.f32 %v2040, 0.0
  %v2105 = vmax.f32 %v2041, 0.0
  %v2106 = vmax.f32 %v2042, 0.0
  %v2107 = vmax.f32 %v2043, 0.0
  %v2108 = vmax.f32 %v2044, 0.0
  %v2109 = vmax.f32 %v2045, 0.0
  %v2110 = vmax.f32 %v2046, 0.0
  %v2111 = vmax.f32 %v2047, 0.0
  %v2112 = vmax.f32 %v2048, 0.0
  %v2113 = vmax.f32 %v2049, 0.0
  %v2114 = vmax.f32 %v2050, 0.0
  %v2115 = vmax.f32 %v2051, 0.0
  %v2116 = vmax.f32 %v2052, 0.0
  %v2117 = vmax.f32 %v2053, 0.0
  %v2118 = vmax.f32 %v2054, 0.0
  %v2119 = vmax.f32 %v2055, 0.0
  %v2120 = vmax.f32 %v2056, 0.0
  %v2121 = vmax.f32 %v2057, 0.0
  %v2122 = vmax.f32 %v2058, 0.0
  %v2123 = vmax.f32 %v2059, 0.0
  %v2124 = vmax.f32 %v2060, 0.0
  %v2125 = vmax.f32 %v2061, 0.0
  %v2126 = vmax.f32 %v2062, 0.0
  %v2127 = vmax.f32 %v2063, 0.0
  %v2128 = vmax.f32 %v2064, 0.0
  %v2129 = vmax.f32 %v2065, 0.0
  %v2130 = vmax.f32 %v2066, 0.0
  %v2131 = vmax.f32 %v2067, 0.0
  %v2132 = vmax.f32 %v2068, 0.0
  %v2133 = vmax.f32 %v2069, 0.0
  %v2134 = vmax.f32 %v2070, 0.0
  %v2135 = vmax.f32 %v2071, 0.0
  %v2136 = vmax.f32 %v2072, 0.0
  %v2137 = vmax.f32 %v2073, 0.0
  %v2138 = vmax.f32 %v2074, 0.0
  %v2139 = vpack.c.bf16 %v2076, %v2075
  %v2140 = vpack.c.bf16 %v2078, %v2077
  %v2141 = vpack.c.bf16 %v2080, %v2079
  %v2142 = vpack.c.bf16 %v2082, %v2081
  %v2143 = vpack.c.bf16 %v2084, %v2083
  %v2144 = vpack.c.bf16 %v2086, %v2085
  %v2145 = vpack.c.bf16 %v2088, %v2087
  %v2146 = vpack.c.bf16 %v2090, %v2089
  %v2147 = vpack.c.bf16 %v2092, %v2091
  %v2148 = vpack.c.bf16 %v2094, %v2093
  %v2149 = vpack.c.bf16 %v2096, %v2095
  %v2150 = vpack.c.bf16 %v2098, %v2097
  %v2151 = vpack.c.bf16 %v2100, %v2099
  %v2152 = vpack.c.bf16 %v2102, %v2101
  %v2153 = vpack.c.bf16 %v2104, %v2103
  %v2154 = vpack.c.bf16 %v2106, %v2105
  %v2155 = vpack.c.bf16 %v2108, %v2107
  %v2156 = vpack.c.bf16 %v2110, %v2109
  %v2157 = vpack.c.bf16 %v2112, %v2111
  %v2158 = vpack.c.bf16 %v2114, %v2113
  %v2159 = vpack.c.bf16 %v2116, %v2115
  %v2160 = vpack.c.bf16 %v2118, %v2117
  %v2161 = vpack.c.bf16 %v2120, %v2119
  %v2162 = vpack.c.bf16 %v2122, %v2121
  %v2163 = vpack.c.bf16 %v2124, %v2123
  %v2164 = vpack.c.bf16 %v2126, %v2125
  %v2165 = vpack.c.bf16 %v2128, %v2127
  %v2166 = vpack.c.bf16 %v2130, %v2129
  %v2167 = vpack.c.bf16 %v2132, %v2131
  %v2168 = vpack.c.bf16 %v2134, %v2133
  %v2169 = vpack.c.bf16 %v2136, %v2135
  %v2170 = vpack.c.bf16 %v2138, %v2137
  %v2171 = vld [vmem:[%s8] sm:$0xf]
  %v2173 = vsel %vm1445, %v2139, 0
  %v2176 = vsel %vm1445, %v2140, 0
  %v2179 = vsel %vm1445, %v2141, 0
  %v2182 = vsel %vm1445, %v2142, 0
  %v2185 = vsel %vm1445, %v2143, 0
  %v2188 = vsel %vm1445, %v2144, 0
  %v2191 = vsel %vm1445, %v2145, 0
  %v2194 = vsel %vm1445, %v2146, 0
  %v2197 = vsel %vm1445, %v2147, 0
  %v2200 = vsel %vm1445, %v2148, 0
  %v2203 = vsel %vm1445, %v2149, 0
  %v2206 = vsel %vm1445, %v2150, 0
  %v2209 = vsel %vm1445, %v2151, 0
  %v2212 = vsel %vm1445, %v2152, 0
  %v2215 = vsel %vm1445, %v2153, 0
  %v2218 = vsel %vm1445, %v2154, 0
  %v2221 = vsel %vm1445, %v2155, 0
  %v2224 = vsel %vm1445, %v2156, 0
  %v2227 = vsel %vm1445, %v2157, 0
  %v2230 = vsel %vm1445, %v2158, 0
  %v2233 = vsel %vm1445, %v2159, 0
  %v2236 = vsel %vm1445, %v2160, 0
  %v2239 = vsel %vm1445, %v2161, 0
  %v2242 = vsel %vm1445, %v2162, 0
  %v2245 = vsel %vm1445, %v2163, 0
  %v2248 = vsel %vm1445, %v2164, 0
  %v2251 = vsel %vm1445, %v2165, 0
  %v2254 = vsel %vm1445, %v2166, 0
  %v2257 = vsel %vm1445, %v2167, 0
  %v2260 = vsel %vm1445, %v2168, 0
  %v2263 = vsel %vm1445, %v2169, 0
  %v2266 = vsel %vm1445, %v2170, 0
  %vm2268 = vcmask 1043456
  %v2270 = vsel %vm2268, %v2171, 0
  %2272 = vmatpush.bf16.msra.mxu0 0
  %2273 = vmatpush.bf16.msra.mxu0 0
  %2274 = vmatpush.bf16.msra.mxu0 0
  %2275 = vmatpush.bf16.msra.mxu0 0
  %2276 = vmatpush.bf16.msra.mxu0 0
  %2277 = vmatpush.bf16.msra.mxu0 0
  %2278 = vmatpush.bf16.msra.mxu0 0
  %2279 = vmatpush.bf16.msra.mxu0 %v2270
  %2280 = vmatmul.bf16.gmra.mxu0 %v2173
  %v2281 = vpop.f32.mrf.mxu0
  %v2282 = vadd.f32 0.0, %v2281
  %v2283 = vpop.f32.mrf.mxu0
  %v2284 = vadd.f32 0.0, %v2283
  %2285 = vmatmul.bf16.gmra.mxu0 %v2176
  %v2286 = vpop.f32.mrf.mxu0
  %v2287 = vadd.f32 0.0, %v2286
  %v2288 = vpop.f32.mrf.mxu0
  %v2289 = vadd.f32 0.0, %v2288
  %2290 = vmatmul.bf16.gmra.mxu0 %v2179
  %v2291 = vpop.f32.mrf.mxu0
  %v2292 = vadd.f32 0.0, %v2291
  %v2293 = vpop.f32.mrf.mxu0
  %v2294 = vadd.f32 0.0, %v2293
  %2295 = vmatmul.bf16.gmra.mxu0 %v2182
  %v2296 = vpop.f32.mrf.mxu0
  %v2297 = vadd.f32 0.0, %v2296
  %v2298 = vpop.f32.mrf.mxu0
  %v2299 = vadd.f32 0.0, %v2298
  %2300 = vmatmul.bf16.gmra.mxu0 %v2185
  %v2301 = vpop.f32.mrf.mxu0
  %v2302 = vadd.f32 0.0, %v2301
  %v2303 = vpop.f32.mrf.mxu0
  %v2304 = vadd.f32 0.0, %v2303
  %2305 = vmatmul.bf16.gmra.mxu0 %v2188
  %v2306 = vpop.f32.mrf.mxu0
  %v2307 = vadd.f32 0.0, %v2306
  %v2308 = vpop.f32.mrf.mxu0
  %v2309 = vadd.f32 0.0, %v2308
  %2310 = vmatmul.bf16.gmra.mxu0 %v2191
  %v2311 = vpop.f32.mrf.mxu0
  %v2312 = vadd.f32 0.0, %v2311
  %v2313 = vpop.f32.mrf.mxu0
  %v2314 = vadd.f32 0.0, %v2313
  %2315 = vmatmul.bf16.gmra.mxu0 %v2194
  %v2316 = vpop.f32.mrf.mxu0
  %v2317 = vadd.f32 0.0, %v2316
  %v2318 = vpop.f32.mrf.mxu0
  %v2319 = vadd.f32 0.0, %v2318
  %2320 = vmatmul.bf16.gmra.mxu0 %v2197
  %v2321 = vpop.f32.mrf.mxu0
  %v2322 = vadd.f32 0.0, %v2321
  %v2323 = vpop.f32.mrf.mxu0
  %v2324 = vadd.f32 0.0, %v2323
  %2325 = vmatmul.bf16.gmra.mxu0 %v2200
  %v2326 = vpop.f32.mrf.mxu0
  %v2327 = vadd.f32 0.0, %v2326
  %v2328 = vpop.f32.mrf.mxu0
  %v2329 = vadd.f32 0.0, %v2328
  %2330 = vmatmul.bf16.gmra.mxu0 %v2203
  %v2331 = vpop.f32.mrf.mxu0
  %v2332 = vadd.f32 0.0, %v2331
  %v2333 = vpop.f32.mrf.mxu0
  %v2334 = vadd.f32 0.0, %v2333
  %2335 = vmatmul.bf16.gmra.mxu0 %v2206
  %v2336 = vpop.f32.mrf.mxu0
  %v2337 = vadd.f32 0.0, %v2336
  %v2338 = vpop.f32.mrf.mxu0
  %v2339 = vadd.f32 0.0, %v2338
  %2340 = vmatmul.bf16.gmra.mxu0 %v2209
  %v2341 = vpop.f32.mrf.mxu0
  %v2342 = vadd.f32 0.0, %v2341
  %v2343 = vpop.f32.mrf.mxu0
  %v2344 = vadd.f32 0.0, %v2343
  %2345 = vmatmul.bf16.gmra.mxu0 %v2212
  %v2346 = vpop.f32.mrf.mxu0
  %v2347 = vadd.f32 0.0, %v2346
  %v2348 = vpop.f32.mrf.mxu0
  %v2349 = vadd.f32 0.0, %v2348
  %2350 = vmatmul.bf16.gmra.mxu0 %v2215
  %v2351 = vpop.f32.mrf.mxu0
  %v2352 = vadd.f32 0.0, %v2351
  %v2353 = vpop.f32.mrf.mxu0
  %v2354 = vadd.f32 0.0, %v2353
  %2355 = vmatmul.bf16.gmra.mxu0 %v2218
  %v2356 = vpop.f32.mrf.mxu0
  %v2357 = vadd.f32 0.0, %v2356
  %v2358 = vpop.f32.mrf.mxu0
  %v2359 = vadd.f32 0.0, %v2358
  %2360 = vmatmul.bf16.gmra.mxu0 %v2221
  %v2361 = vpop.f32.mrf.mxu0
  %v2362 = vadd.f32 0.0, %v2361
  %v2363 = vpop.f32.mrf.mxu0
  %v2364 = vadd.f32 0.0, %v2363
  %2365 = vmatmul.bf16.gmra.mxu0 %v2224
  %v2366 = vpop.f32.mrf.mxu0
  %v2367 = vadd.f32 0.0, %v2366
  %v2368 = vpop.f32.mrf.mxu0
  %v2369 = vadd.f32 0.0, %v2368
  %2370 = vmatmul.bf16.gmra.mxu0 %v2227
  %v2371 = vpop.f32.mrf.mxu0
  %v2372 = vadd.f32 0.0, %v2371
  %v2373 = vpop.f32.mrf.mxu0
  %v2374 = vadd.f32 0.0, %v2373
  %2375 = vmatmul.bf16.gmra.mxu0 %v2230
  %v2376 = vpop.f32.mrf.mxu0
  %v2377 = vadd.f32 0.0, %v2376
  %v2378 = vpop.f32.mrf.mxu0
  %v2379 = vadd.f32 0.0, %v2378
  %2380 = vmatmul.bf16.gmra.mxu0 %v2233
  %v2381 = vpop.f32.mrf.mxu0
  %v2382 = vadd.f32 0.0, %v2381
  %v2383 = vpop.f32.mrf.mxu0
  %v2384 = vadd.f32 0.0, %v2383
  %2385 = vmatmul.bf16.gmra.mxu0 %v2236
  %v2386 = vpop.f32.mrf.mxu0
  %v2387 = vadd.f32 0.0, %v2386
  %v2388 = vpop.f32.mrf.mxu0
  %v2389 = vadd.f32 0.0, %v2388
  %2390 = vmatmul.bf16.gmra.mxu0 %v2239
  %v2391 = vpop.f32.mrf.mxu0
  %v2392 = vadd.f32 0.0, %v2391
  %v2393 = vpop.f32.mrf.mxu0
  %v2394 = vadd.f32 0.0, %v2393
  %2395 = vmatmul.bf16.gmra.mxu0 %v2242
  %v2396 = vpop.f32.mrf.mxu0
  %v2397 = vadd.f32 0.0, %v2396
  %v2398 = vpop.f32.mrf.mxu0
  %v2399 = vadd.f32 0.0, %v2398
  %2400 = vmatmul.bf16.gmra.mxu0 %v2245
  %v2401 = vpop.f32.mrf.mxu0
  %v2402 = vadd.f32 0.0, %v2401
  %v2403 = vpop.f32.mrf.mxu0
  %v2404 = vadd.f32 0.0, %v2403
  %2405 = vmatmul.bf16.gmra.mxu0 %v2248
  %v2406 = vpop.f32.mrf.mxu0
  %v2407 = vadd.f32 0.0, %v2406
  %v2408 = vpop.f32.mrf.mxu0
  %v2409 = vadd.f32 0.0, %v2408
  %2410 = vmatmul.bf16.gmra.mxu0 %v2251
  %v2411 = vpop.f32.mrf.mxu0
  %v2412 = vadd.f32 0.0, %v2411
  %v2413 = vpop.f32.mrf.mxu0
  %v2414 = vadd.f32 0.0, %v2413
  %2415 = vmatmul.bf16.gmra.mxu0 %v2254
  %v2416 = vpop.f32.mrf.mxu0
  %v2417 = vadd.f32 0.0, %v2416
  %v2418 = vpop.f32.mrf.mxu0
  %v2419 = vadd.f32 0.0, %v2418
  %2420 = vmatmul.bf16.gmra.mxu0 %v2257
  %v2421 = vpop.f32.mrf.mxu0
  %v2422 = vadd.f32 0.0, %v2421
  %v2423 = vpop.f32.mrf.mxu0
  %v2424 = vadd.f32 0.0, %v2423
  %2425 = vmatmul.bf16.gmra.mxu0 %v2260
  %v2426 = vpop.f32.mrf.mxu0
  %v2427 = vadd.f32 0.0, %v2426
  %v2428 = vpop.f32.mrf.mxu0
  %v2429 = vadd.f32 0.0, %v2428
  %2430 = vmatmul.bf16.gmra.mxu0 %v2263
  %v2431 = vpop.f32.mrf.mxu0
  %v2432 = vadd.f32 0.0, %v2431
  %v2433 = vpop.f32.mrf.mxu0
  %v2434 = vadd.f32 0.0, %v2433
  %2435 = vmatmul.bf16.gmra.mxu0 %v2266
  %v2436 = vpop.f32.mrf.mxu0
  %v2437 = vadd.f32 0.0, %v2436
  %v2438 = vpop.f32.mrf.mxu0
  %v2439 = vadd.f32 0.0, %v2438
  %2440 = vdwg.mxu0
  %v2444 = vunpack.c.l.b16 %v1872
  %v2445 = vunpack.c.l.b16 %v1873
  %v2446 = vunpack.c.l.b16 %v1874
  %v2447 = vpack.c.b16 %v2445, %v2444
  %v2448 = vpack.c.b16 %v2446, %v2446
  %vm2450 = vcmask 162816
  %v2452 = vsel %vm2450, %v1840, 0
  %v2455 = vsel %vm2450, %v1841, 0
  %v2458 = vsel %vm2450, %v1842, 0
  %v2461 = vsel %vm2450, %v1843, 0
  %v2464 = vsel %vm2450, %v1844, 0
  %v2467 = vsel %vm2450, %v1845, 0
  %v2470 = vsel %vm2450, %v1846, 0
  %v2473 = vsel %vm2450, %v1847, 0
  %v2476 = vsel %vm2450, %v1848, 0
  %v2479 = vsel %vm2450, %v1849, 0
  %v2482 = vsel %vm2450, %v1850, 0
  %v2485 = vsel %vm2450, %v1851, 0
  %v2488 = vsel %vm2450, %v1852, 0
  %v2491 = vsel %vm2450, %v1853, 0
  %v2494 = vsel %vm2450, %v1854, 0
  %v2497 = vsel %vm2450, %v1855, 0
  %v2500 = vsel %vm2450, %v1856, 0
  %v2503 = vsel %vm2450, %v1857, 0
  %v2506 = vsel %vm2450, %v1858, 0
  %v2509 = vsel %vm2450, %v1859, 0
  %v2512 = vsel %vm2450, %v1860, 0
  %v2515 = vsel %vm2450, %v1861, 0
  %v2518 = vsel %vm2450, %v1862, 0
  %v2521 = vsel %vm2450, %v1863, 0
  %v2524 = vsel %vm2450, %v1864, 0
  %v2527 = vsel %vm2450, %v1865, 0
  %v2530 = vsel %vm2450, %v1866, 0
  %v2533 = vsel %vm2450, %v1867, 0
  %v2536 = vsel %vm2450, %v1868, 0
  %v2539 = vsel %vm2450, %v1869, 0
  %v2542 = vsel %vm2450, %v1870, 0
  %v2545 = vsel %vm2450, %v1871, 0
  %vm2547 = vcmask 1041408
  %v2549 = vsel %vm2547, %v2448, 0
  %2551 = vmatpush.bf16.msra.mxu0 0
  %2552 = vmatpush.bf16.msra.mxu0 0
  %2553 = vmatpush.bf16.msra.mxu0 0
  %2554 = vmatpush.bf16.msra.mxu0 0
  %2555 = vmatpush.bf16.msra.mxu0 0
  %2556 = vmatpush.bf16.msra.mxu0 0
  %2557 = vmatpush.bf16.msra.mxu0 %v2549
  %2558 = vmatpush.bf16.msra.mxu0 %v2447
  %2559 = vmatmul.bf16.gmra.mxu0 %v2452
  %v2560 = vpop.f32.mrf.mxu0
  %v2561 = vadd.f32 %v2282, %v2560
  %v2562 = vpop.f32.mrf.mxu0
  %v2563 = vadd.f32 %v2284, %v2562
  %2564 = vmatmul.bf16.gmra.mxu0 %v2455
  %v2565 = vpop.f32.mrf.mxu0
  %v2566 = vadd.f32 %v2287, %v2565
  %v2567 = vpop.f32.mrf.mxu0
  %v2568 = vadd.f32 %v2289, %v2567
  %2569 = vmatmul.bf16.gmra.mxu0 %v2458
  %v2570 = vpop.f32.mrf.mxu0
  %v2571 = vadd.f32 %v2292, %v2570
  %v2572 = vpop.f32.mrf.mxu0
  %v2573 = vadd.f32 %v2294, %v2572
  %2574 = vmatmul.bf16.gmra.mxu0 %v2461
  %v2575 = vpop.f32.mrf.mxu0
  %v2576 = vadd.f32 %v2297, %v2575
  %v2577 = vpop.f32.mrf.mxu0
  %v2578 = vadd.f32 %v2299, %v2577
  %2579 = vmatmul.bf16.gmra.mxu0 %v2464
  %v2580 = vpop.f32.mrf.mxu0
  %v2581 = vadd.f32 %v2302, %v2580
  %v2582 = vpop.f32.mrf.mxu0
  %v2583 = vadd.f32 %v2304, %v2582
  %2584 = vmatmul.bf16.gmra.mxu0 %v2467
  %v2585 = vpop.f32.mrf.mxu0
  %v2586 = vadd.f32 %v2307, %v2585
  %v2587 = vpop.f32.mrf.mxu0
  %v2588 = vadd.f32 %v2309, %v2587
  %2589 = vmatmul.bf16.gmra.mxu0 %v2470
  %v2590 = vpop.f32.mrf.mxu0
  %v2591 = vadd.f32 %v2312, %v2590
  %v2592 = vpop.f32.mrf.mxu0
  %v2593 = vadd.f32 %v2314, %v2592
  %2594 = vmatmul.bf16.gmra.mxu0 %v2473
  %v2595 = vpop.f32.mrf.mxu0
  %v2596 = vadd.f32 %v2317, %v2595
  %v2597 = vpop.f32.mrf.mxu0
  %v2598 = vadd.f32 %v2319, %v2597
  %2599 = vmatmul.bf16.gmra.mxu0 %v2476
  %v2600 = vpop.f32.mrf.mxu0
  %v2601 = vadd.f32 %v2322, %v2600
  %v2602 = vpop.f32.mrf.mxu0
  %v2603 = vadd.f32 %v2324, %v2602
  %2604 = vmatmul.bf16.gmra.mxu0 %v2479
  %v2605 = vpop.f32.mrf.mxu0
  %v2606 = vadd.f32 %v2327, %v2605
  %v2607 = vpop.f32.mrf.mxu0
  %v2608 = vadd.f32 %v2329, %v2607
  %2609 = vmatmul.bf16.gmra.mxu0 %v2482
  %v2610 = vpop.f32.mrf.mxu0
  %v2611 = vadd.f32 %v2332, %v2610
  %v2612 = vpop.f32.mrf.mxu0
  %v2613 = vadd.f32 %v2334, %v2612
  %2614 = vmatmul.bf16.gmra.mxu0 %v2485
  %v2615 = vpop.f32.mrf.mxu0
  %v2616 = vadd.f32 %v2337, %v2615
  %v2617 = vpop.f32.mrf.mxu0
  %v2618 = vadd.f32 %v2339, %v2617
  %2619 = vmatmul.bf16.gmra.mxu0 %v2488
  %v2620 = vpop.f32.mrf.mxu0
  %v2621 = vadd.f32 %v2342, %v2620
  %v2622 = vpop.f32.mrf.mxu0
  %v2623 = vadd.f32 %v2344, %v2622
  %2624 = vmatmul.bf16.gmra.mxu0 %v2491
  %v2625 = vpop.f32.mrf.mxu0
  %v2626 = vadd.f32 %v2347, %v2625
  %v2627 = vpop.f32.mrf.mxu0
  %v2628 = vadd.f32 %v2349, %v2627
  %2629 = vmatmul.bf16.gmra.mxu0 %v2494
  %v2630 = vpop.f32.mrf.mxu0
  %v2631 = vadd.f32 %v2352, %v2630
  %v2632 = vpop.f32.mrf.mxu0
  %v2633 = vadd.f32 %v2354, %v2632
  %2634 = vmatmul.bf16.gmra.mxu0 %v2497
  %v2635 = vpop.f32.mrf.mxu0
  %v2636 = vadd.f32 %v2357, %v2635
  %v2637 = vpop.f32.mrf.mxu0
  %v2638 = vadd.f32 %v2359, %v2637
  %2639 = vmatmul.bf16.gmra.mxu0 %v2500
  %v2640 = vpop.f32.mrf.mxu0
  %v2641 = vadd.f32 %v2362, %v2640
  %v2642 = vpop.f32.mrf.mxu0
  %v2643 = vadd.f32 %v2364, %v2642
  %2644 = vmatmul.bf16.gmra.mxu0 %v2503
  %v2645 = vpop.f32.mrf.mxu0
  %v2646 = vadd.f32 %v2367, %v2645
  %v2647 = vpop.f32.mrf.mxu0
  %v2648 = vadd.f32 %v2369, %v2647
  %2649 = vmatmul.bf16.gmra.mxu0 %v2506
  %v2650 = vpop.f32.mrf.mxu0
  %v2651 = vadd.f32 %v2372, %v2650
  %v2652 = vpop.f32.mrf.mxu0
  %v2653 = vadd.f32 %v2374, %v2652
  %2654 = vmatmul.bf16.gmra.mxu0 %v2509
  %v2655 = vpop.f32.mrf.mxu0
  %v2656 = vadd.f32 %v2377, %v2655
  %v2657 = vpop.f32.mrf.mxu0
  %v2658 = vadd.f32 %v2379, %v2657
  %2659 = vmatmul.bf16.gmra.mxu0 %v2512
  %v2660 = vpop.f32.mrf.mxu0
  %v2661 = vadd.f32 %v2382, %v2660
  %v2662 = vpop.f32.mrf.mxu0
  %v2663 = vadd.f32 %v2384, %v2662
  %2664 = vmatmul.bf16.gmra.mxu0 %v2515
  %v2665 = vpop.f32.mrf.mxu0
  %v2666 = vadd.f32 %v2387, %v2665
  %v2667 = vpop.f32.mrf.mxu0
  %v2668 = vadd.f32 %v2389, %v2667
  %2669 = vmatmul.bf16.gmra.mxu0 %v2518
  %v2670 = vpop.f32.mrf.mxu0
  %v2671 = vadd.f32 %v2392, %v2670
  %v2672 = vpop.f32.mrf.mxu0
  %v2673 = vadd.f32 %v2394, %v2672
  %2674 = vmatmul.bf16.gmra.mxu0 %v2521
  %v2675 = vpop.f32.mrf.mxu0
  %v2676 = vadd.f32 %v2397, %v2675
  %v2677 = vpop.f32.mrf.mxu0
  %v2678 = vadd.f32 %v2399, %v2677
  %2679 = vmatmul.bf16.gmra.mxu0 %v2524
  %v2680 = vpop.f32.mrf.mxu0
  %v2681 = vadd.f32 %v2402, %v2680
  %v2682 = vpop.f32.mrf.mxu0
  %v2683 = vadd.f32 %v2404, %v2682
  %2684 = vmatmul.bf16.gmra.mxu0 %v2527
  %v2685 = vpop.f32.mrf.mxu0
  %v2686 = vadd.f32 %v2407, %v2685
  %v2687 = vpop.f32.mrf.mxu0
  %v2688 = vadd.f32 %v2409, %v2687
  %2689 = vmatmul.bf16.gmra.mxu0 %v2530
  %v2690 = vpop.f32.mrf.mxu0
  %v2691 = vadd.f32 %v2412, %v2690
  %v2692 = vpop.f32.mrf.mxu0
  %v2693 = vadd.f32 %v2414, %v2692
  %2694 = vmatmul.bf16.gmra.mxu0 %v2533
  %v2695 = vpop.f32.mrf.mxu0
  %v2696 = vadd.f32 %v2417, %v2695
  %v2697 = vpop.f32.mrf.mxu0
  %v2698 = vadd.f32 %v2419, %v2697
  %2699 = vmatmul.bf16.gmra.mxu0 %v2536
  %v2700 = vpop.f32.mrf.mxu0
  %v2701 = vadd.f32 %v2422, %v2700
  %v2702 = vpop.f32.mrf.mxu0
  %v2703 = vadd.f32 %v2424, %v2702
  %2704 = vmatmul.bf16.gmra.mxu0 %v2539
  %v2705 = vpop.f32.mrf.mxu0
  %v2706 = vadd.f32 %v2427, %v2705
  %v2707 = vpop.f32.mrf.mxu0
  %v2708 = vadd.f32 %v2429, %v2707
  %2709 = vmatmul.bf16.gmra.mxu0 %v2542
  %v2710 = vpop.f32.mrf.mxu0
  %v2711 = vadd.f32 %v2432, %v2710
  %v2712 = vpop.f32.mrf.mxu0
  %v2713 = vadd.f32 %v2434, %v2712
  %2714 = vmatmul.bf16.gmra.mxu0 %v2545
  %v2715 = vpop.f32.mrf.mxu0
  %v2716 = vadd.f32 %v2437, %v2715
  %v2717 = vpop.f32.mrf.mxu0
  %v2718 = vadd.f32 %v2439, %v2717
  %2719 = vdwg.mxu0
  %2720 = vst.msk [vmem:[%s9] sm:$0xff] %vm1445, %v2561
  %2721 = vst.msk [vmem:[%s9 + $0x8] sm:$0xff] %vm1445, %v2563
  %2722 = vst.msk [vmem:[%s9 + $0x10] sm:$0xff] %vm1445, %v2566
  %2723 = vst.msk [vmem:[%s9 + $0x18] sm:$0xff] %vm1445, %v2568
  %2724 = vst.msk [vmem:[%s9 + $0x20] sm:$0xff] %vm1445, %v2571
  %2725 = vst.msk [vmem:[%s9 + $0x28] sm:$0xff] %vm1445, %v2573
  %2726 = vst.msk [vmem:[%s9 + $0x30] sm:$0xff] %vm1445, %v2576
  %2727 = vst.msk [vmem:[%s9 + $0x38] sm:$0xff] %vm1445, %v2578
  %2728 = vst.msk [vmem:[%s9 + $0x40] sm:$0xff] %vm1445, %v2581
  %2729 = vst.msk [vmem:[%s9 + $0x48] sm:$0xff] %vm1445, %v2583
  %2730 = vst.msk [vmem:[%s9 + $0x50] sm:$0xff] %vm1445, %v2586
  %2731 = vst.msk [vmem:[%s9 + $0x58] sm:$0xff] %vm1445, %v2588
  %2732 = vst.msk [vmem:[%s9 + $0x60] sm:$0xff] %vm1445, %v2591
  %2733 = vst.msk [vmem:[%s9 + $0x68] sm:$0xff] %vm1445, %v2593
  %2734 = vst.msk [vmem:[%s9 + $0x70] sm:$0xff] %vm1445, %v2596
  %2735 = vst.msk [vmem:[%s9 + $0x78] sm:$0xff] %vm1445, %v2598
  %2736 = vst.msk [vmem:[%s9 + $0x80] sm:$0xff] %vm1445, %v2601
  %2737 = vst.msk [vmem:[%s9 + $0x88] sm:$0xff] %vm1445, %v2603
  %2738 = vst.msk [vmem:[%s9 + $0x90] sm:$0xff] %vm1445, %v2606
  %2739 = vst.msk [vmem:[%s9 + $0x98] sm:$0xff] %vm1445, %v2608
  %2740 = vst.msk [vmem:[%s9 + $0xa0] sm:$0xff] %vm1445, %v2611
  %2741 = vst.msk [vmem:[%s9 + $0xa8] sm:$0xff] %vm1445, %v2613
  %2742 = vst.msk [vmem:[%s9 + $0xb0] sm:$0xff] %vm1445, %v2616
  %2743 = vst.msk [vmem:[%s9 + $0xb8] sm:$0xff] %vm1445, %v2618
  %2744 = vst.msk [vmem:[%s9 + $0xc0] sm:$0xff] %vm1445, %v2621
  %2745 = vst.msk [vmem:[%s9 + $0xc8] sm:$0xff] %vm1445, %v2623
  %2746 = vst.msk [vmem:[%s9 + $0xd0] sm:$0xff] %vm1445, %v2626
  %2747 = vst.msk [vmem:[%s9 + $0xd8] sm:$0xff] %vm1445, %v2628
  %2748 = vst.msk [vmem:[%s9 + $0xe0] sm:$0xff] %vm1445, %v2631
  %2749 = vst.msk [vmem:[%s9 + $0xe8] sm:$0xff] %vm1445, %v2633
  %2750 = vst.msk [vmem:[%s9 + $0xf0] sm:$0xff] %vm1445, %v2636
  %2751 = vst.msk [vmem:[%s9 + $0xf8] sm:$0xff] %vm1445, %v2638
  %2752 = vst.msk [vmem:[%s9 + $0x100] sm:$0xff] %vm1445, %v2641
  %2753 = vst.msk [vmem:[%s9 + $0x108] sm:$0xff] %vm1445, %v2643
  %2754 = vst.msk [vmem:[%s9 + $0x110] sm:$0xff] %vm1445, %v2646
  %2755 = vst.msk [vmem:[%s9 + $0x118] sm:$0xff] %vm1445, %v2648
  %2756 = vst.msk [vmem:[%s9 + $0x120] sm:$0xff] %vm1445, %v2651
  %2757 = vst.msk [vmem:[%s9 + $0x128] sm:$0xff] %vm1445, %v2653
  %2758 = vst.msk [vmem:[%s9 + $0x130] sm:$0xff] %vm1445, %v2656
  %2759 = vst.msk [vmem:[%s9 + $0x138] sm:$0xff] %vm1445, %v2658
  %2760 = vst.msk [vmem:[%s9 + $0x140] sm:$0xff] %vm1445, %v2661
  %2761 = vst.msk [vmem:[%s9 + $0x148] sm:$0xff] %vm1445, %v2663
  %2762 = vst.msk [vmem:[%s9 + $0x150] sm:$0xff] %vm1445, %v2666
  %2763 = vst.msk [vmem:[%s9 + $0x158] sm:$0xff] %vm1445, %v2668
  %2764 = vst.msk [vmem:[%s9 + $0x160] sm:$0xff] %vm1445, %v2671
  %2765 = vst.msk [vmem:[%s9 + $0x168] sm:$0xff] %vm1445, %v2673
  %2766 = vst.msk [vmem:[%s9 + $0x170] sm:$0xff] %vm1445, %v2676
  %2767 = vst.msk [vmem:[%s9 + $0x178] sm:$0xff] %vm1445, %v2678
  %2768 = vst.msk [vmem:[%s9 + $0x180] sm:$0xff] %vm1445, %v2681
  %2769 = vst.msk [vmem:[%s9 + $0x188] sm:$0xff] %vm1445, %v2683
  %2770 = vst.msk [vmem:[%s9 + $0x190] sm:$0xff] %vm1445, %v2686
  %2771 = vst.msk [vmem:[%s9 + $0x198] sm:$0xff] %vm1445, %v2688
  %2772 = vst.msk [vmem:[%s9 + $0x1a0] sm:$0xff] %vm1445, %v2691
  %2773 = vst.msk [vmem:[%s9 + $0x1a8] sm:$0xff] %vm1445, %v2693
  %2774 = vst.msk [vmem:[%s9 + $0x1b0] sm:$0xff] %vm1445, %v2696
  %2775 = vst.msk [vmem:[%s9 + $0x1b8] sm:$0xff] %vm1445, %v2698
  %2776 = vst.msk [vmem:[%s9 + $0x1c0] sm:$0xff] %vm1445, %v2701
  %2777 = vst.msk [vmem:[%s9 + $0x1c8] sm:$0xff] %vm1445, %v2703
  %2778 = vst.msk [vmem:[%s9 + $0x1d0] sm:$0xff] %vm1445, %v2706
  %2779 = vst.msk [vmem:[%s9 + $0x1d8] sm:$0xff] %vm1445, %v2708
  %2780 = vst.msk [vmem:[%s9 + $0x1e0] sm:$0xff] %vm1445, %v2711
  %2781 = vst.msk [vmem:[%s9 + $0x1e8] sm:$0xff] %vm1445, %v2713
  %2782 = vst.msk [vmem:[%s9 + $0x1f0] sm:$0xff] %vm1445, %v2716
  %2783 = vst.msk [vmem:[%s9 + $0x1f8] sm:$0xff] %vm1445, %v2718
  // Predicated region
  $region38: #{pappm_forward.5} parent=0 // pred_check
    _
  $region39: #{pappm_forward.5} parent=0 // pred_check_branch
    %2785 = sbr.rel (0) target = $region41
  $region40: #{pappm_forward.5} parent=0 // pred_region
    _
  $region41: #{pappm_forward.5} parent=0 // pred_fallthru
    _
  // Predicated region
  $region42: #{pappm_forward.5} parent=0 // pred_check
    _
  $region43: #{pappm_forward.5} parent=0 // pred_check_branch
    %2787 = sbr.rel (0) target = $region45
  $region44: #{pappm_forward.5} parent=0 // pred_region
    _
  $region45: #{pappm_forward.5} parent=0 // pred_fallthru
    _

// kernel: pappm_forward.4
$region0: #{pappm_forward.4}
  #allocation0 [shape = 'u32[]', space=smem, size = 0x4, offset = 0x4, fixed_abs, tag = 'smem constant byte address 0x4 - core index']
  #allocation1 [shape = 'u32[72,128]{1,0:T(1,128)}', space=vmem, size = 0x9000, scoped, tag = 'internal scratch']
  #allocation2 [shape = 'f32[18,18,4]{2,1,0:T(8,128)}', space=vmem, size = 0x36000, scoped, tag = 'scratch operand']
  %s0 = inlined_call_operand.vmem [shape: bf16[4,64,256], index: 0, kind: input, shape index: {}]
  %s1 = inlined_call_operand.vmem [shape: bf16[4,256,64], index: 1, kind: input, shape index: {}]
  %s2 = inlined_call_operand.vmem [shape: f32[2,256,8], index: 2, kind: input, shape index: {}]
  %s3 = inlined_call_operand.vmem [shape: f32[4,1,8], index: 3, kind: input, shape index: {}]
  %s4 = inlined_call_operand.vmem [shape: f32[4,1,8], index: 4, kind: input, shape index: {}]
  %s5 = inlined_call_operand.vmem [shape: bf16[4,8,4], index: 5, kind: input, shape index: {}]
  %s6 = inlined_call_operand.vmem [shape: f32[2,256,4], index: 6, kind: input, shape index: {}]
  %s7 = inlined_call_operand.vmem [shape: f32[4,1,4], index: 7, kind: input, shape index: {}]
  %s8 = inlined_call_operand.vmem [shape: f32[4,1,4], index: 8, kind: input, shape index: {}]
  %s9 = inlined_call_operand.vmem [shape: bf16[4,36,4], index: 9, kind: input, shape index: {}]
  %s10 = inlined_call_operand.vmem [shape: f32[4,2,256,4], index: 10, kind: output, shape index: {}]
  %s11 = sld [smem:[#allocation0]]
  $region73: #{pappm_forward.4} parent=0
    _
  %s13 = ssub.s32 1, %s11
  %s14 = scalar_select 0, %s13, %s11
  loop: start=0, step=1, limit=10
  $region2: #{pappm_forward.4} parent=0 // loop_pre_header
    _
  $region3: #{pappm_forward.4} parent=0 // loop_header
    %s16 = sphi 0, %s20
    %p17 = scmp.ge.s32.totalorder %s16, 10
    %s23 = sphi 0, %s35
    %s24 = sphi 0, %s31
    %s25 = sphi 0, %s23
    %s26 = sphi 0, %s24
    %s27 = sphi 0, %s25
    %s28 = sphi 0, %s26
    %s38 = sphi 0, %s40
    %s41 = sphi 0, %s38
    %s42 = sphi 0, %s41
    %s58 = sphi 0, %s42
    %s64 = sphi 0, %s66
    %s67 = sphi 0, %s64
    %s68 = sphi 0, %s67
    %s84 = sphi 0, %s68
    %s90 = sphi 0, %s92
    %s93 = sphi 0, %s90
    %s94 = sphi 0, %s93
    %s110 = sphi 0, %s94
    %s116 = sphi 0, %s118
    %s119 = sphi 0, %s116
    %s120 = sphi 0, %s119
    %s136 = sphi 0, %s120
    %s142 = sphi 0, %s144
    %s145 = sphi 0, %s142
    %s146 = sphi 0, %s145
    %s162 = sphi 0, %s146
    %s168 = sphi 0, %s170
    %s171 = sphi 0, %s168
    %s172 = sphi 0, %s171
    %s188 = sphi 0, %s172
    %s194 = sphi 0, %s196
    %s197 = sphi 0, %s194
    %s198 = sphi 0, %s197
    %s214 = sphi 0, %s198
    %s220 = sphi 0, %s222
    %s223 = sphi 0, %s220
    %s224 = sphi 0, %s223
    %s240 = sphi 0, %s224
    %s246 = sphi 0, %s248
    %s249 = sphi 0, %s246
    %s250 = sphi 0, %s249
    %s266 = sphi 0, %s250
    %s272 = sphi 0, %s274
    %s275 = sphi 0, %s272
    %s276 = sphi 0, %s275
    %s292 = sphi 0, %s276
    %s300 = sphi 0, %s302
    %s303 = sphi 0, %s300
    %s304 = sphi 0, %s303
    %s320 = sphi 0, %s304
  $region4: #{pappm_forward.4} parent=0 // loop_header_branch
    %19 = sbr.rel (%p17) target = $region8
  $region5: #{pappm_forward.4} parent=0 // loop_body
    %s21 = ssub.s32 %s16, 1
    %s22 = ssub.s32 %s16, 2
    %s29 = sadd.s32 1, %s24
    %p30 = scmp.ge.s32.totalorder %s29, 4
    %s31 = scalar_select %p30, 0, %s29
    %s32 = sadd.s32 1, %s23
    %s33 = scalar_select %p30, %s32, %s23
    %p34 = scmp.ge.s32.totalorder %s33, 2
    %s35 = scalar_select %p34, 0, %s33
    %s36 = ssub.s32 %s24, %s31
    %p37 = scmp.eq.s32.totalorder %s36, 0
    %s39 = sadd.s32 %s38, 1
    %s40 = scalar_select %p37, %s38, %s39
    %p43 = pneg %p37
    %p44 = scmp.eq.s32.totalorder %s16, 7
    %p45 = por %p43, %p44
    %p46 = scmp.ne.s32.totalorder %s38, %s41
    %p47 = scmp.eq.s32.totalorder %s16, 0
    %p48 = por %p46, %p47
    %p49 = scmp.ne.s32.totalorder %s38, %s41
    %p50 = scmp.eq.s32.totalorder %s21, 7
    %p51 = por %p49, %p50
    %p52 = scmp.ne.s32.totalorder %s41, %s42
    %p53 = scmp.eq.s32.totalorder %s21, 0
    %p54 = por %p52, %p53
    %p55 = scmp.ne.s32.totalorder %s41, %s42
    %p56 = scmp.eq.s32.totalorder %s22, 7
    %p57 = por %p55, %p56
    %p59 = scmp.ne.s32.totalorder %s42, %s58
    %p60 = scmp.eq.s32.totalorder %s22, 0
    %p61 = por %p59, %p60
    %s62 = ssub.s32 %s24, %s31
    %p63 = scmp.eq.s32.totalorder %s62, 0
    %s65 = sadd.s32 %s64, 1
    %s66 = scalar_select %p63, %s64, %s65
    %p69 = pneg %p63
    %p70 = scmp.eq.s32.totalorder %s16, 7
    %p71 = por %p69, %p70
    %p72 = scmp.ne.s32.totalorder %s64, %s67
    %p73 = scmp.eq.s32.totalorder %s16, 0
    %p74 = por %p72, %p73
    %p75 = scmp.ne.s32.totalorder %s64, %s67
    %p76 = scmp.eq.s32.totalorder %s21, 7
    %p77 = por %p75, %p76
    %p78 = scmp.ne.s32.totalorder %s67, %s68
    %p79 = scmp.eq.s32.totalorder %s21, 0
    %p80 = por %p78, %p79
    %p81 = scmp.ne.s32.totalorder %s67, %s68
    %p82 = scmp.eq.s32.totalorder %s22, 7
    %p83 = por %p81, %p82
    %p85 = scmp.ne.s32.totalorder %s68, %s84
    %p86 = scmp.eq.s32.totalorder %s22, 0
    %p87 = por %p85, %p86
    %s88 = ssub.s32 %s23, %s35
    %p89 = scmp.eq.s32.totalorder %s88, 0
    %s91 = sadd.s32 %s90, 1
    %s92 = scalar_select %p89, %s90, %s91
    %p95 = pneg %p89
    %p96 = scmp.eq.s32.totalorder %s16, 7
    %p97 = por %p95, %p96
    %p98 = scmp.ne.s32.totalorder %s90, %s93
    %p99 = scmp.eq.s32.totalorder %s16, 0
    %p100 = por %p98, %p99
    %p101 = scmp.ne.s32.totalorder %s90, %s93
    %p102 = scmp.eq.s32.totalorder %s21, 7
    %p103 = por %p101, %p102
    %p104 = scmp.ne.s32.totalorder %s93, %s94
    %p105 = scmp.eq.s32.totalorder %s21, 0
    %p106 = por %p104, %p105
    %p107 = scmp.ne.s32.totalorder %s93, %s94
    %p108 = scmp.eq.s32.totalorder %s22, 7
    %p109 = por %p107, %p108
    %p111 = scmp.ne.s32.totalorder %s94, %s110
    %p112 = scmp.eq.s32.totalorder %s22, 0
    %p113 = por %p111, %p112
    %s114 = ssub.s32 %s24, %s31
    %p115 = scmp.eq.s32.totalorder %s114, 0
    %s117 = sadd.s32 %s116, 1
    %s118 = scalar_select %p115, %s116, %s117
    %p121 = pneg %p115
    %p122 = scmp.eq.s32.totalorder %s16, 7
    %p123 = por %p121, %p122
    %p124 = scmp.ne.s32.totalorder %s116, %s119
    %p125 = scmp.eq.s32.totalorder %s16, 0
    %p126 = por %p124, %p125
    %p127 = scmp.ne.s32.totalorder %s116, %s119
    %p128 = scmp.eq.s32.totalorder %s21, 7
    %p129 = por %p127, %p128
    %p130 = scmp.ne.s32.totalorder %s119, %s120
    %p131 = scmp.eq.s32.totalorder %s21, 0
    %p132 = por %p130, %p131
    %p133 = scmp.ne.s32.totalorder %s119, %s120
    %p134 = scmp.eq.s32.totalorder %s22, 7
    %p135 = por %p133, %p134
    %p137 = scmp.ne.s32.totalorder %s120, %s136
    %p138 = scmp.eq.s32.totalorder %s22, 0
    %p139 = por %p137, %p138
    %s140 = ssub.s32 %s24, %s31
    %p141 = scmp.eq.s32.totalorder %s140, 0
    %s143 = sadd.s32 %s142, 1
    %s144 = scalar_select %p141, %s142, %s143
    %p147 = pneg %p141
    %p148 = scmp.eq.s32.totalorder %s16, 7
    %p149 = por %p147, %p148
    %p150 = scmp.ne.s32.totalorder %s142, %s145
    %p151 = scmp.eq.s32.totalorder %s16, 0
    %p152 = por %p150, %p151
    %p153 = scmp.ne.s32.totalorder %s142, %s145
    %p154 = scmp.eq.s32.totalorder %s21, 7
    %p155 = por %p153, %p154
    %p156 = scmp.ne.s32.totalorder %s145, %s146
    %p157 = scmp.eq.s32.totalorder %s21, 0
    %p158 = por %p156, %p157
    %p159 = scmp.ne.s32.totalorder %s145, %s146
    %p160 = scmp.eq.s32.totalorder %s22, 7
    %p161 = por %p159, %p160
    %p163 = scmp.ne.s32.totalorder %s146, %s162
    %p164 = scmp.eq.s32.totalorder %s22, 0
    %p165 = por %p163, %p164
    %s166 = ssub.s32 %s24, %s31
    %p167 = scmp.eq.s32.totalorder %s166, 0
    %s169 = sadd.s32 %s168, 1
    %s170 = scalar_select %p167, %s168, %s169
    %p173 = pneg %p167
    %p174 = scmp.eq.s32.totalorder %s16, 7
    %p175 = por %p173, %p174
    %p176 = scmp.ne.s32.totalorder %s168, %s171
    %p177 = scmp.eq.s32.totalorder %s16, 0
    %p178 = por %p176, %p177
    %p179 = scmp.ne.s32.totalorder %s168, %s171
    %p180 = scmp.eq.s32.totalorder %s21, 7
    %p181 = por %p179, %p180
    %p182 = scmp.ne.s32.totalorder %s171, %s172
    %p183 = scmp.eq.s32.totalorder %s21, 0
    %p184 = por %p182, %p183
    %p185 = scmp.ne.s32.totalorder %s171, %s172
    %p186 = scmp.eq.s32.totalorder %s22, 7
    %p187 = por %p185, %p186
    %p189 = scmp.ne.s32.totalorder %s172, %s188
    %p190 = scmp.eq.s32.totalorder %s22, 0
    %p191 = por %p189, %p190
    %s192 = ssub.s32 %s23, %s35
    %p193 = scmp.eq.s32.totalorder %s192, 0
    %s195 = sadd.s32 %s194, 1
    %s196 = scalar_select %p193, %s194, %s195
    %p199 = pneg %p193
    %p200 = scmp.eq.s32.totalorder %s16, 7
    %p201 = por %p199, %p200
    %p202 = scmp.ne.s32.totalorder %s194, %s197
    %p203 = scmp.eq.s32.totalorder %s16, 0
    %p204 = por %p202, %p203
    %p205 = scmp.ne.s32.totalorder %s194, %s197
    %p206 = scmp.eq.s32.totalorder %s21, 7
    %p207 = por %p205, %p206
    %p208 = scmp.ne.s32.totalorder %s197, %s198
    %p209 = scmp.eq.s32.totalorder %s21, 0
    %p210 = por %p208, %p209
    %p211 = scmp.ne.s32.totalorder %s197, %s198
    %p212 = scmp.eq.s32.totalorder %s22, 7
    %p213 = por %p211, %p212
    %p215 = scmp.ne.s32.totalorder %s198, %s214
    %p216 = scmp.eq.s32.totalorder %s22, 0
    %p217 = por %p215, %p216
    %s218 = ssub.s32 %s24, %s31
    %p219 = scmp.eq.s32.totalorder %s218, 0
    %s221 = sadd.s32 %s220, 1
    %s222 = scalar_select %p219, %s220, %s221
    %p225 = pneg %p219
    %p226 = scmp.eq.s32.totalorder %s16, 7
    %p227 = por %p225, %p226
    %p228 = scmp.ne.s32.totalorder %s220, %s223
    %p229 = scmp.eq.s32.totalorder %s16, 0
    %p230 = por %p228, %p229
    %p231 = scmp.ne.s32.totalorder %s220, %s223
    %p232 = scmp.eq.s32.totalorder %s21, 7
    %p233 = por %p231, %p232
    %p234 = scmp.ne.s32.totalorder %s223, %s224
    %p235 = scmp.eq.s32.totalorder %s21, 0
    %p236 = por %p234, %p235
    %p237 = scmp.ne.s32.totalorder %s223, %s224
    %p238 = scmp.eq.s32.totalorder %s22, 7
    %p239 = por %p237, %p238
    %p241 = scmp.ne.s32.totalorder %s224, %s240
    %p242 = scmp.eq.s32.totalorder %s22, 0
    %p243 = por %p241, %p242
    %s244 = ssub.s32 %s24, %s31
    %p245 = scmp.eq.s32.totalorder %s244, 0
    %s247 = sadd.s32 %s246, 1
    %s248 = scalar_select %p245, %s246, %s247
    %p251 = pneg %p245
    %p252 = scmp.eq.s32.totalorder %s16, 7
    %p253 = por %p251, %p252
    %p254 = scmp.ne.s32.totalorder %s246, %s249
    %p255 = scmp.eq.s32.totalorder %s16, 0
    %p256 = por %p254, %p255
    %p257 = scmp.ne.s32.totalorder %s246, %s249
    %p258 = scmp.eq.s32.totalorder %s21, 7
    %p259 = por %p257, %p258
    %p260 = scmp.ne.s32.totalorder %s249, %s250
    %p261 = scmp.eq.s32.totalorder %s21, 0
    %p262 = por %p260, %p261
    %p263 = scmp.ne.s32.totalorder %s249, %s250
    %p264 = scmp.eq.s32.totalorder %s22, 7
    %p265 = por %p263, %p264
    %p267 = scmp.ne.s32.totalorder %s250, %s266
    %p268 = scmp.eq.s32.totalorder %s22, 0
    %p269 = por %p267, %p268
    %s270 = ssub.s32 %s24, %s31
    %p271 = scmp.eq.s32.totalorder %s270, 0
    %s273 = sadd.s32 %s272, 1
    %s274 = scalar_select %p271, %s272, %s273
    %p277 = pneg %p271
    %p278 = scmp.eq.s32.totalorder %s16, 7
    %p279 = por %p277, %p278
    %p280 = scmp.ne.s32.totalorder %s272, %s275
    %p281 = scmp.eq.s32.totalorder %s16, 0
    %p282 = por %p280, %p281
    %p283 = scmp.ne.s32.totalorder %s272, %s275
    %p284 = scmp.eq.s32.totalorder %s21, 7
    %p285 = por %p283, %p284
    %p286 = scmp.ne.s32.totalorder %s275, %s276
    %p287 = scmp.eq.s32.totalorder %s21, 0
    %p288 = por %p286, %p287
    %p289 = scmp.ne.s32.totalorder %s275, %s276
    %p290 = scmp.eq.s32.totalorder %s22, 7
    %p291 = por %p289, %p290
    %p293 = scmp.ne.s32.totalorder %s276, %s292
    %p294 = scmp.eq.s32.totalorder %s22, 0
    %p295 = por %p293, %p294
    %s296 = ssub.s32 %s24, %s31
    %s297 = ssub.s32 %s23, %s35
    %s298 = sor.u32 %s296, %s297
    %p299 = scmp.eq.s32.totalorder %s298, 0
    %s301 = sadd.s32 %s300, 1
    %s302 = scalar_select %p299, %s300, %s301
    %p305 = pneg %p299
    %p306 = scmp.eq.s32.totalorder %s16, 7
    %p307 = por %p305, %p306
    %p308 = scmp.ne.s32.totalorder %s300, %s303
    %p309 = scmp.eq.s32.totalorder %s16, 0
    %p310 = por %p308, %p309
    %p311 = scmp.ne.s32.totalorder %s300, %s303
    %p312 = scmp.eq.s32.totalorder %s21, 7
    %p313 = por %p311, %p312
    %p314 = scmp.ne.s32.totalorder %s303, %s304
    %p315 = scmp.eq.s32.totalorder %s21, 0
    %p316 = por %p314, %p315
    %p317 = scmp.ne.s32.totalorder %s303, %s304
    %p318 = scmp.eq.s32.totalorder %s22, 7
    %p319 = por %p317, %p318
    %p321 = scmp.ne.s32.totalorder %s304, %s320
    %p322 = scmp.eq.s32.totalorder %s22, 0
    %p323 = por %p321, %p322
    %p324 = scmp.le.s32.totalorder 1, %s16
    %p325 = scmp.lt.s32.totalorder %s16, 9
    %p326 = pnand %p324, %p325
    %p327 = pneg %p326
    // Predicated region
    $region9: #{pappm_forward.4} parent=5 // pred_check
      _
    $region10: #{pappm_forward.4} parent=5 // pred_check_branch
      %329 = sbr.rel (%p326) target = $region12
    $region11: #{pappm_forward.4} parent=5 // pred_region
      %s330 = ssub.s32 %s16, 1
    $region12: #{pappm_forward.4} parent=5 // pred_fallthru
      _
    %p331 = scmp.lt.s32.totalorder %s16, 8
    // Predicated region
    $region13: #{pappm_forward.4} parent=5 // pred_check
      %p332 = pneg %p331
    $region14: #{pappm_forward.4} parent=5 // pred_check_branch
      %334 = sbr.rel (%p332) target = $region16
    $region15: #{pappm_forward.4} parent=5 // pred_region
      // Predicated region
      $region17: #{pappm_forward.4} parent=15 // pred_check
        %p335 = pneg %p48
      $region18: #{pappm_forward.4} parent=15 // pred_check_branch
        %337 = sbr.rel (%p335) target = $region20
      $region19: #{pappm_forward.4} parent=15 // pred_region
        %p338 = scmp.lt.s32.totalorder %s24, 3
        %s339 = scalar_select %p338, %s24, 3
        %s340 = smul.addr %s339, 16
        %s341 = smul.addr %s340, 4
        %s342 = scalar_lea.vmem %s0, %s341
      $region20: #{pappm_forward.4} parent=15 // pred_fallthru
        _
      // Predicated region
      $region21: #{pappm_forward.4} parent=15 // pred_check
        %p343 = pneg %p74
      $region22: #{pappm_forward.4} parent=15 // pred_check_branch
        %345 = sbr.rel (%p343) target = $region24
      $region23: #{pappm_forward.4} parent=15 // pred_region
        %p346 = scmp.lt.s32.totalorder %s24, 3
        %s347 = scalar_select %p346, %s24, 3
        %s348 = smul.addr %s347, 32
        %s349 = smul.addr %s348, 4
        %s350 = scalar_lea.vmem %s1, %s349
      $region24: #{pappm_forward.4} parent=15 // pred_fallthru
        _
      // Predicated region
      $region25: #{pappm_forward.4} parent=15 // pred_check
        %p351 = pneg %p100
      $region26: #{pappm_forward.4} parent=15 // pred_check_branch
        %353 = sbr.rel (%p351) target = $region28
      $region27: #{pappm_forward.4} parent=15 // pred_region
        %p354 = scmp.lt.s32.totalorder %s23, 1
        %s355 = scalar_select %p354, %s23, 1
        %s356 = smul.addr %s355, 32
        %s357 = smul.addr %s356, 8
        %s358 = scalar_lea.vmem %s2, %s357
      $region28: #{pappm_forward.4} parent=15 // pred_fallthru
        _
      // Predicated region
      $region29: #{pappm_forward.4} parent=15 // pred_check
        %p359 = pneg %p126
      $region30: #{pappm_forward.4} parent=15 // pred_check_branch
        %361 = sbr.rel (%p359) target = $region32
      $region31: #{pappm_forward.4} parent=15 // pred_region
        %p362 = scmp.lt.s32.totalorder %s24, 3
        %s363 = scalar_select %p362, %s24, 3
        %s364 = scalar_lea.vmem %s3, %s363
      $region32: #{pappm_forward.4} parent=15 // pred_fallthru
        _
      // Predicated region
      $region33: #{pappm_forward.4} parent=15 // pred_check
        %p365 = pneg %p152
      $region34: #{pappm_forward.4} parent=15 // pred_check_branch
        %367 = sbr.rel (%p365) target = $region36
      $region35: #{pappm_forward.4} parent=15 // pred_region
        %p368 = scmp.lt.s32.totalorder %s24, 3
        %s369 = scalar_select %p368, %s24, 3
        %s370 = scalar_lea.vmem %s4, %s369
      $region36: #{pappm_forward.4} parent=15 // pred_fallthru
        _
      // Predicated region
      $region37: #{pappm_forward.4} parent=15 // pred_check
        %p371 = pneg %p178
      $region38: #{pappm_forward.4} parent=15 // pred_check_branch
        %373 = sbr.rel (%p371) target = $region40
      $region39: #{pappm_forward.4} parent=15 // pred_region
        %p374 = scmp.lt.s32.totalorder %s24, 3
        %s375 = scalar_select %p374, %s24, 3
        %s376 = smul.addr %s375, 4
        %s377 = scalar_lea.vmem %s5, %s376
      $region40: #{pappm_forward.4} parent=15 // pred_fallthru
        _
      // Predicated region
      $region41: #{pappm_forward.4} parent=15 // pred_check
        %p378 = pneg %p204
      $region42: #{pappm_forward.4} parent=15 // pred_check_branch
        %380 = sbr.rel (%p378) target = $region44
      $region43: #{pappm_forward.4} parent=15 // pred_region
        %p381 = scmp.lt.s32.totalorder %s23, 1
        %s382 = scalar_select %p381, %s23, 1
        %s383 = smul.addr %s382, 32
        %s384 = smul.addr %s383, 8
        %s385 = scalar_lea.vmem %s6, %s384
      $region44: #{pappm_forward.4} parent=15 // pred_fallthru
        _
      // Predicated region
      $region45: #{pappm_forward.4} parent=15 // pred_check
        %p386 = pneg %p230
      $region46: #{pappm_forward.4} parent=15 // pred_check_branch
        %388 = sbr.rel (%p386) target = $region48
      $region47: #{pappm_forward.4} parent=15 // pred_region
        %p389 = scmp.lt.s32.totalorder %s24, 3
        %s390 = scalar_select %p389, %s24, 3
        %s391 = scalar_lea.vmem %s7, %s390
      $region48: #{pappm_forward.4} parent=15 // pred_fallthru
        _
      // Predicated region
      $region49: #{pappm_forward.4} parent=15 // pred_check
        %p392 = pneg %p256
      $region50: #{pappm_forward.4} parent=15 // pred_check_branch
        %394 = sbr.rel (%p392) target = $region52
      $region51: #{pappm_forward.4} parent=15 // pred_region
        %p395 = scmp.lt.s32.totalorder %s24, 3
        %s396 = scalar_select %p395, %s24, 3
        %s397 = scalar_lea.vmem %s8, %s396
      $region52: #{pappm_forward.4} parent=15 // pred_fallthru
        _
      // Predicated region
      $region53: #{pappm_forward.4} parent=15 // pred_check
        %p398 = pneg %p282
      $region54: #{pappm_forward.4} parent=15 // pred_check_branch
        %400 = sbr.rel (%p398) target = $region56
      $region55: #{pappm_forward.4} parent=15 // pred_region
        %p401 = scmp.lt.s32.totalorder %s24, 3
        %s402 = scalar_select %p401, %s24, 3
        %s403 = smul.addr %s402, 5
        %s404 = smul.addr %s403, 4
        %s405 = scalar_lea.vmem %s9, %s404
      $region56: #{pappm_forward.4} parent=15 // pred_fallthru
        _
    $region16: #{pappm_forward.4} parent=5 // pred_fallthru
      _
    %p406 = scmp.le.s32.totalorder 1, %s16
    %p407 = scmp.lt.s32.totalorder %s16, 9
    %p408 = pnand %p406, %p407
    %p409 = pneg %p408
    // Predicated region
    $region57: #{pappm_forward.4} parent=5 // pred_check
      _
    $region58: #{pappm_forward.4} parent=5 // pred_check_branch
      %411 = sbr.rel (%p408) target = $region60
    $region59: #{pappm_forward.4} parent=5 // pred_region
      %s412 = ssub.s32 %s16, 1
      %p413 = scmp.lt.s32.totalorder %s26, 3
      %s414 = scalar_select %p413, %s26, 3
      %s415 = smul.addr %s414, 16
      %s416 = smul.addr %s415, 4
      %s417 = scalar_lea.vmem %s0, %s416
      %p418 = pneg %p54
      %p419 = pneg %p51
      %p420 = scmp.lt.s32.totalorder %s26, 3
      %s421 = scalar_select %p420, %s26, 3
      %s422 = smul.addr %s421, 32
      %s423 = smul.addr %s422, 4
      %s424 = scalar_lea.vmem %s1, %s423
      %p425 = pneg %p80
      %p426 = pneg %p77
      %p427 = scmp.lt.s32.totalorder %s25, 1
      %s428 = scalar_select %p427, %s25, 1
      %s429 = smul.addr %s428, 32
      %s430 = smul.addr %s429, 8
      %s431 = scalar_lea.vmem %s2, %s430
      %p432 = pneg %p106
      %p433 = pneg %p103
      %p434 = scmp.lt.s32.totalorder %s26, 3
      %s435 = scalar_select %p434, %s26, 3
      %s436 = scalar_lea.vmem %s3, %s435
      %p437 = pneg %p132
      %p438 = pneg %p129
      %p439 = scmp.lt.s32.totalorder %s26, 3
      %s440 = scalar_select %p439, %s26, 3
      %s441 = scalar_lea.vmem %s4, %s440
      %p442 = pneg %p158
      %p443 = pneg %p155
      %p444 = scmp.lt.s32.totalorder %s26, 3
      %s445 = scalar_select %p444, %s26, 3
      %s446 = smul.addr %s445, 4
      %s447 = scalar_lea.vmem %s5, %s446
      %p448 = pneg %p184
      %p449 = pneg %p181
      %p450 = scmp.lt.s32.totalorder %s25, 1
      %s451 = scalar_select %p450, %s25, 1
      %s452 = smul.addr %s451, 32
      %s453 = smul.addr %s452, 8
      %s454 = scalar_lea.vmem %s6, %s453
      %p455 = pneg %p210
      %p456 = pneg %p207
      %p457 = scmp.lt.s32.totalorder %s26, 3
      %s458 = scalar_select %p457, %s26, 3
      %s459 = scalar_lea.vmem %s7, %s458
      %p460 = pneg %p236
      %p461 = pneg %p233
      %p462 = scmp.lt.s32.totalorder %s26, 3
      %s463 = scalar_select %p462, %s26, 3
      %s464 = scalar_lea.vmem %s8, %s463
      %p465 = pneg %p262
      %p466 = pneg %p259
      %p467 = scmp.lt.s32.totalorder %s26, 3
      %s468 = scalar_select %p467, %s26, 3
      %s469 = smul.addr %s468, 5
      %s470 = smul.addr %s469, 4
      %s471 = scalar_lea.vmem %s9, %s470
      %p472 = pneg %p288
      %p473 = pneg %p285
      %p474 = pneg %p316
      %p475 = pneg %p313
      %p476 = scmp.lt.s32.totalorder %s26, 3
      %s477 = scalar_select %p476, %s26, 3
      %p478 = scmp.lt.s32.totalorder %s25, 1
      %s479 = scalar_select %p478, %s25, 1
      %s480 = smul.addr %s479, 32
      %s481 = smul.addr %s477, 64
      %s482 = sadd.s32 %s480, %s481
      %s483 = smul.addr %s482, 8
      %s484 = scalar_lea.vmem %s10, %s483
      %p485 = scmp.lt.s32.totalorder %s26, 3
      %s486 = scalar_select %p485, %s26, 3
      %s487 = smul.addr %s486, 16
      %s488 = smul.addr %s487, 4
      %s489 = scalar_lea.vmem %s0, %s488
      %p490 = scmp.lt.s32.totalorder %s26, 3
      %s491 = scalar_select %p490, %s26, 3
      %s492 = smul.addr %s491, 32
      %s493 = smul.addr %s492, 4
      %s494 = scalar_lea.vmem %s1, %s493
      %p495 = scmp.lt.s32.totalorder %s25, 1
      %s496 = scalar_select %p495, %s25, 1
      %s497 = smul.addr %s496, 32
      %s498 = smul.addr %s497, 8
      %s499 = scalar_lea.vmem %s2, %s498
      %p500 = scmp.lt.s32.totalorder %s26, 3
      %s501 = scalar_select %p500, %s26, 3
      %s502 = scalar_lea.vmem %s3, %s501
      %p503 = scmp.lt.s32.totalorder %s26, 3
      %s504 = scalar_select %p503, %s26, 3
      %s505 = scalar_lea.vmem %s4, %s504
      %p506 = scmp.lt.s32.totalorder %s26, 3
      %s507 = scalar_select %p506, %s26, 3
      %s508 = smul.addr %s507, 4
      %s509 = scalar_lea.vmem %s5, %s508
      %p510 = scmp.lt.s32.totalorder %s25, 1
      %s511 = scalar_select %p510, %s25, 1
      %s512 = smul.addr %s511, 32
      %s513 = smul.addr %s512, 8
      %s514 = scalar_lea.vmem %s6, %s513
      %p515 = scmp.lt.s32.totalorder %s26, 3
      %s516 = scalar_select %p515, %s26, 3
      %s517 = scalar_lea.vmem %s7, %s516
      %p518 = scmp.lt.s32.totalorder %s26, 3
      %s519 = scalar_select %p518, %s26, 3
      %s520 = scalar_lea.vmem %s8, %s519
      %p521 = scmp.lt.s32.totalorder %s26, 3
      %s522 = scalar_select %p521, %s26, 3
      %s523 = smul.addr %s522, 5
      %s524 = smul.addr %s523, 4
      %s525 = scalar_lea.vmem %s9, %s524
      %p526 = scmp.lt.s32.totalorder %s26, 3
      %s527 = scalar_select %p526, %s26, 3
      %p528 = scmp.lt.s32.totalorder %s25, 1
      %s529 = scalar_select %p528, %s25, 1
      %s530 = smul.addr %s529, 32
      %s531 = smul.addr %s527, 64
      %s532 = sadd.s32 %s530, %s531
      %s533 = smul.addr %s532, 8
      %s534 = scalar_lea.vmem %s10, %s533
      %v536 = vld [vmem:[%s489] sm:$0xff]
      %v537 = vld [vmem:[%s489 + $0x8] sm:$0xff]
      %v538 = vld [vmem:[%s489 + $0x10] sm:$0xff]
      %v539 = vld [vmem:[%s489 + $0x18] sm:$0xff]
      %v540 = vld [vmem:[%s489 + $0x20] sm:$0xff]
      %v541 = vld [vmem:[%s489 + $0x28] sm:$0xff]
      %v542 = vld [vmem:[%s489 + $0x30] sm:$0xff]
      %v543 = vld [vmem:[%s489 + $0x38] sm:$0xff]
      %v544 = vld [vmem:[%s499] sm:$0xff]
      %v545 = vld [vmem:[%s499 + $0x8] sm:$0xff]
      %v546 = vld [vmem:[%s499 + $0x10] sm:$0xff]
      %v547 = vld [vmem:[%s499 + $0x18] sm:$0xff]
      %v548 = vld [vmem:[%s499 + $0x20] sm:$0xff]
      %v549 = vld [vmem:[%s499 + $0x28] sm:$0xff]
      %v550 = vld [vmem:[%s499 + $0x30] sm:$0xff]
      %v551 = vld [vmem:[%s499 + $0x38] sm:$0xff]
      %v552 = vld [vmem:[%s499 + $0x40] sm:$0xff]
      %v553 = vld [vmem:[%s499 + $0x48] sm:$0xff]
      %v554 = vld [vmem:[%s499 + $0x50] sm:$0xff]
      %v555 = vld [vmem:[%s499 + $0x58] sm:$0xff]
      %v556 = vld [vmem:[%s499 + $0x60] sm:$0xff]
      %v557 = vld [vmem:[%s499 + $0x68] sm:$0xff]
      %v558 = vld [vmem:[%s499 + $0x70] sm:$0xff]
      %v559 = vld [vmem:[%s499 + $0x78] sm:$0xff]
      %v560 = vld [vmem:[%s499 + $0x80] sm:$0xff]
      %v561 = vld [vmem:[%s499 + $0x88] sm:$0xff]
      %v562 = vld [vmem:[%s499 + $0x90] sm:$0xff]
      %v563 = vld [vmem:[%s499 + $0x98] sm:$0xff]
      %v564 = vld [vmem:[%s499 + $0xa0] sm:$0xff]
      %v565 = vld [vmem:[%s499 + $0xa8] sm:$0xff]
      %v566 = vld [vmem:[%s499 + $0xb0] sm:$0xff]
      %v567 = vld [vmem:[%s499 + $0xb8] sm:$0xff]
      %v568 = vld [vmem:[%s499 + $0xc0] sm:$0xff]
      %v569 = vld [vmem:[%s499 + $0xc8] sm:$0xff]
      %v570 = vld [vmem:[%s499 + $0xd0] sm:$0xff]
      %v571 = vld [vmem:[%s499 + $0xd8] sm:$0xff]
      %v572 = vld [vmem:[%s499 + $0xe0] sm:$0xff]
      %v573 = vld [vmem:[%s499 + $0xe8] sm:$0xff]
      %v574 = vld [vmem:[%s499 + $0xf0] sm:$0xff]
      %v575 = vld [vmem:[%s499 + $0xf8] sm:$0xff]
      %v576 = vpack.c.bf16 %v545, %v544
      %v577 = vpack.c.bf16 %v547, %v546
      %v578 = vpack.c.bf16 %v549, %v548
      %v579 = vpack.c.bf16 %v551, %v550
      %v580 = vpack.c.bf16 %v553, %v552
      %v581 = vpack.c.bf16 %v555, %v554
      %v582 = vpack.c.bf16 %v557, %v556
      %v583 = vpack.c.bf16 %v559, %v558
      %v584 = vpack.c.bf16 %v561, %v560
      %v585 = vpack.c.bf16 %v563, %v562
      %v586 = vpack.c.bf16 %v565, %v564
      %v587 = vpack.c.bf16 %v567, %v566
      %v588 = vpack.c.bf16 %v569, %v568
      %v589 = vpack.c.bf16 %v571, %v570
      %v590 = vpack.c.bf16 %v573, %v572
      %v591 = vpack.c.bf16 %v575, %v574
      %v600 = vunpack.c.l.b16 %v536
      %v601 = vunpack.c.h.b16 %v536
      %v602 = vunpack.c.l.b16 %v537
      %v603 = vunpack.c.h.b16 %v537
      %v604 = vunpack.c.l.b16 %v538
      %v605 = vunpack.c.h.b16 %v538
      %v606 = vunpack.c.l.b16 %v539
      %v607 = vunpack.c.h.b16 %v539
      %v608 = vunpack.c.l.b16 %v540
      %v609 = vunpack.c.h.b16 %v540
      %v610 = vunpack.c.l.b16 %v541
      %v611 = vunpack.c.h.b16 %v541
      %v612 = vunpack.c.l.b16 %v542
      %v613 = vunpack.c.h.b16 %v542
      %v614 = vunpack.c.l.b16 %v543
      %v615 = vunpack.c.h.b16 %v543
      %v616 = vpack.c.b16 %v602, %v600
      %v617 = vpack.c.b16 %v603, %v601
      %v618 = vpack.c.b16 %v606, %v604
      %v619 = vpack.c.b16 %v607, %v605
      %v620 = vpack.c.b16 %v610, %v608
      %v621 = vpack.c.b16 %v611, %v609
      %v622 = vpack.c.b16 %v614, %v612
      %v623 = vpack.c.b16 %v615, %v613
      %632 = vmatpush.bf16.msra.mxu0 %v583
      %633 = vmatpush.bf16.msra.mxu0 %v582
      %634 = vmatpush.bf16.msra.mxu0 %v581
      %635 = vmatpush.bf16.msra.mxu0 %v580
      %636 = vmatpush.bf16.msra.mxu0 %v579
      %637 = vmatpush.bf16.msra.mxu0 %v578
      %638 = vmatpush.bf16.msra.mxu0 %v577
      %639 = vmatpush.bf16.msra.mxu0 %v576
      %640 = vmatmul.bf16.gmra.mxu0 %v616
      %v641 = vpop.f32.mrf.mxu0
      %v642 = vadd.f32 0.0, %v641
      %v643 = vpop.f32.mrf.mxu0
      %v644 = vadd.f32 0.0, %v643
      %645 = vmatmul.bf16.gmra.mxu0 %v618
      %v646 = vpop.f32.mrf.mxu0
      %v647 = vadd.f32 0.0, %v646
      %v648 = vpop.f32.mrf.mxu0
      %v649 = vadd.f32 0.0, %v648
      %650 = vmatmul.bf16.gmra.mxu0 %v620
      %v651 = vpop.f32.mrf.mxu0
      %v652 = vadd.f32 0.0, %v651
      %v653 = vpop.f32.mrf.mxu0
      %v654 = vadd.f32 0.0, %v653
      %655 = vmatmul.bf16.gmra.mxu0 %v622
      %v656 = vpop.f32.mrf.mxu0
      %v657 = vadd.f32 0.0, %v656
      %v658 = vpop.f32.mrf.mxu0
      %v659 = vadd.f32 0.0, %v658
      %660 = vdwg.mxu0
      %661 = vmatpush.bf16.msra.mxu0 %v591
      %662 = vmatpush.bf16.msra.mxu0 %v590
      %663 = vmatpush.bf16.msra.mxu0 %v589
      %664 = vmatpush.bf16.msra.mxu0 %v588
      %665 = vmatpush.bf16.msra.mxu0 %v587
      %666 = vmatpush.bf16.msra.mxu0 %v586
      %667 = vmatpush.bf16.msra.mxu0 %v585
      %668 = vmatpush.bf16.msra.mxu0 %v584
      %669 = vmatmul.bf16.gmra.mxu0 %v617
      %v670 = vpop.f32.mrf.mxu0
      %v671 = vadd.f32 %v642, %v670
      %v672 = vpop.f32.mrf.mxu0
      %v673 = vadd.f32 %v644, %v672
      %674 = vmatmul.bf16.gmra.mxu0 %v619
      %v675 = vpop.f32.mrf.mxu0
      %v676 = vadd.f32 %v647, %v675
      %v677 = vpop.f32.mrf.mxu0
      %v678 = vadd.f32 %v649, %v677
      %679 = vmatmul.bf16.gmra.mxu0 %v621
      %v680 = vpop.f32.mrf.mxu0
      %v681 = vadd.f32 %v652, %v680
      %v682 = vpop.f32.mrf.mxu0
      %v683 = vadd.f32 %v654, %v682
      %684 = vmatmul.bf16.gmra.mxu0 %v623
      %v685 = vpop.f32.mrf.mxu0
      %v686 = vadd.f32 %v657, %v685
      %v687 = vpop.f32.mrf.mxu0
      %v688 = vadd.f32 %v659, %v687
      %689 = vdwg.mxu0
      %v690 = vld [vmem:[%s502] sm:$0x1]
      %v692 = vperm.slane %v690, 0
      %v694 = vmul.f32 %v671, %v692
      %v695 = vmul.f32 %v673, %v692
      %v696 = vmul.f32 %v676, %v692
      %v697 = vmul.f32 %v678, %v692
      %v698 = vmul.f32 %v681, %v692
      %v699 = vmul.f32 %v683, %v692
      %v700 = vmul.f32 %v686, %v692
      %v701 = vmul.f32 %v688, %v692
      %v702 = vld [vmem:[%s505] sm:$0x1]
      %v704 = vperm.slane %v702, 0
      %v706 = vadd.f32 %v694, %v704
      %v707 = vadd.f32 %v695, %v704
      %v708 = vadd.f32 %v696, %v704
      %v709 = vadd.f32 %v697, %v704
      %v710 = vadd.f32 %v698, %v704
      %v711 = vadd.f32 %v699, %v704
      %v712 = vadd.f32 %v700, %v704
      %v713 = vadd.f32 %v701, %v704
      %v714 = vmax.f32 %v706, 0.0
      %v715 = vmax.f32 %v707, 0.0
      %v716 = vmax.f32 %v708, 0.0
      %v717 = vmax.f32 %v709, 0.0
      %v718 = vmax.f32 %v710, 0.0
      %v719 = vmax.f32 %v711, 0.0
      %v720 = vmax.f32 %v712, 0.0
      %v721 = vmax.f32 %v713, 0.0
      %v722 = vpack.c.bf16 %v715, %v714
      %v723 = vpack.c.bf16 %v717, %v716
      %v724 = vpack.c.bf16 %v719, %v718
      %v725 = vpack.c.bf16 %v721, %v720
      %v726 = vld [vmem:[%s509] sm:$0xf]
      %vm727 = vcmask 64512
      %v729 = vsel %vm727, %v722, 0
      %v732 = vsel %vm727, %v723, 0
      %v735 = vsel %vm727, %v724, 0
      %v738 = vsel %vm727, %v725, 0
      %vm740 = vcmask 1043456
      %v742 = vsel %vm740, %v726, 0
      %744 = vmatpush.bf16.msra.mxu0 0
      %745 = vmatpush.bf16.msra.mxu0 0
      %746 = vmatpush.bf16.msra.mxu0 0
      %747 = vmatpush.bf16.msra.mxu0 0
      %748 = vmatpush.bf16.msra.mxu0 0
      %749 = vmatpush.bf16.msra.mxu0 0
      %750 = vmatpush.bf16.msra.mxu0 0
      %751 = vmatpush.bf16.msra.mxu0 %v742
      %752 = vmatmul.bf16.gmra.mxu0 %v729
      %v753 = vpop.f32.mrf.mxu0
      %v754 = vadd.f32 0.0, %v753
      %v755 = vpop.f32.mrf.mxu0
      %v756 = vadd.f32 0.0, %v755
      %757 = vmatmul.bf16.gmra.mxu0 %v732
      %v758 = vpop.f32.mrf.mxu0
      %v759 = vadd.f32 0.0, %v758
      %v760 = vpop.f32.mrf.mxu0
      %v761 = vadd.f32 0.0, %v760
      %762 = vmatmul.bf16.gmra.mxu0 %v735
      %v763 = vpop.f32.mrf.mxu0
      %v764 = vadd.f32 0.0, %v763
      %v765 = vpop.f32.mrf.mxu0
      %v766 = vadd.f32 0.0, %v765
      %767 = vmatmul.bf16.gmra.mxu0 %v738
      %v768 = vpop.f32.mrf.mxu0
      %v769 = vadd.f32 0.0, %v768
      %v770 = vpop.f32.mrf.mxu0
      %v771 = vadd.f32 0.0, %v770
      %772 = vdwg.mxu0
      %v773 = vld [vmem:[%s494] sm:$0xf]
      %v774 = vld [vmem:[%s494 + $0x4] sm:$0xf]
      %v775 = vld [vmem:[%s494 + $0x8] sm:$0xf]
      %v776 = vld [vmem:[%s494 + $0xc] sm:$0xf]
      %v777 = vld [vmem:[%s494 + $0x10] sm:$0xf]
      %v778 = vld [vmem:[%s494 + $0x14] sm:$0xf]
      %v779 = vld [vmem:[%s494 + $0x18] sm:$0xf]
      %v780 = vld [vmem:[%s494 + $0x1c] sm:$0xf]
      %v781 = vld [vmem:[%s494 + $0x20] sm:$0xf]
      %v782 = vld [vmem:[%s494 + $0x24] sm:$0xf]
      %v783 = vld [vmem:[%s494 + $0x28] sm:$0xf]
      %v784 = vld [vmem:[%s494 + $0x2c] sm:$0xf]
      %v785 = vld [vmem:[%s494 + $0x30] sm:$0xf]
      %v786 = vld [vmem:[%s494 + $0x34] sm:$0xf]
      %v787 = vld [vmem:[%s494 + $0x38] sm:$0xf]
      %v788 = vld [vmem:[%s494 + $0x3c] sm:$0xf]
      %v789 = vld [vmem:[%s494 + $0x40] sm:$0xf]
      %v790 = vld [vmem:[%s494 + $0x44] sm:$0xf]
      %v791 = vld [vmem:[%s494 + $0x48] sm:$0xf]
      %v792 = vld [vmem:[%s494 + $0x4c] sm:$0xf]
      %v793 = vld [vmem:[%s494 + $0x50] sm:$0xf]
      %v794 = vld [vmem:[%s494 + $0x54] sm:$0xf]
      %v795 = vld [vmem:[%s494 + $0x58] sm:$0xf]
      %v796 = vld [vmem:[%s494 + $0x5c] sm:$0xf]
      %v797 = vld [vmem:[%s494 + $0x60] sm:$0xf]
      %v798 = vld [vmem:[%s494 + $0x64] sm:$0xf]
      %v799 = vld [vmem:[%s494 + $0x68] sm:$0xf]
      %v800 = vld [vmem:[%s494 + $0x6c] sm:$0xf]
      %v801 = vld [vmem:[%s494 + $0x70] sm:$0xf]
      %v802 = vld [vmem:[%s494 + $0x74] sm:$0xf]
      %v803 = vld [vmem:[%s494 + $0x78] sm:$0xf]
      %v804 = vld [vmem:[%s494 + $0x7c] sm:$0xf]
      %v805 = vpack.c.bf16 %v756, %v754
      %v806 = vpack.c.bf16 %v761, %v759
      %v807 = vpack.c.bf16 %v766, %v764
      %v808 = vpack.c.bf16 %v771, %v769
      %v809 = vld [vmem:[%s514] sm:$0xff]
      %v810 = vld [vmem:[%s514 + $0x8] sm:$0xff]
      %v811 = vld [vmem:[%s514 + $0x10] sm:$0xff]
      %v812 = vld [vmem:[%s514 + $0x18] sm:$0xff]
      %v813 = vld [vmem:[%s514 + $0x20] sm:$0xff]
      %v814 = vld [vmem:[%s514 + $0x28] sm:$0xff]
      %v815 = vld [vmem:[%s514 + $0x30] sm:$0xff]
      %v816 = vld [vmem:[%s514 + $0x38] sm:$0xff]
      %v817 = vld [vmem:[%s514 + $0x40] sm:$0xff]
      %v818 = vld [vmem:[%s514 + $0x48] sm:$0xff]
      %v819 = vld [vmem:[%s514 + $0x50] sm:$0xff]
      %v820 = vld [vmem:[%s514 + $0x58] sm:$0xff]
      %v821 = vld [vmem:[%s514 + $0x60] sm:$0xff]
      %v822 = vld [vmem:[%s514 + $0x68] sm:$0xff]
      %v823 = vld [vmem:[%s514 + $0x70] sm:$0xff]
      %v824 = vld [vmem:[%s514 + $0x78] sm:$0xff]
      %v825 = vld [vmem:[%s514 + $0x80] sm:$0xff]
      %v826 = vld [vmem:[%s514 + $0x88] sm:$0xff]
      %v827 = vld [vmem:[%s514 + $0x90] sm:$0xff]
      %v828 = vld [vmem:[%s514 + $0x98] sm:$0xff]
      %v829 = vld [vmem:[%s514 + $0xa0] sm:$0xff]
      %v830 = vld [vmem:[%s514 + $0xa8] sm:$0xff]
      %v831 = vld [vmem:[%s514 + $0xb0] sm:$0xff]
      %v832 = vld [vmem:[%s514 + $0xb8] sm:$0xff]
      %v833 = vld [vmem:[%s514 + $0xc0] sm:$0xff]
      %v834 = vld [vmem:[%s514 + $0xc8] sm:$0xff]
      %v835 = vld [vmem:[%s514 + $0xd0] sm:$0xff]
      %v836 = vld [vmem:[%s514 + $0xd8] sm:$0xff]
      %v837 = vld [vmem:[%s514 + $0xe0] sm:$0xff]
      %v838 = vld [vmem:[%s514 + $0xe8] sm:$0xff]
      %v839 = vld [vmem:[%s514 + $0xf0] sm:$0xff]
      %v840 = vld [vmem:[%s514 + $0xf8] sm:$0xff]
      %v873 = vunpack.c.l.b16 %v773
      %v874 = vunpack.c.l.b16 %v774
      %v875 = vunpack.c.l.b16 %v775
      %v876 = vunpack.c.l.b16 %v776
      %v877 = vunpack.c.l.b16 %v777
      %v878 = vunpack.c.l.b16 %v778
      %v879 = vunpack.c.l.b16 %v779
      %v880 = vunpack.c.l.b16 %v780
      %v881 = vunpack.c.l.b16 %v781
      %v882 = vunpack.c.l.b16 %v782
      %v883 = vunpack.c.l.b16 %v783
      %v884 = vunpack.c.l.b16 %v784
      %v885 = vunpack.c.l.b16 %v785
      %v886 = vunpack.c.l.b16 %v786
      %v887 = vunpack.c.l.b16 %v787
      %v888 = vunpack.c.l.b16 %v788
      %v889 = vunpack.c.l.b16 %v789
      %v890 = vunpack.c.l.b16 %v790
      %v891 = vunpack.c.l.b16 %v791
      %v892 = vunpack.c.l.b16 %v792
      %v893 = vunpack.c.l.b16 %v793
      %v894 = vunpack.c.l.b16 %v794
      %v895 = vunpack.c.l.b16 %v795
      %v896 = vunpack.c.l.b16 %v796
      %v897 = vunpack.c.l.b16 %v797
      %v898 = vunpack.c.l.b16 %v798
      %v899 = vunpack.c.l.b16 %v799
      %v900 = vunpack.c.l.b16 %v800
      %v901 = vunpack.c.l.b16 %v801
      %v902 = vunpack.c.l.b16 %v802
      %v903 = vunpack.c.l.b16 %v803
      %v904 = vunpack.c.l.b16 %v804
      %v905 = vpack.c.b16 %v874, %v873
      %v906 = vpack.c.b16 %v876, %v875
      %v907 = vpack.c.b16 %v878, %v877
      %v908 = vpack.c.b16 %v880, %v879
      %v909 = vpack.c.b16 %v882, %v881
      %v910 = vpack.c.b16 %v884, %v883
      %v911 = vpack.c.b16 %v886, %v885
      %v912 = vpack.c.b16 %v888, %v887
      %v913 = vpack.c.b16 %v890, %v889
      %v914 = vpack.c.b16 %v892, %v891
      %v915 = vpack.c.b16 %v894, %v893
      %v916 = vpack.c.b16 %v896, %v895
      %v917 = vpack.c.b16 %v898, %v897
      %v918 = vpack.c.b16 %v900, %v899
      %v919 = vpack.c.b16 %v902, %v901
      %v920 = vpack.c.b16 %v904, %v903
      %vm921 = vcmask 523264
      %v923 = vsel %vm921, %v905, 0
      %v926 = vsel %vm921, %v906, 0
      %v929 = vsel %vm921, %v907, 0
      %v932 = vsel %vm921, %v908, 0
      %v935 = vsel %vm921, %v909, 0
      %v938 = vsel %vm921, %v910, 0
      %v941 = vsel %vm921, %v911, 0
      %v944 = vsel %vm921, %v912, 0
      %v947 = vsel %vm921, %v913, 0
      %v950 = vsel %vm921, %v914, 0
      %v953 = vsel %vm921, %v915, 0
      %v956 = vsel %vm921, %v916, 0
      %v959 = vsel %vm921, %v917, 0
      %v962 = vsel %vm921, %v918, 0
      %v965 = vsel %vm921, %v919, 0
      %v968 = vsel %vm921, %v920, 0
      %970 = vmatpush.bf16.msra.mxu0 0
      %971 = vmatpush.bf16.msra.mxu0 0
      %972 = vmatpush.bf16.msra.mxu0 0
      %973 = vmatpush.bf16.msra.mxu0 0
      %974 = vmatpush.bf16.msra.mxu0 %v808
      %975 = vmatpush.bf16.msra.mxu0 %v807
      %976 = vmatpush.bf16.msra.mxu0 %v806
      %977 = vmatpush.bf16.msra.mxu0 %v805
      %978 = vmatmul.bf16.gmra.mxu0 %v923
      %v979 = vpop.f32.mrf.mxu0
      %v980 = vadd.f32 %v809, %v979
      %v981 = vpop.f32.mrf.mxu0
      %v982 = vadd.f32 %v810, %v981
      %983 = vmatmul.bf16.gmra.mxu0 %v926
      %v984 = vpop.f32.mrf.mxu0
      %v985 = vadd.f32 %v811, %v984
      %v986 = vpop.f32.mrf.mxu0
      %v987 = vadd.f32 %v812, %v986
      %988 = vmatmul.bf16.gmra.mxu0 %v929
      %v989 = vpop.f32.mrf.mxu0
      %v990 = vadd.f32 %v813, %v989
      %v991 = vpop.f32.mrf.mxu0
      %v992 = vadd.f32 %v814, %v991
      %993 = vmatmul.bf16.gmra.mxu0 %v932
      %v994 = vpop.f32.mrf.mxu0
      %v995 = vadd.f32 %v815, %v994
      %v996 = vpop.f32.mrf.mxu0
      %v997 = vadd.f32 %v816, %v996
      %998 = vmatmul.bf16.gmra.mxu0 %v935
      %v999 = vpop.f32.mrf.mxu0
      %v1000 = vadd.f32 %v817, %v999
      %v1001 = vpop.f32.mrf.mxu0
      %v1002 = vadd.f32 %v818, %v1001
      %1003 = vmatmul.bf16.gmra.mxu0 %v938
      %v1004 = vpop.f32.mrf.mxu0
      %v1005 = vadd.f32 %v819, %v1004
      %v1006 = vpop.f32.mrf.mxu0
      %v1007 = vadd.f32 %v820, %v1006
      %1008 = vmatmul.bf16.gmra.mxu0 %v941
      %v1009 = vpop.f32.mrf.mxu0
      %v1010 = vadd.f32 %v821, %v1009
      %v1011 = vpop.f32.mrf.mxu0
      %v1012 = vadd.f32 %v822, %v1011
      %1013 = vmatmul.bf16.gmra.mxu0 %v944
      %v1014 = vpop.f32.mrf.mxu0
      %v1015 = vadd.f32 %v823, %v1014
      %v1016 = vpop.f32.mrf.mxu0
      %v1017 = vadd.f32 %v824, %v1016
      %1018 = vmatmul.bf16.gmra.mxu0 %v947
      %v1019 = vpop.f32.mrf.mxu0
      %v1020 = vadd.f32 %v825, %v1019
      %v1021 = vpop.f32.mrf.mxu0
      %v1022 = vadd.f32 %v826, %v1021
      %1023 = vmatmul.bf16.gmra.mxu0 %v950
      %v1024 = vpop.f32.mrf.mxu0
      %v1025 = vadd.f32 %v827, %v1024
      %v1026 = vpop.f32.mrf.mxu0
      %v1027 = vadd.f32 %v828, %v1026
      %1028 = vmatmul.bf16.gmra.mxu0 %v953
      %v1029 = vpop.f32.mrf.mxu0
      %v1030 = vadd.f32 %v829, %v1029
      %v1031 = vpop.f32.mrf.mxu0
      %v1032 = vadd.f32 %v830, %v1031
      %1033 = vmatmul.bf16.gmra.mxu0 %v956
      %v1034 = vpop.f32.mrf.mxu0
      %v1035 = vadd.f32 %v831, %v1034
      %v1036 = vpop.f32.mrf.mxu0
      %v1037 = vadd.f32 %v832, %v1036
      %1038 = vmatmul.bf16.gmra.mxu0 %v959
      %v1039 = vpop.f32.mrf.mxu0
      %v1040 = vadd.f32 %v833, %v1039
      %v1041 = vpop.f32.mrf.mxu0
      %v1042 = vadd.f32 %v834, %v1041
      %1043 = vmatmul.bf16.gmra.mxu0 %v962
      %v1044 = vpop.f32.mrf.mxu0
      %v1045 = vadd.f32 %v835, %v1044
      %v1046 = vpop.f32.mrf.mxu0
      %v1047 = vadd.f32 %v836, %v1046
      %1048 = vmatmul.bf16.gmra.mxu0 %v965
      %v1049 = vpop.f32.mrf.mxu0
      %v1050 = vadd.f32 %v837, %v1049
      %v1051 = vpop.f32.mrf.mxu0
      %v1052 = vadd.f32 %v838, %v1051
      %1053 = vmatmul.bf16.gmra.mxu0 %v968
      %v1054 = vpop.f32.mrf.mxu0
      %v1055 = vadd.f32 %v839, %v1054
      %v1056 = vpop.f32.mrf.mxu0
      %v1057 = vadd.f32 %v840, %v1056
      %1058 = vdwg.mxu0
      %v1059 = vld [vmem:[%s517] sm:$0x1]
      %v1061 = vperm.slane %v1059, 0
      %v1063 = vmul.f32 %v980, %v1061
      %v1064 = vmul.f32 %v982, %v1061
      %v1065 = vmul.f32 %v985, %v1061
      %v1066 = vmul.f32 %v987, %v1061
      %v1067 = vmul.f32 %v990, %v1061
      %v1068 = vmul.f32 %v992, %v1061
      %v1069 = vmul.f32 %v995, %v1061
      %v1070 = vmul.f32 %v997, %v1061
      %v1071 = vmul.f32 %v1000, %v1061
      %v1072 = vmul.f32 %v1002, %v1061
      %v1073 = vmul.f32 %v1005, %v1061
      %v1074 = vmul.f32 %v1007, %v1061
      %v1075 = vmul.f32 %v1010, %v1061
      %v1076 = vmul.f32 %v1012, %v1061
      %v1077 = vmul.f32 %v1015, %v1061
      %v1078 = vmul.f32 %v1017, %v1061
      %v1079 = vmul.f32 %v1020, %v1061
      %v1080 = vmul.f32 %v1022, %v1061
      %v1081 = vmul.f32 %v1025, %v1061
      %v1082 = vmul.f32 %v1027, %v1061
      %v1083 = vmul.f32 %v1030, %v1061
      %v1084 = vmul.f32 %v1032, %v1061
      %v1085 = vmul.f32 %v1035, %v1061
      %v1086 = vmul.f32 %v1037, %v1061
      %v1087 = vmul.f32 %v1040, %v1061
      %v1088 = vmul.f32 %v1042, %v1061
      %v1089 = vmul.f32 %v1045, %v1061
      %v1090 = vmul.f32 %v1047, %v1061
      %v1091 = vmul.f32 %v1050, %v1061
      %v1092 = vmul.f32 %v1052, %v1061
      %v1093 = vmul.f32 %v1055, %v1061
      %v1094 = vmul.f32 %v1057, %v1061
      %v1095 = vld [vmem:[%s520] sm:$0x1]
      %v1097 = vperm.slane %v1095, 0
      %v1099 = vadd.f32 %v1063, %v1097
      %v1100 = vadd.f32 %v1064, %v1097
      %v1101 = vadd.f32 %v1065, %v1097
      %v1102 = vadd.f32 %v1066, %v1097
      %v1103 = vadd.f32 %v1067, %v1097
      %v1104 = vadd.f32 %v1068, %v1097
      %v1105 = vadd.f32 %v1069, %v1097
      %v1106 = vadd.f32 %v1070, %v1097
      %v1107 = vadd.f32 %v1071, %v1097
      %v1108 = vadd.f32 %v1072, %v1097
      %v1109 = vadd.f32 %v1073, %v1097
      %v1110 = vadd.f32 %v1074, %v1097
      %v1111 = vadd.f32 %v1075, %v1097
      %v1112 = vadd.f32 %v1076, %v1097
      %v1113 = vadd.f32 %v1077, %v1097
      %v1114 = vadd.f32 %v1078, %v1097
      %v1115 = vadd.f32 %v1079, %v1097
      %v1116 = vadd.f32 %v1080, %v1097
      %v1117 = vadd.f32 %v1081, %v1097
      %v1118 = vadd.f32 %v1082, %v1097
      %v1119 = vadd.f32 %v1083, %v1097
      %v1120 = vadd.f32 %v1084, %v1097
      %v1121 = vadd.f32 %v1085, %v1097
      %v1122 = vadd.f32 %v1086, %v1097
      %v1123 = vadd.f32 %v1087, %v1097
      %v1124 = vadd.f32 %v1088, %v1097
      %v1125 = vadd.f32 %v1089, %v1097
      %v1126 = vadd.f32 %v1090, %v1097
      %v1127 = vadd.f32 %v1091, %v1097
      %v1128 = vadd.f32 %v1092, %v1097
      %v1129 = vadd.f32 %v1093, %v1097
      %v1130 = vadd.f32 %v1094, %v1097
      %v1131 = vmax.f32 %v1099, 0.0
      %v1132 = vmax.f32 %v1100, 0.0
      %v1133 = vmax.f32 %v1101, 0.0
      %v1134 = vmax.f32 %v1102, 0.0
      %v1135 = vmax.f32 %v1103, 0.0
      %v1136 = vmax.f32 %v1104, 0.0
      %v1137 = vmax.f32 %v1105, 0.0
      %v1138 = vmax.f32 %v1106, 0.0
      %v1139 = vmax.f32 %v1107, 0.0
      %v1140 = vmax.f32 %v1108, 0.0
      %v1141 = vmax.f32 %v1109, 0.0
      %v1142 = vmax.f32 %v1110, 0.0
      %v1143 = vmax.f32 %v1111, 0.0
      %v1144 = vmax.f32 %v1112, 0.0
      %v1145 = vmax.f32 %v1113, 0.0
      %v1146 = vmax.f32 %v1114, 0.0
      %v1147 = vmax.f32 %v1115, 0.0
      %v1148 = vmax.f32 %v1116, 0.0
      %v1149 = vmax.f32 %v1117, 0.0
      %v1150 = vmax.f32 %v1118, 0.0
      %v1151 = vmax.f32 %v1119, 0.0
      %v1152 = vmax.f32 %v1120, 0.0
      %v1153 = vmax.f32 %v1121, 0.0
      %v1154 = vmax.f32 %v1122, 0.0
      %v1155 = vmax.f32 %v1123, 0.0
      %v1156 = vmax.f32 %v1124, 0.0
      %v1157 = vmax.f32 %v1125, 0.0
      %v1158 = vmax.f32 %v1126, 0.0
      %v1159 = vmax.f32 %v1127, 0.0
      %v1160 = vmax.f32 %v1128, 0.0
      %v1161 = vmax.f32 %v1129, 0.0
      %v1162 = vmax.f32 %v1130, 0.0
      %vm1163 = vcmask 31744
      %1164 = vst.msk [vmem:[#allocation2] sm:$0xff] %vm1163, 0.0
      %1165 = vst.msk [vmem:[#allocation2 + $0x8] sm:$0xff] %vm1163, 0.0
      %vm1166 = vcmask 25600
      %1167 = vst.msk [vmem:[#allocation2 + $0x10] sm:$0x3] %vm1166, 0.0
      %1168 = vst.msk [vmem:[#allocation2 + $0x18] sm:$0xff] %vm1163, 0.0
      %1169 = vst.msk [vmem:[#allocation2 + $0x20] sm:$0xff] %vm1163, 0.0
      %1170 = vst.msk [vmem:[#allocation2 + $0x28] sm:$0x3] %vm1166, 0.0
      %1171 = vst.msk [vmem:[#allocation2 + $0x30] sm:$0xff] %vm1163, 0.0
      %1172 = vst.msk [vmem:[#allocation2 + $0x38] sm:$0xff] %vm1163, 0.0
      %1173 = vst.msk [vmem:[#allocation2 + $0x40] sm:$0x3] %vm1166, 0.0
      %1174 = vst.msk [vmem:[#allocation2 + $0x48] sm:$0xff] %vm1163, 0.0
      %1175 = vst.msk [vmem:[#allocation2 + $0x50] sm:$0xff] %vm1163, 0.0
      %1176 = vst.msk [vmem:[#allocation2 + $0x58] sm:$0x3] %vm1166, 0.0
      %1177 = vst.msk [vmem:[#allocation2 + $0x60] sm:$0xff] %vm1163, 0.0
      %1178 = vst.msk [vmem:[#allocation2 + $0x68] sm:$0xff] %vm1163, 0.0
      %1179 = vst.msk [vmem:[#allocation2 + $0x70] sm:$0x3] %vm1166, 0.0
      %1180 = vst.msk [vmem:[#allocation2 + $0x78] sm:$0xff] %vm1163, 0.0
      %1181 = vst.msk [vmem:[#allocation2 + $0x80] sm:$0xff] %vm1163, 0.0
      %1182 = vst.msk [vmem:[#allocation2 + $0x88] sm:$0x3] %vm1166, 0.0
      %1183 = vst.msk [vmem:[#allocation2 + $0x90] sm:$0xff] %vm1163, 0.0
      %1184 = vst.msk [vmem:[#allocation2 + $0x98] sm:$0xff] %vm1163, 0.0
      %1185 = vst.msk [vmem:[#allocation2 + $0xa0] sm:$0x3] %vm1166, 0.0
      %1186 = vst.msk [vmem:[#allocation2 + $0xa8] sm:$0xff] %vm1163, 0.0
      %1187 = vst.msk [vmem:[#allocation2 + $0xb0] sm:$0xff] %vm1163, 0.0
      %1188 = vst.msk [vmem:[#allocation2 + $0xb8] sm:$0x3] %vm1166, 0.0
      %1189 = vst.msk [vmem:[#allocation2 + $0xc0] sm:$0xff] %vm1163, 0.0
      %1190 = vst.msk [vmem:[#allocation2 + $0xc8] sm:$0xff] %vm1163, 0.0
      %1191 = vst.msk [vmem:[#allocation2 + $0xd0] sm:$0x3] %vm1166, 0.0
      %1192 = vst.msk [vmem:[#allocation2 + $0xd8] sm:$0xff] %vm1163, 0.0
      %1193 = vst.msk [vmem:[#allocation2 + $0xe0] sm:$0xff] %vm1163, 0.0
      %1194 = vst.msk [vmem:[#allocation2 + $0xe8] sm:$0x3] %vm1166, 0.0
      %1195 = vst.msk [vmem:[#allocation2 + $0xf0] sm:$0xff] %vm1163, 0.0
      %1196 = vst.msk [vmem:[#allocation2 + $0xf8] sm:$0xff] %vm1163, 0.0
      %1197 = vst.msk [vmem:[#allocation2 + $0x100] sm:$0x3] %vm1166, 0.0
      %1198 = vst.msk [vmem:[#allocation2 + $0x108] sm:$0xff] %vm1163, 0.0
      %1199 = vst.msk [vmem:[#allocation2 + $0x110] sm:$0xff] %vm1163, 0.0
      %1200 = vst.msk [vmem:[#allocation2 + $0x118] sm:$0x3] %vm1166, 0.0
      %1201 = vst.msk [vmem:[#allocation2 + $0x120] sm:$0xff] %vm1163, 0.0
      %1202 = vst.msk [vmem:[#allocation2 + $0x128] sm:$0xff] %vm1163, 0.0
      %1203 = vst.msk [vmem:[#allocation2 + $0x130] sm:$0x3] %vm1166, 0.0
      %1204 = vst.msk [vmem:[#allocation2 + $0x138] sm:$0xff] %vm1163, 0.0
      %1205 = vst.msk [vmem:[#allocation2 + $0x140] sm:$0xff] %vm1163, 0.0
      %1206 = vst.msk [vmem:[#allocation2 + $0x148] sm:$0x3] %vm1166, 0.0
      %1207 = vst.msk [vmem:[#allocation2 + $0x150] sm:$0xff] %vm1163, 0.0
      %1208 = vst.msk [vmem:[#allocation2 + $0x158] sm:$0xff] %vm1163, 0.0
      %1209 = vst.msk [vmem:[#allocation2 + $0x160] sm:$0x3] %vm1166, 0.0
      %1210 = vst.msk [vmem:[#allocation2 + $0x168] sm:$0xff] %vm1163, 0.0
      %1211 = vst.msk [vmem:[#allocation2 + $0x170] sm:$0xff] %vm1163, 0.0
      %1212 = vst.msk [vmem:[#allocation2 + $0x178] sm:$0x3] %vm1166, 0.0
      %1213 = vst.msk [vmem:[#allocation2 + $0x180] sm:$0xff] %vm1163, 0.0
      %1214 = vst.msk [vmem:[#allocation2 + $0x188] sm:$0xff] %vm1163, 0.0
      %1215 = vst.msk [vmem:[#allocation2 + $0x190] sm:$0x3] %vm1166, 0.0
      %1216 = vst.msk [vmem:[#allocation2 + $0x198] sm:$0xff] %vm1163, 0.0
      %1217 = vst.msk [vmem:[#allocation2 + $0x1a0] sm:$0xff] %vm1163, 0.0
      %1218 = vst.msk [vmem:[#allocation2 + $0x1a8] sm:$0x3] %vm1166, 0.0
      %s1219 = scalar_lea.vmem [#allocation2], 24
      %1220 = vst.msk [vmem:[%s1219 + $0x1] sm:$0xff] %vm1163, %v1131
      %1221 = vst.msk [vmem:[%s1219 + $0x9] sm:$0xff] %vm1163, %v1132
      %1222 = vst.msk [vmem:[%s1219 + $0x19] sm:$0xff] %vm1163, %v1133
      %1223 = vst.msk [vmem:[%s1219 + $0x21] sm:$0xff] %vm1163, %v1134
      %1224 = vst.msk [vmem:[%s1219 + $0x31] sm:$0xff] %vm1163, %v1135
      %1225 = vst.msk [vmem:[%s1219 + $0x39] sm:$0xff] %vm1163, %v1136
      %1226 = vst.msk [vmem:[%s1219 + $0x49] sm:$0xff] %vm1163, %v1137
      %1227 = vst.msk [vmem:[%s1219 + $0x51] sm:$0xff] %vm1163, %v1138
      %1228 = vst.msk [vmem:[%s1219 + $0x61] sm:$0xff] %vm1163, %v1139
      %1229 = vst.msk [vmem:[%s1219 + $0x69] sm:$0xff] %vm1163, %v1140
      %1230 = vst.msk [vmem:[%s1219 + $0x79] sm:$0xff] %vm1163, %v1141
      %1231 = vst.msk [vmem:[%s1219 + $0x81] sm:$0xff] %vm1163, %v1142
      %1232 = vst.msk [vmem:[%s1219 + $0x91] sm:$0xff] %vm1163, %v1143
      %1233 = vst.msk [vmem:[%s1219 + $0x99] sm:$0xff] %vm1163, %v1144
      %1234 = vst.msk [vmem:[%s1219 + $0xa9] sm:$0xff] %vm1163, %v1145
      %1235 = vst.msk [vmem:[%s1219 + $0xb1] sm:$0xff] %vm1163, %v1146
      %1236 = vst.msk [vmem:[%s1219 + $0xc1] sm:$0xff] %vm1163, %v1147
      %1237 = vst.msk [vmem:[%s1219 + $0xc9] sm:$0xff] %vm1163, %v1148
      %1238 = vst.msk [vmem:[%s1219 + $0xd9] sm:$0xff] %vm1163, %v1149
      %1239 = vst.msk [vmem:[%s1219 + $0xe1] sm:$0xff] %vm1163, %v1150
      %1240 = vst.msk [vmem:[%s1219 + $0xf1] sm:$0xff] %vm1163, %v1151
      %1241 = vst.msk [vmem:[%s1219 + $0xf9] sm:$0xff] %vm1163, %v1152
      %1242 = vst.msk [vmem:[%s1219 + $0x109] sm:$0xff] %vm1163, %v1153
      %1243 = vst.msk [vmem:[%s1219 + $0x111] sm:$0xff] %vm1163, %v1154
      %1244 = vst.msk [vmem:[%s1219 + $0x121] sm:$0xff] %vm1163, %v1155
      %1245 = vst.msk [vmem:[%s1219 + $0x129] sm:$0xff] %vm1163, %v1156
      %1246 = vst.msk [vmem:[%s1219 + $0x139] sm:$0xff] %vm1163, %v1157
      %1247 = vst.msk [vmem:[%s1219 + $0x141] sm:$0xff] %vm1163, %v1158
      %1248 = vst.msk [vmem:[%s1219 + $0x151] sm:$0xff] %vm1163, %v1159
      %1249 = vst.msk [vmem:[%s1219 + $0x159] sm:$0xff] %vm1163, %v1160
      %1250 = vst.msk [vmem:[%s1219 + $0x169] sm:$0xff] %vm1163, %v1161
      %1251 = vst.msk [vmem:[%s1219 + $0x171] sm:$0xff] %vm1163, %v1162
      %v1252 = vld [vmem:[#allocation2] sm:$0xff]
      %v1253 = vld [vmem:[#allocation2 + $0x8] sm:$0xff]
      %v1254 = vld [vmem:[#allocation2 + $0x18] sm:$0xff]
      %v1255 = vld [vmem:[#allocation2 + $0x20] sm:$0xff]
      %v1256 = vld [vmem:[#allocation2 + $0x30] sm:$0xff]
      %v1257 = vld [vmem:[#allocation2 + $0x38] sm:$0xff]
      %v1258 = vld [vmem:[#allocation2 + $0x48] sm:$0xff]
      %v1259 = vld [vmem:[#allocation2 + $0x50] sm:$0xff]
      %v1260 = vld [vmem:[#allocation2 + $0x60] sm:$0xff]
      %v1261 = vld [vmem:[#allocation2 + $0x68] sm:$0xff]
      %v1262 = vld [vmem:[#allocation2 + $0x78] sm:$0xff]
      %v1263 = vld [vmem:[#allocation2 + $0x80] sm:$0xff]
      %v1264 = vld [vmem:[#allocation2 + $0x90] sm:$0xff]
      %v1265 = vld [vmem:[#allocation2 + $0x98] sm:$0xff]
      %v1266 = vld [vmem:[#allocation2 + $0xa8] sm:$0xff]
      %v1267 = vld [vmem:[#allocation2 + $0xb0] sm:$0xff]
      %v1268 = vld [vmem:[#allocation2 + $0xc0] sm:$0xff]
      %v1269 = vld [vmem:[#allocation2 + $0xc8] sm:$0xff]
      %v1270 = vld [vmem:[#allocation2 + $0xd8] sm:$0xff]
      %v1271 = vld [vmem:[#allocation2 + $0xe0] sm:$0xff]
      %v1272 = vld [vmem:[#allocation2 + $0xf0] sm:$0xff]
      %v1273 = vld [vmem:[#allocation2 + $0xf8] sm:$0xff]
      %v1274 = vld [vmem:[#allocation2 + $0x108] sm:$0xff]
      %v1275 = vld [vmem:[#allocation2 + $0x110] sm:$0xff]
      %v1276 = vld [vmem:[#allocation2 + $0x120] sm:$0xff]
      %v1277 = vld [vmem:[#allocation2 + $0x128] sm:$0xff]
      %v1278 = vld [vmem:[#allocation2 + $0x138] sm:$0xff]
      %v1279 = vld [vmem:[#allocation2 + $0x140] sm:$0xff]
      %v1280 = vld [vmem:[#allocation2 + $0x150] sm:$0xff]
      %v1281 = vld [vmem:[#allocation2 + $0x158] sm:$0xff]
      %v1282 = vld [vmem:[#allocation2 + $0x168] sm:$0xff]
      %v1283 = vld [vmem:[#allocation2 + $0x170] sm:$0xff]
      %v1284 = vld [vmem:[#allocation2 + $0x1] sm:$0xff]
      %v1285 = vld [vmem:[#allocation2 + $0x9] sm:$0xff]
      %v1286 = vld [vmem:[#allocation2 + $0x19] sm:$0xff]
      %v1287 = vld [vmem:[#allocation2 + $0x21] sm:$0xff]
      %v1288 = vld [vmem:[#allocation2 + $0x31] sm:$0xff]
      %v1289 = vld [vmem:[#allocation2 + $0x39] sm:$0xff]
      %v1290 = vld [vmem:[#allocation2 + $0x49] sm:$0xff]
      %v1291 = vld [vmem:[#allocation2 + $0x51] sm:$0xff]
      %v1292 = vld [vmem:[#allocation2 + $0x61] sm:$0xff]
      %v1293 = vld [vmem:[#allocation2 + $0x69] sm:$0xff]
      %v1294 = vld [vmem:[#allocation2 + $0x79] sm:$0xff]
      %v1295 = vld [vmem:[#allocation2 + $0x81] sm:$0xff]
      %v1296 = vld [vmem:[#allocation2 + $0x91] sm:$0xff]
      %v1297 = vld [vmem:[#allocation2 + $0x99] sm:$0xff]
      %v1298 = vld [vmem:[#allocation2 + $0xa9] sm:$0xff]
      %v1299 = vld [vmem:[#allocation2 + $0xb1] sm:$0xff]
      %v1300 = vld [vmem:[#allocation2 + $0xc1] sm:$0xff]
      %v1301 = vld [vmem:[#allocation2 + $0xc9] sm:$0xff]
      %v1302 = vld [vmem:[#allocation2 + $0xd9] sm:$0xff]
      %v1303 = vld [vmem:[#allocation2 + $0xe1] sm:$0xff]
      %v1304 = vld [vmem:[#allocation2 + $0xf1] sm:$0xff]
      %v1305 = vld [vmem:[#allocation2 + $0xf9] sm:$0xff]
      %v1306 = vld [vmem:[#allocation2 + $0x109] sm:$0xff]
      %v1307 = vld [vmem:[#allocation2 + $0x111] sm:$0xff]
      %v1308 = vld [vmem:[#allocation2 + $0x121] sm:$0xff]
      %v1309 = vld [vmem:[#allocation2 + $0x129] sm:$0xff]
      %v1310 = vld [vmem:[#allocation2 + $0x139] sm:$0xff]
      %v1311 = vld [vmem:[#allocation2 + $0x141] sm:$0xff]
      %v1312 = vld [vmem:[#allocation2 + $0x151] sm:$0xff]
      %v1313 = vld [vmem:[#allocation2 + $0x159] sm:$0xff]
      %v1314 = vld [vmem:[#allocation2 + $0x169] sm:$0xff]
      %v1315 = vld [vmem:[#allocation2 + $0x171] sm:$0xff]
      %v1316 = vld [vmem:[#allocation2 + $0x2] sm:$0xff]
      %v1317 = vld [vmem:[#allocation2 + $0xa] sm:$0xff]
      %v1318 = vld [vmem:[#allocation2 + $0x1a] sm:$0xff]
      %v1319 = vld [vmem:[#allocation2 + $0x22] sm:$0xff]
      %v1320 = vld [vmem:[#allocation2 + $0x32] sm:$0xff]
      %v1321 = vld [vmem:[#allocation2 + $0x3a] sm:$0xff]
      %v1322 = vld [vmem:[#allocation2 + $0x4a] sm:$0xff]
      %v1323 = vld [vmem:[#allocation2 + $0x52] sm:$0xff]
      %v1324 = vld [vmem:[#allocation2 + $0x62] sm:$0xff]
      %v1325 = vld [vmem:[#allocation2 + $0x6a] sm:$0xff]
      %v1326 = vld [vmem:[#allocation2 + $0x7a] sm:$0xff]
      %v1327 = vld [vmem:[#allocation2 + $0x82] sm:$0xff]
      %v1328 = vld [vmem:[#allocation2 + $0x92] sm:$0xff]
      %v1329 = vld [vmem:[#allocation2 + $0x9a] sm:$0xff]
      %v1330 = vld [vmem:[#allocation2 + $0xaa] sm:$0xff]
      %v1331 = vld [vmem:[#allocation2 + $0xb2] sm:$0xff]
      %v1332 = vld [vmem:[#allocation2 + $0xc2] sm:$0xff]
      %v1333 = vld [vmem:[#allocation2 + $0xca] sm:$0xff]
      %v1334 = vld [vmem:[#allocation2 + $0xda] sm:$0xff]
      %v1335 = vld [vmem:[#allocation2 + $0xe2] sm:$0xff]
      %v1336 = vld [vmem:[#allocation2 + $0xf2] sm:$0xff]
      %v1337 = vld [vmem:[#allocation2 + $0xfa] sm:$0xff]
      %v1338 = vld [vmem:[#allocation2 + $0x10a] sm:$0xff]
      %v1339 = vld [vmem:[#allocation2 + $0x112] sm:$0xff]
      %v1340 = vld [vmem:[#allocation2 + $0x122] sm:$0xff]
      %v1341 = vld [vmem:[#allocation2 + $0x12a] sm:$0xff]
      %v1342 = vld [vmem:[#allocation2 + $0x13a] sm:$0xff]
      %v1343 = vld [vmem:[#allocation2 + $0x142] sm:$0xff]
      %v1344 = vld [vmem:[#allocation2 + $0x152] sm:$0xff]
      %v1345 = vld [vmem:[#allocation2 + $0x15a] sm:$0xff]
      %v1346 = vld [vmem:[#allocation2 + $0x16a] sm:$0xff]
      %v1347 = vld [vmem:[#allocation2 + $0x172] sm:$0xff]
      %v1348 = vld [vmem:[%s1219] sm:$0xff]
      %v1349 = vld [vmem:[%s1219 + $0x8] sm:$0xff]
      %v1350 = vld [vmem:[%s1219 + $0x18] sm:$0xff]
      %v1351 = vld [vmem:[%s1219 + $0x20] sm:$0xff]
      %v1352 = vld [vmem:[%s1219 + $0x30] sm:$0xff]
      %v1353 = vld [vmem:[%s1219 + $0x38] sm:$0xff]
      %v1354 = vld [vmem:[%s1219 + $0x48] sm:$0xff]
      %v1355 = vld [vmem:[%s1219 + $0x50] sm:$0xff]
      %v1356 = vld [vmem:[%s1219 + $0x60] sm:$0xff]
      %v1357 = vld [vmem:[%s1219 + $0x68] sm:$0xff]
      %v1358 = vld [vmem:[%s1219 + $0x78] sm:$0xff]
      %v1359 = vld [vmem:[%s1219 + $0x80] sm:$0xff]
      %v1360 = vld [vmem:[%s1219 + $0x90] sm:$0xff]
      %v1361 = vld [vmem:[%s1219 + $0x98] sm:$0xff]
      %v1362 = vld [vmem:[%s1219 + $0xa8] sm:$0xff]
      %v1363 = vld [vmem:[%s1219 + $0xb0] sm:$0xff]
      %v1364 = vld [vmem:[%s1219 + $0xc0] sm:$0xff]
      %v1365 = vld [vmem:[%s1219 + $0xc8] sm:$0xff]
      %v1366 = vld [vmem:[%s1219 + $0xd8] sm:$0xff]
      %v1367 = vld [vmem:[%s1219 + $0xe0] sm:$0xff]
      %v1368 = vld [vmem:[%s1219 + $0xf0] sm:$0xff]
      %v1369 = vld [vmem:[%s1219 + $0xf8] sm:$0xff]
      %v1370 = vld [vmem:[%s1219 + $0x108] sm:$0xff]
      %v1371 = vld [vmem:[%s1219 + $0x110] sm:$0xff]
      %v1372 = vld [vmem:[%s1219 + $0x120] sm:$0xff]
      %v1373 = vld [vmem:[%s1219 + $0x128] sm:$0xff]
      %v1374 = vld [vmem:[%s1219 + $0x138] sm:$0xff]
      %v1375 = vld [vmem:[%s1219 + $0x140] sm:$0xff]
      %v1376 = vld [vmem:[%s1219 + $0x150] sm:$0xff]
      %v1377 = vld [vmem:[%s1219 + $0x158] sm:$0xff]
      %v1378 = vld [vmem:[%s1219 + $0x168] sm:$0xff]
      %v1379 = vld [vmem:[%s1219 + $0x170] sm:$0xff]
      %v1380 = vld [vmem:[%s1219 + $0x1] sm:$0xff]
      %v1381 = vld [vmem:[%s1219 + $0x9] sm:$0xff]
      %v1382 = vld [vmem:[%s1219 + $0x19] sm:$0xff]
      %v1383 = vld [vmem:[%s1219 + $0x21] sm:$0xff]
      %v1384 = vld [vmem:[%s1219 + $0x31] sm:$0xff]
      %v1385 = vld [vmem:[%s1219 + $0x39] sm:$0xff]
      %v1386 = vld [vmem:[%s1219 + $0x49] sm:$0xff]
      %v1387 = vld [vmem:[%s1219 + $0x51] sm:$0xff]
      %v1388 = vld [vmem:[%s1219 + $0x61] sm:$0xff]
      %v1389 = vld [vmem:[%s1219 + $0x69] sm:$0xff]
      %v1390 = vld [vmem:[%s1219 + $0x79] sm:$0xff]
      %v1391 = vld [vmem:[%s1219 + $0x81] sm:$0xff]
      %v1392 = vld [vmem:[%s1219 + $0x91] sm:$0xff]
      %v1393 = vld [vmem:[%s1219 + $0x99] sm:$0xff]
      %v1394 = vld [vmem:[%s1219 + $0xa9] sm:$0xff]
      %v1395 = vld [vmem:[%s1219 + $0xb1] sm:$0xff]
      %v1396 = vld [vmem:[%s1219 + $0xc1] sm:$0xff]
      %v1397 = vld [vmem:[%s1219 + $0xc9] sm:$0xff]
      %v1398 = vld [vmem:[%s1219 + $0xd9] sm:$0xff]
      %v1399 = vld [vmem:[%s1219 + $0xe1] sm:$0xff]
      %v1400 = vld [vmem:[%s1219 + $0xf1] sm:$0xff]
      %v1401 = vld [vmem:[%s1219 + $0xf9] sm:$0xff]
      %v1402 = vld [vmem:[%s1219 + $0x109] sm:$0xff]
      %v1403 = vld [vmem:[%s1219 + $0x111] sm:$0xff]
      %v1404 = vld [vmem:[%s1219 + $0x121] sm:$0xff]
      %v1405 = vld [vmem:[%s1219 + $0x129] sm:$0xff]
      %v1406 = vld [vmem:[%s1219 + $0x139] sm:$0xff]
      %v1407 = vld [vmem:[%s1219 + $0x141] sm:$0xff]
      %v1408 = vld [vmem:[%s1219 + $0x151] sm:$0xff]
      %v1409 = vld [vmem:[%s1219 + $0x159] sm:$0xff]
      %v1410 = vld [vmem:[%s1219 + $0x169] sm:$0xff]
      %v1411 = vld [vmem:[%s1219 + $0x171] sm:$0xff]
      %v1412 = vld [vmem:[%s1219 + $0x2] sm:$0xff]
      %v1413 = vld [vmem:[%s1219 + $0xa] sm:$0xff]
      %v1414 = vld [vmem:[%s1219 + $0x1a] sm:$0xff]
      %v1415 = vld [vmem:[%s1219 + $0x22] sm:$0xff]
      %v1416 = vld [vmem:[%s1219 + $0x32] sm:$0xff]
      %v1417 = vld [vmem:[%s1219 + $0x3a] sm:$0xff]
      %v1418 = vld [vmem:[%s1219 + $0x4a] sm:$0xff]
      %v1419 = vld [vmem:[%s1219 + $0x52] sm:$0xff]
      %v1420 = vld [vmem:[%s1219 + $0x62] sm:$0xff]
      %v1421 = vld [vmem:[%s1219 + $0x6a] sm:$0xff]
      %v1422 = vld [vmem:[%s1219 + $0x7a] sm:$0xff]
      %v1423 = vld [vmem:[%s1219 + $0x82] sm:$0xff]
      %v1424 = vld [vmem:[%s1219 + $0x92] sm:$0xff]
      %v1425 = vld [vmem:[%s1219 + $0x9a] sm:$0xff]
      %v1426 = vld [vmem:[%s1219 + $0xaa] sm:$0xff]
      %v1427 = vld [vmem:[%s1219 + $0xb2] sm:$0xff]
      %v1428 = vld [vmem:[%s1219 + $0xc2] sm:$0xff]
      %v1429 = vld [vmem:[%s1219 + $0xca] sm:$0xff]
      %v1430 = vld [vmem:[%s1219 + $0xda] sm:$0xff]
      %v1431 = vld [vmem:[%s1219 + $0xe2] sm:$0xff]
      %v1432 = vld [vmem:[%s1219 + $0xf2] sm:$0xff]
      %v1433 = vld [vmem:[%s1219 + $0xfa] sm:$0xff]
      %v1434 = vld [vmem:[%s1219 + $0x10a] sm:$0xff]
      %v1435 = vld [vmem:[%s1219 + $0x112] sm:$0xff]
      %v1436 = vld [vmem:[%s1219 + $0x122] sm:$0xff]
      %v1437 = vld [vmem:[%s1219 + $0x12a] sm:$0xff]
      %v1438 = vld [vmem:[%s1219 + $0x13a] sm:$0xff]
      %v1439 = vld [vmem:[%s1219 + $0x142] sm:$0xff]
      %v1440 = vld [vmem:[%s1219 + $0x152] sm:$0xff]
      %v1441 = vld [vmem:[%s1219 + $0x15a] sm:$0xff]
      %v1442 = vld [vmem:[%s1219 + $0x16a] sm:$0xff]
      %v1443 = vld [vmem:[%s1219 + $0x172] sm:$0xff]
      %s1444 = scalar_lea.vmem [#allocation2], 48
      %v1445 = vld [vmem:[%s1444] sm:$0xff]
      %v1446 = vld [vmem:[%s1444 + $0x8] sm:$0xff]
      %v1447 = vld [vmem:[%s1444 + $0x18] sm:$0xff]
      %v1448 = vld [vmem:[%s1444 + $0x20] sm:$0xff]
      %v1449 = vld [vmem:[%s1444 + $0x30] sm:$0xff]
      %v1450 = vld [vmem:[%s1444 + $0x38] sm:$0xff]
      %v1451 = vld [vmem:[%s1444 + $0x48] sm:$0xff]
      %v1452 = vld [vmem:[%s1444 + $0x50] sm:$0xff]
      %v1453 = vld [vmem:[%s1444 + $0x60] sm:$0xff]
      %v1454 = vld [vmem:[%s1444 + $0x68] sm:$0xff]
      %v1455 = vld [vmem:[%s1444 + $0x78] sm:$0xff]
      %v1456 = vld [vmem:[%s1444 + $0x80] sm:$0xff]
      %v1457 = vld [vmem:[%s1444 + $0x90] sm:$0xff]
      %v1458 = vld [vmem:[%s1444 + $0x98] sm:$0xff]
      %v1459 = vld [vmem:[%s1444 + $0xa8] sm:$0xff]
      %v1460 = vld [vmem:[%s1444 + $0xb0] sm:$0xff]
      %v1461 = vld [vmem:[%s1444 + $0xc0] sm:$0xff]
      %v1462 = vld [vmem:[%s1444 + $0xc8] sm:$0xff]
      %v1463 = vld [vmem:[%s1444 + $0xd8] sm:$0xff]
      %v1464 = vld [vmem:[%s1444 + $0xe0] sm:$0xff]
      %v1465 = vld [vmem:[%s1444 + $0xf0] sm:$0xff]
      %v1466 = vld [vmem:[%s1444 + $0xf8] sm:$0xff]
      %v1467 = vld [vmem:[%s1444 + $0x108] sm:$0xff]
      %v1468 = vld [vmem:[%s1444 + $0x110] sm:$0xff]
      %v1469 = vld [vmem:[%s1444 + $0x120] sm:$0xff]
      %v1470 = vld [vmem:[%s1444 + $0x128] sm:$0xff]
      %v1471 = vld [vmem:[%s1444 + $0x138] sm:$0xff]
      %v1472 = vld [vmem:[%s1444 + $0x140] sm:$0xff]
      %v1473 = vld [vmem:[%s1444 + $0x150] sm:$0xff]
      %v1474 = vld [vmem:[%s1444 + $0x158] sm:$0xff]
      %v1475 = vld [vmem:[%s1444 + $0x168] sm:$0xff]
      %v1476 = vld [vmem:[%s1444 + $0x170] sm:$0xff]
      %v1477 = vld [vmem:[%s1444 + $0x1] sm:$0xff]
      %v1478 = vld [vmem:[%s1444 + $0x9] sm:$0xff]
      %v1479 = vld [vmem:[%s1444 + $0x19] sm:$0xff]
      %v1480 = vld [vmem:[%s1444 + $0x21] sm:$0xff]
      %v1481 = vld [vmem:[%s1444 + $0x31] sm:$0xff]
      %v1482 = vld [vmem:[%s1444 + $0x39] sm:$0xff]
      %v1483 = vld [vmem:[%s1444 + $0x49] sm:$0xff]
      %v1484 = vld [vmem:[%s1444 + $0x51] sm:$0xff]
      %v1485 = vld [vmem:[%s1444 + $0x61] sm:$0xff]
      %v1486 = vld [vmem:[%s1444 + $0x69] sm:$0xff]
      %v1487 = vld [vmem:[%s1444 + $0x79] sm:$0xff]
      %v1488 = vld [vmem:[%s1444 + $0x81] sm:$0xff]
      %v1489 = vld [vmem:[%s1444 + $0x91] sm:$0xff]
      %v1490 = vld [vmem:[%s1444 + $0x99] sm:$0xff]
      %v1491 = vld [vmem:[%s1444 + $0xa9] sm:$0xff]
      %v1492 = vld [vmem:[%s1444 + $0xb1] sm:$0xff]
      %v1493 = vld [vmem:[%s1444 + $0xc1] sm:$0xff]
      %v1494 = vld [vmem:[%s1444 + $0xc9] sm:$0xff]
      %v1495 = vld [vmem:[%s1444 + $0xd9] sm:$0xff]
      %v1496 = vld [vmem:[%s1444 + $0xe1] sm:$0xff]
      %v1497 = vld [vmem:[%s1444 + $0xf1] sm:$0xff]
      %v1498 = vld [vmem:[%s1444 + $0xf9] sm:$0xff]
      %v1499 = vld [vmem:[%s1444 + $0x109] sm:$0xff]
      %v1500 = vld [vmem:[%s1444 + $0x111] sm:$0xff]
      %v1501 = vld [vmem:[%s1444 + $0x121] sm:$0xff]
      %v1502 = vld [vmem:[%s1444 + $0x129] sm:$0xff]
      %v1503 = vld [vmem:[%s1444 + $0x139] sm:$0xff]
      %v1504 = vld [vmem:[%s1444 + $0x141] sm:$0xff]
      %v1505 = vld [vmem:[%s1444 + $0x151] sm:$0xff]
      %v1506 = vld [vmem:[%s1444 + $0x159] sm:$0xff]
      %v1507 = vld [vmem:[%s1444 + $0x169] sm:$0xff]
      %v1508 = vld [vmem:[%s1444 + $0x171] sm:$0xff]
      %v1509 = vld [vmem:[%s1444 + $0x2] sm:$0xff]
      %v1510 = vld [vmem:[%s1444 + $0xa] sm:$0xff]
      %v1511 = vld [vmem:[%s1444 + $0x1a] sm:$0xff]
      %v1512 = vld [vmem:[%s1444 + $0x22] sm:$0xff]
      %v1513 = vld [vmem:[%s1444 + $0x32] sm:$0xff]
      %v1514 = vld [vmem:[%s1444 + $0x3a] sm:$0xff]
      %v1515 = vld [vmem:[%s1444 + $0x4a] sm:$0xff]
      %v1516 = vld [vmem:[%s1444 + $0x52] sm:$0xff]
      %v1517 = vld [vmem:[%s1444 + $0x62] sm:$0xff]
      %v1518 = vld [vmem:[%s1444 + $0x6a] sm:$0xff]
      %v1519 = vld [vmem:[%s1444 + $0x7a] sm:$0xff]
      %v1520 = vld [vmem:[%s1444 + $0x82] sm:$0xff]
      %v1521 = vld [vmem:[%s1444 + $0x92] sm:$0xff]
      %v1522 = vld [vmem:[%s1444 + $0x9a] sm:$0xff]
      %v1523 = vld [vmem:[%s1444 + $0xaa] sm:$0xff]
      %v1524 = vld [vmem:[%s1444 + $0xb2] sm:$0xff]
      %v1525 = vld [vmem:[%s1444 + $0xc2] sm:$0xff]
      %v1526 = vld [vmem:[%s1444 + $0xca] sm:$0xff]
      %v1527 = vld [vmem:[%s1444 + $0xda] sm:$0xff]
      %v1528 = vld [vmem:[%s1444 + $0xe2] sm:$0xff]
      %v1529 = vld [vmem:[%s1444 + $0xf2] sm:$0xff]
      %v1530 = vld [vmem:[%s1444 + $0xfa] sm:$0xff]
      %v1531 = vld [vmem:[%s1444 + $0x10a] sm:$0xff]
      %v1532 = vld [vmem:[%s1444 + $0x112] sm:$0xff]
      %v1533 = vld [vmem:[%s1444 + $0x122] sm:$0xff]
      %v1534 = vld [vmem:[%s1444 + $0x12a] sm:$0xff]
      %v1535 = vld [vmem:[%s1444 + $0x13a] sm:$0xff]
      %v1536 = vld [vmem:[%s1444 + $0x142] sm:$0xff]
      %v1537 = vld [vmem:[%s1444 + $0x152] sm:$0xff]
      %v1538 = vld [vmem:[%s1444 + $0x15a] sm:$0xff]
      %v1539 = vld [vmem:[%s1444 + $0x16a] sm:$0xff]
      %v1540 = vld [vmem:[%s1444 + $0x172] sm:$0xff]
      %1573 = vrot.lane.b32.xlu0 %v1284, 4
      %v1574 = vpop.permute.xlu0 %1573
      %1575 = vrot.lane.b32.xlu0 %v1285, 4
      %v1576 = vpop.permute.xlu0 %1575
      %1577 = vrot.lane.b32.xlu0 %v1286, 4
      %v1578 = vpop.permute.xlu0 %1577
      %1579 = vrot.lane.b32.xlu0 %v1287, 4
      %v1580 = vpop.permute.xlu0 %1579
      %1581 = vrot.lane.b32.xlu0 %v1288, 4
      %v1582 = vpop.permute.xlu0 %1581
      %1583 = vrot.lane.b32.xlu0 %v1289, 4
      %v1584 = vpop.permute.xlu0 %1583
      %1585 = vrot.lane.b32.xlu0 %v1290, 4
      %v1586 = vpop.permute.xlu0 %1585
      %1587 = vrot.lane.b32.xlu0 %v1291, 4
      %v1588 = vpop.permute.xlu0 %1587
      %1589 = vrot.lane.b32.xlu0 %v1292, 4
      %v1590 = vpop.permute.xlu0 %1589
      %1591 = vrot.lane.b32.xlu0 %v1293, 4
      %v1592 = vpop.permute.xlu0 %1591
      %1593 = vrot.lane.b32.xlu0 %v1294, 4
      %v1594 = vpop.permute.xlu0 %1593
      %1595 = vrot.lane.b32.xlu0 %v1295, 4
      %v1596 = vpop.permute.xlu0 %1595
      %1597 = vrot.lane.b32.xlu0 %v1296, 4
      %v1598 = vpop.permute.xlu0 %1597
      %1599 = vrot.lane.b32.xlu0 %v1297, 4
      %v1600 = vpop.permute.xlu0 %1599
      %1601 = vrot.lane.b32.xlu0 %v1298, 4
      %v1602 = vpop.permute.xlu0 %1601
      %1603 = vrot.lane.b32.xlu0 %v1299, 4
      %v1604 = vpop.permute.xlu0 %1603
      %1605 = vrot.lane.b32.xlu0 %v1300, 4
      %v1606 = vpop.permute.xlu0 %1605
      %1607 = vrot.lane.b32.xlu0 %v1301, 4
      %v1608 = vpop.permute.xlu0 %1607
      %1609 = vrot.lane.b32.xlu0 %v1302, 4
      %v1610 = vpop.permute.xlu0 %1609
      %1611 = vrot.lane.b32.xlu0 %v1303, 4
      %v1612 = vpop.permute.xlu0 %1611
      %1613 = vrot.lane.b32.xlu0 %v1304, 4
      %v1614 = vpop.permute.xlu0 %1613
      %1615 = vrot.lane.b32.xlu0 %v1305, 4
      %v1616 = vpop.permute.xlu0 %1615
      %1617 = vrot.lane.b32.xlu0 %v1306, 4
      %v1618 = vpop.permute.xlu0 %1617
      %1619 = vrot.lane.b32.xlu0 %v1307, 4
      %v1620 = vpop.permute.xlu0 %1619
      %1621 = vrot.lane.b32.xlu0 %v1308, 4
      %v1622 = vpop.permute.xlu0 %1621
      %1623 = vrot.lane.b32.xlu0 %v1309, 4
      %v1624 = vpop.permute.xlu0 %1623
      %1625 = vrot.lane.b32.xlu0 %v1310, 4
      %v1626 = vpop.permute.xlu0 %1625
      %1627 = vrot.lane.b32.xlu0 %v1311, 4
      %v1628 = vpop.permute.xlu0 %1627
      %1629 = vrot.lane.b32.xlu0 %v1312, 4
      %v1630 = vpop.permute.xlu0 %1629
      %1631 = vrot.lane.b32.xlu0 %v1313, 4
      %v1632 = vpop.permute.xlu0 %1631
      %1633 = vrot.lane.b32.xlu0 %v1314, 4
      %v1634 = vpop.permute.xlu0 %1633
      %1635 = vrot.lane.b32.xlu0 %v1315, 4
      %v1636 = vpop.permute.xlu0 %1635
      %1701 = vrot.lane.b32.xlu0 %v1316, 8
      %v1702 = vpop.permute.xlu0 %1701
      %1703 = vrot.lane.b32.xlu0 %v1317, 8
      %v1704 = vpop.permute.xlu0 %1703
      %1705 = vrot.lane.b32.xlu0 %v1318, 8
      %v1706 = vpop.permute.xlu0 %1705
      %1707 = vrot.lane.b32.xlu0 %v1319, 8
      %v1708 = vpop.permute.xlu0 %1707
      %1709 = vrot.lane.b32.xlu0 %v1320, 8
      %v1710 = vpop.permute.xlu0 %1709
      %1711 = vrot.lane.b32.xlu0 %v1321, 8
      %v1712 = vpop.permute.xlu0 %1711
      %1713 = vrot.lane.b32.xlu0 %v1322, 8
      %v1714 = vpop.permute.xlu0 %1713
      %1715 = vrot.lane.b32.xlu0 %v1323, 8
      %v1716 = vpop.permute.xlu0 %1715
      %1717 = vrot.lane.b32.xlu0 %v1324, 8
      %v1718 = vpop.permute.xlu0 %1717
      %1719 = vrot.lane.b32.xlu0 %v1325, 8
      %v1720 = vpop.permute.xlu0 %1719
      %1721 = vrot.lane.b32.xlu0 %v1326, 8
      %v1722 = vpop.permute.xlu0 %1721
      %1723 = vrot.lane.b32.xlu0 %v1327, 8
      %v1724 = vpop.permute.xlu0 %1723
      %1725 = vrot.lane.b32.xlu0 %v1328, 8
      %v1726 = vpop.permute.xlu0 %1725
      %1727 = vrot.lane.b32.xlu0 %v1329, 8
      %v1728 = vpop.permute.xlu0 %1727
      %1729 = vrot.lane.b32.xlu0 %v1330, 8
      %v1730 = vpop.permute.xlu0 %1729
      %1731 = vrot.lane.b32.xlu0 %v1331, 8
      %v1732 = vpop.permute.xlu0 %1731
      %1733 = vrot.lane.b32.xlu0 %v1332, 8
      %v1734 = vpop.permute.xlu0 %1733
      %1735 = vrot.lane.b32.xlu0 %v1333, 8
      %v1736 = vpop.permute.xlu0 %1735
      %1737 = vrot.lane.b32.xlu0 %v1334, 8
      %v1738 = vpop.permute.xlu0 %1737
      %1739 = vrot.lane.b32.xlu0 %v1335, 8
      %v1740 = vpop.permute.xlu0 %1739
      %1741 = vrot.lane.b32.xlu0 %v1336, 8
      %v1742 = vpop.permute.xlu0 %1741
      %1743 = vrot.lane.b32.xlu0 %v1337, 8
      %v1744 = vpop.permute.xlu0 %1743
      %1745 = vrot.lane.b32.xlu0 %v1338, 8
      %v1746 = vpop.permute.xlu0 %1745
      %1747 = vrot.lane.b32.xlu0 %v1339, 8
      %v1748 = vpop.permute.xlu0 %1747
      %1749 = vrot.lane.b32.xlu0 %v1340, 8
      %v1750 = vpop.permute.xlu0 %1749
      %1751 = vrot.lane.b32.xlu0 %v1341, 8
      %v1752 = vpop.permute.xlu0 %1751
      %1753 = vrot.lane.b32.xlu0 %v1342, 8
      %v1754 = vpop.permute.xlu0 %1753
      %1755 = vrot.lane.b32.xlu0 %v1343, 8
      %v1756 = vpop.permute.xlu0 %1755
      %1757 = vrot.lane.b32.xlu0 %v1344, 8
      %v1758 = vpop.permute.xlu0 %1757
      %1759 = vrot.lane.b32.xlu0 %v1345, 8
      %v1760 = vpop.permute.xlu0 %1759
      %1761 = vrot.lane.b32.xlu0 %v1346, 8
      %v1762 = vpop.permute.xlu0 %1761
      %1763 = vrot.lane.b32.xlu0 %v1347, 8
      %v1764 = vpop.permute.xlu0 %1763
      %1829 = vrot.lane.b32.xlu0 %v1348, 12
      %v1830 = vpop.permute.xlu0 %1829
      %1831 = vrot.lane.b32.xlu0 %v1349, 12
      %v1832 = vpop.permute.xlu0 %1831
      %1833 = vrot.lane.b32.xlu0 %v1350, 12
      %v1834 = vpop.permute.xlu0 %1833
      %1835 = vrot.lane.b32.xlu0 %v1351, 12
      %v1836 = vpop.permute.xlu0 %1835
      %1837 = vrot.lane.b32.xlu0 %v1352, 12
      %v1838 = vpop.permute.xlu0 %1837
      %1839 = vrot.lane.b32.xlu0 %v1353, 12
      %v1840 = vpop.permute.xlu0 %1839
      %1841 = vrot.lane.b32.xlu0 %v1354, 12
      %v1842 = vpop.permute.xlu0 %1841
      %1843 = vrot.lane.b32.xlu0 %v1355, 12
      %v1844 = vpop.permute.xlu0 %1843
      %1845 = vrot.lane.b32.xlu0 %v1356, 12
      %v1846 = vpop.permute.xlu0 %1845
      %1847 = vrot.lane.b32.xlu0 %v1357, 12
      %v1848 = vpop.permute.xlu0 %1847
      %1849 = vrot.lane.b32.xlu0 %v1358, 12
      %v1850 = vpop.permute.xlu0 %1849
      %1851 = vrot.lane.b32.xlu0 %v1359, 12
      %v1852 = vpop.permute.xlu0 %1851
      %1853 = vrot.lane.b32.xlu0 %v1360, 12
      %v1854 = vpop.permute.xlu0 %1853
      %1855 = vrot.lane.b32.xlu0 %v1361, 12
      %v1856 = vpop.permute.xlu0 %1855
      %1857 = vrot.lane.b32.xlu0 %v1362, 12
      %v1858 = vpop.permute.xlu0 %1857
      %1859 = vrot.lane.b32.xlu0 %v1363, 12
      %v1860 = vpop.permute.xlu0 %1859
      %1861 = vrot.lane.b32.xlu0 %v1364, 12
      %v1862 = vpop.permute.xlu0 %1861
      %1863 = vrot.lane.b32.xlu0 %v1365, 12
      %v1864 = vpop.permute.xlu0 %1863
      %1865 = vrot.lane.b32.xlu0 %v1366, 12
      %v1866 = vpop.permute.xlu0 %1865
      %1867 = vrot.lane.b32.xlu0 %v1367, 12
      %v1868 = vpop.permute.xlu0 %1867
      %1869 = vrot.lane.b32.xlu0 %v1368, 12
      %v1870 = vpop.permute.xlu0 %1869
      %1871 = vrot.lane.b32.xlu0 %v1369, 12
      %v1872 = vpop.permute.xlu0 %1871
      %1873 = vrot.lane.b32.xlu0 %v1370, 12
      %v1874 = vpop.permute.xlu0 %1873
      %1875 = vrot.lane.b32.xlu0 %v1371, 12
      %v1876 = vpop.permute.xlu0 %1875
      %1877 = vrot.lane.b32.xlu0 %v1372, 12
      %v1878 = vpop.permute.xlu0 %1877
      %1879 = vrot.lane.b32.xlu0 %v1373, 12
      %v1880 = vpop.permute.xlu0 %1879
      %1881 = vrot.lane.b32.xlu0 %v1374, 12
      %v1882 = vpop.permute.xlu0 %1881
      %1883 = vrot.lane.b32.xlu0 %v1375, 12
      %v1884 = vpop.permute.xlu0 %1883
      %1885 = vrot.lane.b32.xlu0 %v1376, 12
      %v1886 = vpop.permute.xlu0 %1885
      %1887 = vrot.lane.b32.xlu0 %v1377, 12
      %v1888 = vpop.permute.xlu0 %1887
      %1889 = vrot.lane.b32.xlu0 %v1378, 12
      %v1890 = vpop.permute.xlu0 %1889
      %1891 = vrot.lane.b32.xlu0 %v1379, 12
      %v1892 = vpop.permute.xlu0 %1891
      %1957 = vrot.lane.b32.xlu0 %v1380, 16
      %v1958 = vpop.permute.xlu0 %1957
      %1959 = vrot.lane.b32.xlu0 %v1381, 16
      %v1960 = vpop.permute.xlu0 %1959
      %1961 = vrot.lane.b32.xlu0 %v1382, 16
      %v1962 = vpop.permute.xlu0 %1961
      %1963 = vrot.lane.b32.xlu0 %v1383, 16
      %v1964 = vpop.permute.xlu0 %1963
      %1965 = vrot.lane.b32.xlu0 %v1384, 16
      %v1966 = vpop.permute.xlu0 %1965
      %1967 = vrot.lane.b32.xlu0 %v1385, 16
      %v1968 = vpop.permute.xlu0 %1967
      %1969 = vrot.lane.b32.xlu0 %v1386, 16
      %v1970 = vpop.permute.xlu0 %1969
      %1971 = vrot.lane.b32.xlu0 %v1387, 16
      %v1972 = vpop.permute.xlu0 %1971
      %1973 = vrot.lane.b32.xlu0 %v1388, 16
      %v1974 = vpop.permute.xlu0 %1973
      %1975 = vrot.lane.b32.xlu0 %v1389, 16
      %v1976 = vpop.permute.xlu0 %1975
      %1977 = vrot.lane.b32.xlu0 %v1390, 16
      %v1978 = vpop.permute.xlu0 %1977
      %1979 = vrot.lane.b32.xlu0 %v1391, 16
      %v1980 = vpop.permute.xlu0 %1979
      %1981 = vrot.lane.b32.xlu0 %v1392, 16
      %v1982 = vpop.permute.xlu0 %1981
      %1983 = vrot.lane.b32.xlu0 %v1393, 16
      %v1984 = vpop.permute.xlu0 %1983
      %1985 = vrot.lane.b32.xlu0 %v1394, 16
      %v1986 = vpop.permute.xlu0 %1985
      %1987 = vrot.lane.b32.xlu0 %v1395, 16
      %v1988 = vpop.permute.xlu0 %1987
      %1989 = vrot.lane.b32.xlu0 %v1396, 16
      %v1990 = vpop.permute.xlu0 %1989
      %1991 = vrot.lane.b32.xlu0 %v1397, 16
      %v1992 = vpop.permute.xlu0 %1991
      %1993 = vrot.lane.b32.xlu0 %v1398, 16
      %v1994 = vpop.permute.xlu0 %1993
      %1995 = vrot.lane.b32.xlu0 %v1399, 16
      %v1996 = vpop.permute.xlu0 %1995
      %1997 = vrot.lane.b32.xlu0 %v1400, 16
      %v1998 = vpop.permute.xlu0 %1997
      %1999 = vrot.lane.b32.xlu0 %v1401, 16
      %v2000 = vpop.permute.xlu0 %1999
      %2001 = vrot.lane.b32.xlu0 %v1402, 16
      %v2002 = vpop.permute.xlu0 %2001
      %2003 = vrot.lane.b32.xlu0 %v1403, 16
      %v2004 = vpop.permute.xlu0 %2003
      %2005 = vrot.lane.b32.xlu0 %v1404, 16
      %v2006 = vpop.permute.xlu0 %2005
      %2007 = vrot.lane.b32.xlu0 %v1405, 16
      %v2008 = vpop.permute.xlu0 %2007
      %2009 = vrot.lane.b32.xlu0 %v1406, 16
      %v2010 = vpop.permute.xlu0 %2009
      %2011 = vrot.lane.b32.xlu0 %v1407, 16
      %v2012 = vpop.permute.xlu0 %2011
      %2013 = vrot.lane.b32.xlu0 %v1408, 16
      %v2014 = vpop.permute.xlu0 %2013
      %2015 = vrot.lane.b32.xlu0 %v1409, 16
      %v2016 = vpop.permute.xlu0 %2015
      %2017 = vrot.lane.b32.xlu0 %v1410, 16
      %v2018 = vpop.permute.xlu0 %2017
      %2019 = vrot.lane.b32.xlu0 %v1411, 16
      %v2020 = vpop.permute.xlu0 %2019
      %2085 = vrot.lane.b32.xlu0 %v1412, 20
      %v2086 = vpop.permute.xlu0 %2085
      %2087 = vrot.lane.b32.xlu0 %v1413, 20
      %v2088 = vpop.permute.xlu0 %2087
      %2089 = vrot.lane.b32.xlu0 %v1414, 20
      %v2090 = vpop.permute.xlu0 %2089
      %2091 = vrot.lane.b32.xlu0 %v1415, 20
      %v2092 = vpop.permute.xlu0 %2091
      %2093 = vrot.lane.b32.xlu0 %v1416, 20
      %v2094 = vpop.permute.xlu0 %2093
      %2095 = vrot.lane.b32.xlu0 %v1417, 20
      %v2096 = vpop.permute.xlu0 %2095
      %2097 = vrot.lane.b32.xlu0 %v1418, 20
      %v2098 = vpop.permute.xlu0 %2097
      %2099 = vrot.lane.b32.xlu0 %v1419, 20
      %v2100 = vpop.permute.xlu0 %2099
      %2101 = vrot.lane.b32.xlu0 %v1420, 20
      %v2102 = vpop.permute.xlu0 %2101
      %2103 = vrot.lane.b32.xlu0 %v1421, 20
      %v2104 = vpop.permute.xlu0 %2103
      %2105 = vrot.lane.b32.xlu0 %v1422, 20
      %v2106 = vpop.permute.xlu0 %2105
      %2107 = vrot.lane.b32.xlu0 %v1423, 20
      %v2108 = vpop.permute.xlu0 %2107
      %2109 = vrot.lane.b32.xlu0 %v1424, 20
      %v2110 = vpop.permute.xlu0 %2109
      %2111 = vrot.lane.b32.xlu0 %v1425, 20
      %v2112 = vpop.permute.xlu0 %2111
      %2113 = vrot.lane.b32.xlu0 %v1426, 20
      %v2114 = vpop.permute.xlu0 %2113
      %2115 = vrot.lane.b32.xlu0 %v1427, 20
      %v2116 = vpop.permute.xlu0 %2115
      %2117 = vrot.lane.b32.xlu0 %v1428, 20
      %v2118 = vpop.permute.xlu0 %2117
      %2119 = vrot.lane.b32.xlu0 %v1429, 20
      %v2120 = vpop.permute.xlu0 %2119
      %2121 = vrot.lane.b32.xlu0 %v1430, 20
      %v2122 = vpop.permute.xlu0 %2121
      %2123 = vrot.lane.b32.xlu0 %v1431, 20
      %v2124 = vpop.permute.xlu0 %2123
      %2125 = vrot.lane.b32.xlu0 %v1432, 20
      %v2126 = vpop.permute.xlu0 %2125
      %2127 = vrot.lane.b32.xlu0 %v1433, 20
      %v2128 = vpop.permute.xlu0 %2127
      %2129 = vrot.lane.b32.xlu0 %v1434, 20
      %v2130 = vpop.permute.xlu0 %2129
      %2131 = vrot.lane.b32.xlu0 %v1435, 20
      %v2132 = vpop.permute.xlu0 %2131
      %2133 = vrot.lane.b32.xlu0 %v1436, 20
      %v2134 = vpop.permute.xlu0 %2133
      %2135 = vrot.lane.b32.xlu0 %v1437, 20
      %v2136 = vpop.permute.xlu0 %2135
      %2137 = vrot.lane.b32.xlu0 %v1438, 20
      %v2138 = vpop.permute.xlu0 %2137
      %2139 = vrot.lane.b32.xlu0 %v1439, 20
      %v2140 = vpop.permute.xlu0 %2139
      %2141 = vrot.lane.b32.xlu0 %v1440, 20
      %v2142 = vpop.permute.xlu0 %2141
      %2143 = vrot.lane.b32.xlu0 %v1441, 20
      %v2144 = vpop.permute.xlu0 %2143
      %2145 = vrot.lane.b32.xlu0 %v1442, 20
      %v2146 = vpop.permute.xlu0 %2145
      %2147 = vrot.lane.b32.xlu0 %v1443, 20
      %v2148 = vpop.permute.xlu0 %2147
      %2213 = vrot.lane.b32.xlu0 %v1445, 24
      %v2214 = vpop.permute.xlu0 %2213
      %2215 = vrot.lane.b32.xlu0 %v1446, 24
      %v2216 = vpop.permute.xlu0 %2215
      %2217 = vrot.lane.b32.xlu0 %v1447, 24
      %v2218 = vpop.permute.xlu0 %2217
      %2219 = vrot.lane.b32.xlu0 %v1448, 24
      %v2220 = vpop.permute.xlu0 %2219
      %2221 = vrot.lane.b32.xlu0 %v1449, 24
      %v2222 = vpop.permute.xlu0 %2221
      %2223 = vrot.lane.b32.xlu0 %v1450, 24
      %v2224 = vpop.permute.xlu0 %2223
      %2225 = vrot.lane.b32.xlu0 %v1451, 24
      %v2226 = vpop.permute.xlu0 %2225
      %2227 = vrot.lane.b32.xlu0 %v1452, 24
      %v2228 = vpop.permute.xlu0 %2227
      %2229 = vrot.lane.b32.xlu0 %v1453, 24
      %v2230 = vpop.permute.xlu0 %2229
      %2231 = vrot.lane.b32.xlu0 %v1454, 24
      %v2232 = vpop.permute.xlu0 %2231
      %2233 = vrot.lane.b32.xlu0 %v1455, 24
      %v2234 = vpop.permute.xlu0 %2233
      %2235 = vrot.lane.b32.xlu0 %v1456, 24
      %v2236 = vpop.permute.xlu0 %2235
      %2237 = vrot.lane.b32.xlu0 %v1457, 24
      %v2238 = vpop.permute.xlu0 %2237
      %2239 = vrot.lane.b32.xlu0 %v1458, 24
      %v2240 = vpop.permute.xlu0 %2239
      %2241 = vrot.lane.b32.xlu0 %v1459, 24
      %v2242 = vpop.permute.xlu0 %2241
      %2243 = vrot.lane.b32.xlu0 %v1460, 24
      %v2244 = vpop.permute.xlu0 %2243
      %2245 = vrot.lane.b32.xlu0 %v1461, 24
      %v2246 = vpop.permute.xlu0 %2245
      %2247 = vrot.lane.b32.xlu0 %v1462, 24
      %v2248 = vpop.permute.xlu0 %2247
      %2249 = vrot.lane.b32.xlu0 %v1463, 24
      %v2250 = vpop.permute.xlu0 %2249
      %2251 = vrot.lane.b32.xlu0 %v1464, 24
      %v2252 = vpop.permute.xlu0 %2251
      %2253 = vrot.lane.b32.xlu0 %v1465, 24
      %v2254 = vpop.permute.xlu0 %2253
      %2255 = vrot.lane.b32.xlu0 %v1466, 24
      %v2256 = vpop.permute.xlu0 %2255
      %2257 = vrot.lane.b32.xlu0 %v1467, 24
      %v2258 = vpop.permute.xlu0 %2257
      %2259 = vrot.lane.b32.xlu0 %v1468, 24
      %v2260 = vpop.permute.xlu0 %2259
      %2261 = vrot.lane.b32.xlu0 %v1469, 24
      %v2262 = vpop.permute.xlu0 %2261
      %2263 = vrot.lane.b32.xlu0 %v1470, 24
      %v2264 = vpop.permute.xlu0 %2263
      %2265 = vrot.lane.b32.xlu0 %v1471, 24
      %v2266 = vpop.permute.xlu0 %2265
      %2267 = vrot.lane.b32.xlu0 %v1472, 24
      %v2268 = vpop.permute.xlu0 %2267
      %2269 = vrot.lane.b32.xlu0 %v1473, 24
      %v2270 = vpop.permute.xlu0 %2269
      %2271 = vrot.lane.b32.xlu0 %v1474, 24
      %v2272 = vpop.permute.xlu0 %2271
      %2273 = vrot.lane.b32.xlu0 %v1475, 24
      %v2274 = vpop.permute.xlu0 %2273
      %2275 = vrot.lane.b32.xlu0 %v1476, 24
      %v2276 = vpop.permute.xlu0 %2275
      %2341 = vrot.lane.b32.xlu0 %v1477, 28
      %v2342 = vpop.permute.xlu0 %2341
      %2343 = vrot.lane.b32.xlu0 %v1478, 28
      %v2344 = vpop.permute.xlu0 %2343
      %2345 = vrot.lane.b32.xlu0 %v1479, 28
      %v2346 = vpop.permute.xlu0 %2345
      %2347 = vrot.lane.b32.xlu0 %v1480, 28
      %v2348 = vpop.permute.xlu0 %2347
      %2349 = vrot.lane.b32.xlu0 %v1481, 28
      %v2350 = vpop.permute.xlu0 %2349
      %2351 = vrot.lane.b32.xlu0 %v1482, 28
      %v2352 = vpop.permute.xlu0 %2351
      %2353 = vrot.lane.b32.xlu0 %v1483, 28
      %v2354 = vpop.permute.xlu0 %2353
      %2355 = vrot.lane.b32.xlu0 %v1484, 28
      %v2356 = vpop.permute.xlu0 %2355
      %2357 = vrot.lane.b32.xlu0 %v1485, 28
      %v2358 = vpop.permute.xlu0 %2357
      %2359 = vrot.lane.b32.xlu0 %v1486, 28
      %v2360 = vpop.permute.xlu0 %2359
      %2361 = vrot.lane.b32.xlu0 %v1487, 28
      %v2362 = vpop.permute.xlu0 %2361
      %2363 = vrot.lane.b32.xlu0 %v1488, 28
      %v2364 = vpop.permute.xlu0 %2363
      %2365 = vrot.lane.b32.xlu0 %v1489, 28
      %v2366 = vpop.permute.xlu0 %2365
      %2367 = vrot.lane.b32.xlu0 %v1490, 28
      %v2368 = vpop.permute.xlu0 %2367
      %2369 = vrot.lane.b32.xlu0 %v1491, 28
      %v2370 = vpop.permute.xlu0 %2369
      %2371 = vrot.lane.b32.xlu0 %v1492, 28
      %v2372 = vpop.permute.xlu0 %2371
      %2373 = vrot.lane.b32.xlu0 %v1493, 28
      %v2374 = vpop.permute.xlu0 %2373
      %2375 = vrot.lane.b32.xlu0 %v1494, 28
      %v2376 = vpop.permute.xlu0 %2375
      %2377 = vrot.lane.b32.xlu0 %v1495, 28
      %v2378 = vpop.permute.xlu0 %2377
      %2379 = vrot.lane.b32.xlu0 %v1496, 28
      %v2380 = vpop.permute.xlu0 %2379
      %2381 = vrot.lane.b32.xlu0 %v1497, 28
      %v2382 = vpop.permute.xlu0 %2381
      %2383 = vrot.lane.b32.xlu0 %v1498, 28
      %v2384 = vpop.permute.xlu0 %2383
      %2385 = vrot.lane.b32.xlu0 %v1499, 28
      %v2386 = vpop.permute.xlu0 %2385
      %2387 = vrot.lane.b32.xlu0 %v1500, 28
      %v2388 = vpop.permute.xlu0 %2387
      %2389 = vrot.lane.b32.xlu0 %v1501, 28
      %v2390 = vpop.permute.xlu0 %2389
      %2391 = vrot.lane.b32.xlu0 %v1502, 28
      %v2392 = vpop.permute.xlu0 %2391
      %2393 = vrot.lane.b32.xlu0 %v1503, 28
      %v2394 = vpop.permute.xlu0 %2393
      %2395 = vrot.lane.b32.xlu0 %v1504, 28
      %v2396 = vpop.permute.xlu0 %2395
      %2397 = vrot.lane.b32.xlu0 %v1505, 28
      %v2398 = vpop.permute.xlu0 %2397
      %2399 = vrot.lane.b32.xlu0 %v1506, 28
      %v2400 = vpop.permute.xlu0 %2399
      %2401 = vrot.lane.b32.xlu0 %v1507, 28
      %v2402 = vpop.permute.xlu0 %2401
      %2403 = vrot.lane.b32.xlu0 %v1508, 28
      %v2404 = vpop.permute.xlu0 %2403
      %2469 = vrot.lane.b32.xlu0 %v1509, 32
      %v2470 = vpop.permute.xlu0 %2469
      %2471 = vrot.lane.b32.xlu0 %v1510, 32
      %v2472 = vpop.permute.xlu0 %2471
      %2473 = vrot.lane.b32.xlu0 %v1511, 32
      %v2474 = vpop.permute.xlu0 %2473
      %2475 = vrot.lane.b32.xlu0 %v1512, 32
      %v2476 = vpop.permute.xlu0 %2475
      %2477 = vrot.lane.b32.xlu0 %v1513, 32
      %v2478 = vpop.permute.xlu0 %2477
      %2479 = vrot.lane.b32.xlu0 %v1514, 32
      %v2480 = vpop.permute.xlu0 %2479
      %2481 = vrot.lane.b32.xlu0 %v1515, 32
      %v2482 = vpop.permute.xlu0 %2481
      %2483 = vrot.lane.b32.xlu0 %v1516, 32
      %v2484 = vpop.permute.xlu0 %2483
      %2485 = vrot.lane.b32.xlu0 %v1517, 32
      %v2486 = vpop.permute.xlu0 %2485
      %2487 = vrot.lane.b32.xlu0 %v1518, 32
      %v2488 = vpop.permute.xlu0 %2487
      %2489 = vrot.lane.b32.xlu0 %v1519, 32
      %v2490 = vpop.permute.xlu0 %2489
      %2491 = vrot.lane.b32.xlu0 %v1520, 32
      %v2492 = vpop.permute.xlu0 %2491
      %2493 = vrot.lane.b32.xlu0 %v1521, 32
      %v2494 = vpop.permute.xlu0 %2493
      %2495 = vrot.lane.b32.xlu0 %v1522, 32
      %v2496 = vpop.permute.xlu0 %2495
      %2497 = vrot.lane.b32.xlu0 %v1523, 32
      %v2498 = vpop.permute.xlu0 %2497
      %2499 = vrot.lane.b32.xlu0 %v1524, 32
      %v2500 = vpop.permute.xlu0 %2499
      %2501 = vrot.lane.b32.xlu0 %v1525, 32
      %v2502 = vpop.permute.xlu0 %2501
      %2503 = vrot.lane.b32.xlu0 %v1526, 32
      %v2504 = vpop.permute.xlu0 %2503
      %2505 = vrot.lane.b32.xlu0 %v1527, 32
      %v2506 = vpop.permute.xlu0 %2505
      %2507 = vrot.lane.b32.xlu0 %v1528, 32
      %v2508 = vpop.permute.xlu0 %2507
      %2509 = vrot.lane.b32.xlu0 %v1529, 32
      %v2510 = vpop.permute.xlu0 %2509
      %2511 = vrot.lane.b32.xlu0 %v1530, 32
      %v2512 = vpop.permute.xlu0 %2511
      %2513 = vrot.lane.b32.xlu0 %v1531, 32
      %v2514 = vpop.permute.xlu0 %2513
      %2515 = vrot.lane.b32.xlu0 %v1532, 32
      %v2516 = vpop.permute.xlu0 %2515
      %2517 = vrot.lane.b32.xlu0 %v1533, 32
      %v2518 = vpop.permute.xlu0 %2517
      %2519 = vrot.lane.b32.xlu0 %v1534, 32
      %v2520 = vpop.permute.xlu0 %2519
      %2521 = vrot.lane.b32.xlu0 %v1535, 32
      %v2522 = vpop.permute.xlu0 %2521
      %2523 = vrot.lane.b32.xlu0 %v1536, 32
      %v2524 = vpop.permute.xlu0 %2523
      %2525 = vrot.lane.b32.xlu0 %v1537, 32
      %v2526 = vpop.permute.xlu0 %2525
      %2527 = vrot.lane.b32.xlu0 %v1538, 32
      %v2528 = vpop.permute.xlu0 %2527
      %2529 = vrot.lane.b32.xlu0 %v1539, 32
      %v2530 = vpop.permute.xlu0 %2529
      %2531 = vrot.lane.b32.xlu0 %v1540, 32
      %v2532 = vpop.permute.xlu0 %2531
      %v2565 = vsel %vm1163, %v1252, %v1574
      %v2566 = vsel %vm1163, %v1253, %v1576
      %v2567 = vsel %vm1163, %v1254, %v1578
      %v2568 = vsel %vm1163, %v1255, %v1580
      %v2569 = vsel %vm1163, %v1256, %v1582
      %v2570 = vsel %vm1163, %v1257, %v1584
      %v2571 = vsel %vm1163, %v1258, %v1586
      %v2572 = vsel %vm1163, %v1259, %v1588
      %v2573 = vsel %vm1163, %v1260, %v1590
      %v2574 = vsel %vm1163, %v1261, %v1592
      %v2575 = vsel %vm1163, %v1262, %v1594
      %v2576 = vsel %vm1163, %v1263, %v1596
      %v2577 = vsel %vm1163, %v1264, %v1598
      %v2578 = vsel %vm1163, %v1265, %v1600
      %v2579 = vsel %vm1163, %v1266, %v1602
      %v2580 = vsel %vm1163, %v1267, %v1604
      %v2581 = vsel %vm1163, %v1268, %v1606
      %v2582 = vsel %vm1163, %v1269, %v1608
      %v2583 = vsel %vm1163, %v1270, %v1610
      %v2584 = vsel %vm1163, %v1271, %v1612
      %v2585 = vsel %vm1163, %v1272, %v1614
      %v2586 = vsel %vm1163, %v1273, %v1616
      %v2587 = vsel %vm1163, %v1274, %v1618
      %v2588 = vsel %vm1163, %v1275, %v1620
      %v2589 = vsel %vm1163, %v1276, %v1622
      %v2590 = vsel %vm1163, %v1277, %v1624
      %v2591 = vsel %vm1163, %v1278, %v1626
      %v2592 = vsel %vm1163, %v1279, %v1628
      %v2593 = vsel %vm1163, %v1280, %v1630
      %v2594 = vsel %vm1163, %v1281, %v1632
      %v2595 = vsel %vm1163, %v1282, %v1634
      %v2596 = vsel %vm1163, %v1283, %v1636
      %v2597 = vsel %vm727, %v2565, %v1702
      %v2598 = vsel %vm727, %v2566, %v1704
      %v2599 = vsel %vm727, %v2567, %v1706
      %v2600 = vsel %vm727, %v2568, %v1708
      %v2601 = vsel %vm727, %v2569, %v1710
      %v2602 = vsel %vm727, %v2570, %v1712
      %v2603 = vsel %vm727, %v2571, %v1714
      %v2604 = vsel %vm727, %v2572, %v1716
      %v2605 = vsel %vm727, %v2573, %v1718
      %v2606 = vsel %vm727, %v2574, %v1720
      %v2607 = vsel %vm727, %v2575, %v1722
      %v2608 = vsel %vm727, %v2576, %v1724
      %v2609 = vsel %vm727, %v2577, %v1726
      %v2610 = vsel %vm727, %v2578, %v1728
      %v2611 = vsel %vm727, %v2579, %v1730
      %v2612 = vsel %vm727, %v2580, %v1732
      %v2613 = vsel %vm727, %v2581, %v1734
      %v2614 = vsel %vm727, %v2582, %v1736
      %v2615 = vsel %vm727, %v2583, %v1738
      %v2616 = vsel %vm727, %v2584, %v1740
      %v2617 = vsel %vm727, %v2585, %v1742
      %v2618 = vsel %vm727, %v2586, %v1744
      %v2619 = vsel %vm727, %v2587, %v1746
      %v2620 = vsel %vm727, %v2588, %v1748
      %v2621 = vsel %vm727, %v2589, %v1750
      %v2622 = vsel %vm727, %v2590, %v1752
      %v2623 = vsel %vm727, %v2591, %v1754
      %v2624 = vsel %vm727, %v2592, %v1756
      %v2625 = vsel %vm727, %v2593, %v1758
      %v2626 = vsel %vm727, %v2594, %v1760
      %v2627 = vsel %vm727, %v2595, %v1762
      %v2628 = vsel %vm727, %v2596, %v1764
      %vm2629 = vcmask 97280
      %v2630 = vsel %vm2629, %v2597, %v1830
      %v2631 = vsel %vm2629, %v2598, %v1832
      %v2632 = vsel %vm2629, %v2599, %v1834
      %v2633 = vsel %vm2629, %v2600, %v1836
      %v2634 = vsel %vm2629, %v2601, %v1838
      %v2635 = vsel %vm2629, %v2602, %v1840
      %v2636 = vsel %vm2629, %v2603, %v1842
      %v2637 = vsel %vm2629, %v2604, %v1844
      %v2638 = vsel %vm2629, %v2605, %v1846
      %v2639 = vsel %vm2629, %v2606, %v1848
      %v2640 = vsel %vm2629, %v2607, %v1850
      %v2641 = vsel %vm2629, %v2608, %v1852
      %v2642 = vsel %vm2629, %v2609, %v1854
      %v2643 = vsel %vm2629, %v2610, %v1856
      %v2644 = vsel %vm2629, %v2611, %v1858
      %v2645 = vsel %vm2629, %v2612, %v1860
      %v2646 = vsel %vm2629, %v2613, %v1862
      %v2647 = vsel %vm2629, %v2614, %v1864
      %v2648 = vsel %vm2629, %v2615, %v1866
      %v2649 = vsel %vm2629, %v2616, %v1868
      %v2650 = vsel %vm2629, %v2617, %v1870
      %v2651 = vsel %vm2629, %v2618, %v1872
      %v2652 = vsel %vm2629, %v2619, %v1874
      %v2653 = vsel %vm2629, %v2620, %v1876
      %v2654 = vsel %vm2629, %v2621, %v1878
      %v2655 = vsel %vm2629, %v2622, %v1880
      %v2656 = vsel %vm2629, %v2623, %v1882
      %v2657 = vsel %vm2629, %v2624, %v1884
      %v2658 = vsel %vm2629, %v2625, %v1886
      %v2659 = vsel %vm2629, %v2626, %v1888
      %v2660 = vsel %vm2629, %v2627, %v1890
      %v2661 = vsel %vm2629, %v2628, %v1892
      %vm2662 = vcmask 130048
      %v2663 = vsel %vm2662, %v2630, %v1958
      %v2664 = vsel %vm2662, %v2631, %v1960
      %v2665 = vsel %vm2662, %v2632, %v1962
      %v2666 = vsel %vm2662, %v2633, %v1964
      %v2667 = vsel %vm2662, %v2634, %v1966
      %v2668 = vsel %vm2662, %v2635, %v1968
      %v2669 = vsel %vm2662, %v2636, %v1970
      %v2670 = vsel %vm2662, %v2637, %v1972
      %v2671 = vsel %vm2662, %v2638, %v1974
      %v2672 = vsel %vm2662, %v2639, %v1976
      %v2673 = vsel %vm2662, %v2640, %v1978
      %v2674 = vsel %vm2662, %v2641, %v1980
      %v2675 = vsel %vm2662, %v2642, %v1982
      %v2676 = vsel %vm2662, %v2643, %v1984
      %v2677 = vsel %vm2662, %v2644, %v1986
      %v2678 = vsel %vm2662, %v2645, %v1988
      %v2679 = vsel %vm2662, %v2646, %v1990
      %v2680 = vsel %vm2662, %v2647, %v1992
      %v2681 = vsel %vm2662, %v2648, %v1994
      %v2682 = vsel %vm2662, %v2649, %v1996
      %v2683 = vsel %vm2662, %v2650, %v1998
      %v2684 = vsel %vm2662, %v2651, %v2000
      %v2685 = vsel %vm2662, %v2652, %v2002
      %v2686 = vsel %vm2662, %v2653, %v2004
      %v2687 = vsel %vm2662, %v2654, %v2006
      %v2688 = vsel %vm2662, %v2655, %v2008
      %v2689 = vsel %vm2662, %v2656, %v2010
      %v2690 = vsel %vm2662, %v2657, %v2012
      %v2691 = vsel %vm2662, %v2658, %v2014
      %v2692 = vsel %vm2662, %v2659, %v2016
      %v2693 = vsel %vm2662, %v2660, %v2018
      %v2694 = vsel %vm2662, %v2661, %v2020
      %vm2695 = vcmask 162816
      %v2696 = vsel %vm2695, %v2663, %v2086
      %v2697 = vsel %vm2695, %v2664, %v2088
      %v2698 = vsel %vm2695, %v2665, %v2090
      %v2699 = vsel %vm2695, %v2666, %v2092
      %v2700 = vsel %vm2695, %v2667, %v2094
      %v2701 = vsel %vm2695, %v2668, %v2096
      %v2702 = vsel %vm2695, %v2669, %v2098
      %v2703 = vsel %vm2695, %v2670, %v2100
      %v2704 = vsel %vm2695, %v2671, %v2102
      %v2705 = vsel %vm2695, %v2672, %v2104
      %v2706 = vsel %vm2695, %v2673, %v2106
      %v2707 = vsel %vm2695, %v2674, %v2108
      %v2708 = vsel %vm2695, %v2675, %v2110
      %v2709 = vsel %vm2695, %v2676, %v2112
      %v2710 = vsel %vm2695, %v2677, %v2114
      %v2711 = vsel %vm2695, %v2678, %v2116
      %v2712 = vsel %vm2695, %v2679, %v2118
      %v2713 = vsel %vm2695, %v2680, %v2120
      %v2714 = vsel %vm2695, %v2681, %v2122
      %v2715 = vsel %vm2695, %v2682, %v2124
      %v2716 = vsel %vm2695, %v2683, %v2126
      %v2717 = vsel %vm2695, %v2684, %v2128
      %v2718 = vsel %vm2695, %v2685, %v2130
      %v2719 = vsel %vm2695, %v2686, %v2132
      %v2720 = vsel %vm2695, %v2687, %v2134
      %v2721 = vsel %vm2695, %v2688, %v2136
      %v2722 = vsel %vm2695, %v2689, %v2138
      %v2723 = vsel %vm2695, %v2690, %v2140
      %v2724 = vsel %vm2695, %v2691, %v2142
      %v2725 = vsel %vm2695, %v2692, %v2144
      %v2726 = vsel %vm2695, %v2693, %v2146
      %v2727 = vsel %vm2695, %v2694, %v2148
      %vm2728 = vcmask 195584
      %v2729 = vsel %vm2728, %v2696, %v2214
      %v2730 = vsel %vm2728, %v2697, %v2216
      %v2731 = vsel %vm2728, %v2698, %v2218
      %v2732 = vsel %vm2728, %v2699, %v2220
      %v2733 = vsel %vm2728, %v2700, %v2222
      %v2734 = vsel %vm2728, %v2701, %v2224
      %v2735 = vsel %vm2728, %v2702, %v2226
      %v2736 = vsel %vm2728, %v2703, %v2228
      %v2737 = vsel %vm2728, %v2704, %v2230
      %v2738 = vsel %vm2728, %v2705, %v2232
      %v2739 = vsel %vm2728, %v2706, %v2234
      %v2740 = vsel %vm2728, %v2707, %v2236
      %v2741 = vsel %vm2728, %v2708, %v2238
      %v2742 = vsel %vm2728, %v2709, %v2240
      %v2743 = vsel %vm2728, %v2710, %v2242
      %v2744 = vsel %vm2728, %v2711, %v2244
      %v2745 = vsel %vm2728, %v2712, %v2246
      %v2746 = vsel %vm2728, %v2713, %v2248
      %v2747 = vsel %vm2728, %v2714, %v2250
      %v2748 = vsel %vm2728, %v2715, %v2252
      %v2749 = vsel %vm2728, %v2716, %v2254
      %v2750 = vsel %vm2728, %v2717, %v2256
      %v2751 = vsel %vm2728, %v2718, %v2258
      %v2752 = vsel %vm2728, %v2719, %v2260
      %v2753 = vsel %vm2728, %v2720, %v2262
      %v2754 = vsel %vm2728, %v2721, %v2264
      %v2755 = vsel %vm2728, %v2722, %v2266
      %v2756 = vsel %vm2728, %v2723, %v2268
      %v2757 = vsel %vm2728, %v2724, %v2270
      %v2758 = vsel %vm2728, %v2725, %v2272
      %v2759 = vsel %vm2728, %v2726, %v2274
      %v2760 = vsel %vm2728, %v2727, %v2276
      %vm2761 = vcmask 228352
      %v2762 = vsel %vm2761, %v2729, %v2342
      %v2763 = vsel %vm2761, %v2730, %v2344
      %v2764 = vsel %vm2761, %v2731, %v2346
      %v2765 = vsel %vm2761, %v2732, %v2348
      %v2766 = vsel %vm2761, %v2733, %v2350
      %v2767 = vsel %vm2761, %v2734, %v2352
      %v2768 = vsel %vm2761, %v2735, %v2354
      %v2769 = vsel %vm2761, %v2736, %v2356
      %v2770 = vsel %vm2761, %v2737, %v2358
      %v2771 = vsel %vm2761, %v2738, %v2360
      %v2772 = vsel %vm2761, %v2739, %v2362
      %v2773 = vsel %vm2761, %v2740, %v2364
      %v2774 = vsel %vm2761, %v2741, %v2366
      %v2775 = vsel %vm2761, %v2742, %v2368
      %v2776 = vsel %vm2761, %v2743, %v2370
      %v2777 = vsel %vm2761, %v2744, %v2372
      %v2778 = vsel %vm2761, %v2745, %v2374
      %v2779 = vsel %vm2761, %v2746, %v2376
      %v2780 = vsel %vm2761, %v2747, %v2378
      %v2781 = vsel %vm2761, %v2748, %v2380
      %v2782 = vsel %vm2761, %v2749, %v2382
      %v2783 = vsel %vm2761, %v2750, %v2384
      %v2784 = vsel %vm2761, %v2751, %v2386
      %v2785 = vsel %vm2761, %v2752, %v2388
      %v2786 = vsel %vm2761, %v2753, %v2390
      %v2787 = vsel %vm2761, %v2754, %v2392
      %v2788 = vsel %vm2761, %v2755, %v2394
      %v2789 = vsel %vm2761, %v2756, %v2396
      %v2790 = vsel %vm2761, %v2757, %v2398
      %v2791 = vsel %vm2761, %v2758, %v2400
      %v2792 = vsel %vm2761, %v2759, %v2402
      %v2793 = vsel %vm2761, %v2760, %v2404
      %vm2794 = vcmask 261120
      %v2795 = vsel %vm2794, %v2762, %v2470
      %v2796 = vsel %vm2794, %v2763, %v2472
      %v2797 = vsel %vm2794, %v2764, %v2474
      %v2798 = vsel %vm2794, %v2765, %v2476
      %v2799 = vsel %vm2794, %v2766, %v2478
      %v2800 = vsel %vm2794, %v2767, %v2480
      %v2801 = vsel %vm2794, %v2768, %v2482
      %v2802 = vsel %vm2794, %v2769, %v2484
      %v2803 = vsel %vm2794, %v2770, %v2486
      %v2804 = vsel %vm2794, %v2771, %v2488
      %v2805 = vsel %vm2794, %v2772, %v2490
      %v2806 = vsel %vm2794, %v2773, %v2492
      %v2807 = vsel %vm2794, %v2774, %v2494
      %v2808 = vsel %vm2794, %v2775, %v2496
      %v2809 = vsel %vm2794, %v2776, %v2498
      %v2810 = vsel %vm2794, %v2777, %v2500
      %v2811 = vsel %vm2794, %v2778, %v2502
      %v2812 = vsel %vm2794, %v2779, %v2504
      %v2813 = vsel %vm2794, %v2780, %v2506
      %v2814 = vsel %vm2794, %v2781, %v2508
      %v2815 = vsel %vm2794, %v2782, %v2510
      %v2816 = vsel %vm2794, %v2783, %v2512
      %v2817 = vsel %vm2794, %v2784, %v2514
      %v2818 = vsel %vm2794, %v2785, %v2516
      %v2819 = vsel %vm2794, %v2786, %v2518
      %v2820 = vsel %vm2794, %v2787, %v2520
      %v2821 = vsel %vm2794, %v2788, %v2522
      %v2822 = vsel %vm2794, %v2789, %v2524
      %v2823 = vsel %vm2794, %v2790, %v2526
      %v2824 = vsel %vm2794, %v2791, %v2528
      %v2825 = vsel %vm2794, %v2792, %v2530
      %v2826 = vsel %vm2794, %v2793, %v2532
      %v2827 = vpack.c.bf16 %v2796, %v2795
      %v2828 = vpack.c.bf16 %v2798, %v2797
      %v2829 = vpack.c.bf16 %v2800, %v2799
      %v2830 = vpack.c.bf16 %v2802, %v2801
      %v2831 = vpack.c.bf16 %v2804, %v2803
      %v2832 = vpack.c.bf16 %v2806, %v2805
      %v2833 = vpack.c.bf16 %v2808, %v2807
      %v2834 = vpack.c.bf16 %v2810, %v2809
      %v2835 = vpack.c.bf16 %v2812, %v2811
      %v2836 = vpack.c.bf16 %v2814, %v2813
      %v2837 = vpack.c.bf16 %v2816, %v2815
      %v2838 = vpack.c.bf16 %v2818, %v2817
      %v2839 = vpack.c.bf16 %v2820, %v2819
      %v2840 = vpack.c.bf16 %v2822, %v2821
      %v2841 = vpack.c.bf16 %v2824, %v2823
      %v2842 = vpack.c.bf16 %v2826, %v2825
      %v2843 = vld [vmem:[%s525] sm:$0xf]
      %v2844 = vld [vmem:[%s525 + $0x4] sm:$0xf]
      %v2845 = vld [vmem:[%s525 + $0x8] sm:$0xf]
      %v2846 = vld [vmem:[%s525 + $0xc] sm:$0xf]
      %v2847 = vld [vmem:[%s525 + $0x10] sm:$0x3]
      %v2853 = vunpack.c.l.b16 %v2843
      %v2854 = vunpack.c.l.b16 %v2844
      %v2855 = vunpack.c.l.b16 %v2845
      %v2856 = vunpack.c.l.b16 %v2846
      %v2857 = vunpack.c.l.b16 %v2847
      %v2858 = vpack.c.b16 %v2854, %v2853
      %v2859 = vpack.c.b16 %v2856, %v2855
      %v2860 = vpack.c.b16 %v2857, %v2857
      %vm2863 = vcmask 293888
      %v2865 = vsel %vm2863, %v2827, 0
      %v2868 = vsel %vm2863, %v2828, 0
      %v2871 = vsel %vm2863, %v2829, 0
      %v2874 = vsel %vm2863, %v2830, 0
      %v2877 = vsel %vm2863, %v2831, 0
      %v2880 = vsel %vm2863, %v2832, 0
      %v2883 = vsel %vm2863, %v2833, 0
      %v2886 = vsel %vm2863, %v2834, 0
      %v2889 = vsel %vm2863, %v2835, 0
      %v2892 = vsel %vm2863, %v2836, 0
      %v2895 = vsel %vm2863, %v2837, 0
      %v2898 = vsel %vm2863, %v2838, 0
      %v2901 = vsel %vm2863, %v2839, 0
      %v2904 = vsel %vm2863, %v2840, 0
      %v2907 = vsel %vm2863, %v2841, 0
      %v2910 = vsel %vm2863, %v2842, 0
      %vm2912 = vcmask 1041408
      %v2914 = vsel %vm2912, %v2860, 0
      %2916 = vmatpush.bf16.msra.mxu0 0
      %2917 = vmatpush.bf16.msra.mxu0 0
      %2918 = vmatpush.bf16.msra.mxu0 0
      %2919 = vmatpush.bf16.msra.mxu0 0
      %2920 = vmatpush.bf16.msra.mxu0 0
      %2921 = vmatpush.bf16.msra.mxu0 %v2914
      %2922 = vmatpush.bf16.msra.mxu0 %v2859
      %2923 = vmatpush.bf16.msra.mxu0 %v2858
      %2924 = vmatmul.bf16.gmra.mxu0 %v2865
      %v2925 = vpop.f32.mrf.mxu0
      %v2926 = vadd.f32 0.0, %v2925
      %v2927 = vpop.f32.mrf.mxu0
      %v2928 = vadd.f32 0.0, %v2927
      %2929 = vmatmul.bf16.gmra.mxu0 %v2868
      %v2930 = vpop.f32.mrf.mxu0
      %v2931 = vadd.f32 0.0, %v2930
      %v2932 = vpop.f32.mrf.mxu0
      %v2933 = vadd.f32 0.0, %v2932
      %2934 = vmatmul.bf16.gmra.mxu0 %v2871
      %v2935 = vpop.f32.mrf.mxu0
      %v2936 = vadd.f32 0.0, %v2935
      %v2937 = vpop.f32.mrf.mxu0
      %v2938 = vadd.f32 0.0, %v2937
      %2939 = vmatmul.bf16.gmra.mxu0 %v2874
      %v2940 = vpop.f32.mrf.mxu0
      %v2941 = vadd.f32 0.0, %v2940
      %v2942 = vpop.f32.mrf.mxu0
      %v2943 = vadd.f32 0.0, %v2942
      %2944 = vmatmul.bf16.gmra.mxu0 %v2877
      %v2945 = vpop.f32.mrf.mxu0
      %v2946 = vadd.f32 0.0, %v2945
      %v2947 = vpop.f32.mrf.mxu0
      %v2948 = vadd.f32 0.0, %v2947
      %2949 = vmatmul.bf16.gmra.mxu0 %v2880
      %v2950 = vpop.f32.mrf.mxu0
      %v2951 = vadd.f32 0.0, %v2950
      %v2952 = vpop.f32.mrf.mxu0
      %v2953 = vadd.f32 0.0, %v2952
      %2954 = vmatmul.bf16.gmra.mxu0 %v2883
      %v2955 = vpop.f32.mrf.mxu0
      %v2956 = vadd.f32 0.0, %v2955
      %v2957 = vpop.f32.mrf.mxu0
      %v2958 = vadd.f32 0.0, %v2957
      %2959 = vmatmul.bf16.gmra.mxu0 %v2886
      %v2960 = vpop.f32.mrf.mxu0
      %v2961 = vadd.f32 0.0, %v2960
      %v2962 = vpop.f32.mrf.mxu0
      %v2963 = vadd.f32 0.0, %v2962
      %2964 = vmatmul.bf16.gmra.mxu0 %v2889
      %v2965 = vpop.f32.mrf.mxu0
      %v2966 = vadd.f32 0.0, %v2965
      %v2967 = vpop.f32.mrf.mxu0
      %v2968 = vadd.f32 0.0, %v2967
      %2969 = vmatmul.bf16.gmra.mxu0 %v2892
      %v2970 = vpop.f32.mrf.mxu0
      %v2971 = vadd.f32 0.0, %v2970
      %v2972 = vpop.f32.mrf.mxu0
      %v2973 = vadd.f32 0.0, %v2972
      %2974 = vmatmul.bf16.gmra.mxu0 %v2895
      %v2975 = vpop.f32.mrf.mxu0
      %v2976 = vadd.f32 0.0, %v2975
      %v2977 = vpop.f32.mrf.mxu0
      %v2978 = vadd.f32 0.0, %v2977
      %2979 = vmatmul.bf16.gmra.mxu0 %v2898
      %v2980 = vpop.f32.mrf.mxu0
      %v2981 = vadd.f32 0.0, %v2980
      %v2982 = vpop.f32.mrf.mxu0
      %v2983 = vadd.f32 0.0, %v2982
      %2984 = vmatmul.bf16.gmra.mxu0 %v2901
      %v2985 = vpop.f32.mrf.mxu0
      %v2986 = vadd.f32 0.0, %v2985
      %v2987 = vpop.f32.mrf.mxu0
      %v2988 = vadd.f32 0.0, %v2987
      %2989 = vmatmul.bf16.gmra.mxu0 %v2904
      %v2990 = vpop.f32.mrf.mxu0
      %v2991 = vadd.f32 0.0, %v2990
      %v2992 = vpop.f32.mrf.mxu0
      %v2993 = vadd.f32 0.0, %v2992
      %2994 = vmatmul.bf16.gmra.mxu0 %v2907
      %v2995 = vpop.f32.mrf.mxu0
      %v2996 = vadd.f32 0.0, %v2995
      %v2997 = vpop.f32.mrf.mxu0
      %v2998 = vadd.f32 0.0, %v2997
      %2999 = vmatmul.bf16.gmra.mxu0 %v2910
      %v3000 = vpop.f32.mrf.mxu0
      %v3001 = vadd.f32 0.0, %v3000
      %v3002 = vpop.f32.mrf.mxu0
      %v3003 = vadd.f32 0.0, %v3002
      %3004 = vdwg.mxu0
      %3005 = vst.msk [vmem:[%s534] sm:$0xff] %vm1163, %v2926
      %3006 = vst.msk [vmem:[%s534 + $0x8] sm:$0xff] %vm1163, %v2928
      %3007 = vst.msk [vmem:[%s534 + $0x10] sm:$0xff] %vm1163, %v2931
      %3008 = vst.msk [vmem:[%s534 + $0x18] sm:$0xff] %vm1163, %v2933
      %3009 = vst.msk [vmem:[%s534 + $0x20] sm:$0xff] %vm1163, %v2936
      %3010 = vst.msk [vmem:[%s534 + $0x28] sm:$0xff] %vm1163, %v2938
      %3011 = vst.msk [vmem:[%s534 + $0x30] sm:$0xff] %vm1163, %v2941
      %3012 = vst.msk [vmem:[%s534 + $0x38] sm:$0xff] %vm1163, %v2943
      %3013 = vst.msk [vmem:[%s534 + $0x40] sm:$0xff] %vm1163, %v2946
      %3014 = vst.msk [vmem:[%s534 + $0x48] sm:$0xff] %vm1163, %v2948
      %3015 = vst.msk [vmem:[%s534 + $0x50] sm:$0xff] %vm1163, %v2951
      %3016 = vst.msk [vmem:[%s534 + $0x58] sm:$0xff] %vm1163, %v2953
      %3017 = vst.msk [vmem:[%s534 + $0x60] sm:$0xff] %vm1163, %v2956
      %3018 = vst.msk [vmem:[%s534 + $0x68] sm:$0xff] %vm1163, %v2958
      %3019 = vst.msk [vmem:[%s534 + $0x70] sm:$0xff] %vm1163, %v2961
      %3020 = vst.msk [vmem:[%s534 + $0x78] sm:$0xff] %vm1163, %v2963
      %3021 = vst.msk [vmem:[%s534 + $0x80] sm:$0xff] %vm1163, %v2966
      %3022 = vst.msk [vmem:[%s534 + $0x88] sm:$0xff] %vm1163, %v2968
      %3023 = vst.msk [vmem:[%s534 + $0x90] sm:$0xff] %vm1163, %v2971
      %3024 = vst.msk [vmem:[%s534 + $0x98] sm:$0xff] %vm1163, %v2973
      %3025 = vst.msk [vmem:[%s534 + $0xa0] sm:$0xff] %vm1163, %v2976
      %3026 = vst.msk [vmem:[%s534 + $0xa8] sm:$0xff] %vm1163, %v2978
      %3027 = vst.msk [vmem:[%s534 + $0xb0] sm:$0xff] %vm1163, %v2981
      %3028 = vst.msk [vmem:[%s534 + $0xb8] sm:$0xff] %vm1163, %v2983
      %3029 = vst.msk [vmem:[%s534 + $0xc0] sm:$0xff] %vm1163, %v2986
      %3030 = vst.msk [vmem:[%s534 + $0xc8] sm:$0xff] %vm1163, %v2988
      %3031 = vst.msk [vmem:[%s534 + $0xd0] sm:$0xff] %vm1163, %v2991
      %3032 = vst.msk [vmem:[%s534 + $0xd8] sm:$0xff] %vm1163, %v2993
      %3033 = vst.msk [vmem:[%s534 + $0xe0] sm:$0xff] %vm1163, %v2996
      %3034 = vst.msk [vmem:[%s534 + $0xe8] sm:$0xff] %vm1163, %v2998
      %3035 = vst.msk [vmem:[%s534 + $0xf0] sm:$0xff] %vm1163, %v3001
      %3036 = vst.msk [vmem:[%s534 + $0xf8] sm:$0xff] %vm1163, %v3003
      %p3037 = scmp.lt.s32.totalorder %s26, 3
      %s3038 = scalar_select %p3037, %s26, 3
      %p3039 = scmp.lt.s32.totalorder %s25, 1
      %s3040 = scalar_select %p3039, %s25, 1
      %s3041 = smul.addr %s3040, 32
      %s3042 = smul.addr %s3038, 64
      %s3043 = sadd.s32 %s3041, %s3042
      %s3044 = smul.addr %s3043, 8
      %s3045 = scalar_lea.vmem %s10, %s3044
      // Predicated region
      $region61: #{pappm_forward.4} parent=59 // pred_check
        %p3046 = pneg %p313
      $region62: #{pappm_forward.4} parent=59 // pred_check_branch
        %3048 = sbr.rel (%p3046) target = $region64
      $region63: #{pappm_forward.4} parent=59 // pred_region
        _
      $region64: #{pappm_forward.4} parent=59 // pred_fallthru
        _
    $region60: #{pappm_forward.4} parent=5 // pred_fallthru
      _
    %p3049 = scmp.le.s32.totalorder 2, %s16
    // Predicated region
    $region65: #{pappm_forward.4} parent=5 // pred_check
      %p3050 = pneg %p3049
    $region66: #{pappm_forward.4} parent=5 // pred_check_branch
      %3052 = sbr.rel (%p3050) target = $region68
    $region67: #{pappm_forward.4} parent=5 // pred_region
      %s3053 = ssub.s32 %s16, 2
      // Predicated region
      $region69: #{pappm_forward.4} parent=67 // pred_check
        %p3054 = pneg %p319
      $region70: #{pappm_forward.4} parent=67 // pred_check_branch
        %3056 = sbr.rel (%p3054) target = $region72
      $region71: #{pappm_forward.4} parent=67 // pred_region
        %p3057 = scmp.lt.s32.totalorder %s28, 3
        %s3058 = scalar_select %p3057, %s28, 3
        %p3059 = scmp.lt.s32.totalorder %s27, 1
        %s3060 = scalar_select %p3059, %s27, 1
        %s3061 = smul.addr %s3060, 32
        %s3062 = smul.addr %s3058, 64
        %s3063 = sadd.s32 %s3061, %s3062
        %s3064 = smul.addr %s3063, 8
        %s3065 = scalar_lea.vmem %s10, %s3064
      $region72: #{pappm_forward.4} parent=67 // pred_fallthru
        _
    $region68: #{pappm_forward.4} parent=5 // pred_fallthru
      _
  $region6: #{pappm_forward.4} parent=0 // loop_footer
    %s20 = sadd.s32 1, %s16
  $region7: #{pappm_forward.4} parent=0 // loop_footer_branch
    %15 = sbr.rel target = $region3
  $region8: #{pappm_forward.4} parent=0 // loop_exit
    _

</llo_original>
